<compile_context>
chip_gen: v7x
topology: tpu7x:2x2x1
jax: 0.10.0
libtpu: 0.0.40
codegen_flags: <defaults>
</compile_context>

<pallas_src>
import functools

import jax
import jax.numpy as jnp
from jax.experimental import pallas as pl
from jax.experimental.pallas import tpu as pltpu

_BN_EPS = 1e-5


# ----------------------------------------------------------------------------
# Kernel 1: [optional folded-BN affine + ReLU prologue] -> 3x3 "same" conv ->
#           + bias, plus per-channel (sum, sum-of-squares) BN partials.
# ----------------------------------------------------------------------------
def _fused_conv_kernel(x_ref, mask_ref, scale_ref, shift_ref, w_ref, b_ref,
                       y_ref, ssum_ref, ssq_ref, *, W, apply_prologue):
    # x_ref    : (1, Cin, HW)   input activation, flattened spatial (lane-dense)
    # mask_ref : (9, 1, HW)     0/1 halo masks per 3x3 tap (precomputed on host)
    # scale_ref: (Cin, 1)       folded BN scale of the previous layer
    # shift_ref: (Cin, 1)       folded BN shift of the previous layer
    # w_ref    : (9, Cout, Cin) 3x3 taps, tap-major
    # b_ref    : (Cout, 1)      conv bias
    # y_ref    : (1, Cout, HW)  conv output (pre-BN), lane-dense
    # ssum_ref : (1, Cout, 1)   per-channel sum for this batch element (f32)
    # ssq_ref  : (1, Cout, 1)   per-channel sum of squares (f32)
    hw = x_ref.shape[2]
    cout = y_ref.shape[1]

    x = x_ref[0].astype(jnp.float32)                            # (Cin, HW)
    if apply_prologue:
        # Previous layer's BatchNorm (folded to affine) + ReLU fused here, so the
        # intermediate activation never takes an extra HBM round trip.
        x = jnp.maximum(x * scale_ref[...].astype(jnp.float32)
                        + shift_ref[...].astype(jnp.float32), 0.0)

    # 3x3 conv, padding=1, as 9 shifted MXU dots.  The spatial shift is an XLU
    # lane-rotate of the flat (C, H*W) slab; out-of-bounds taps are zeroed with a
    # precomputed 0/1 mask (no padded input copy, no strided-slice VMEM copies).
    acc = jnp.zeros((cout, hw), jnp.float32)
    t = 0
    for oy in (-1, 0, 1):
        for ox in (-1, 0, 1):
            m = oy * W + ox                    # flat read offset for this tap
            shift = (-m) % hw
            tap = pltpu.roll(x, shift, axis=1) if shift else x
            if m != 0:
                tap = tap * mask_ref[t]        # (1, HW) -> sublane broadcast
            acc += jnp.dot(w_ref[t], tap, preferred_element_type=jnp.float32)
            t += 1

    acc += b_ref[...].astype(jnp.float32)      # (Cout, 1) lane broadcast
    y_ref[0] = acc.astype(y_ref.dtype)
    # BN partial statistics accumulated in f32 while the data is still on-chip.
    ssum_ref[0] = jnp.sum(acc, axis=1, keepdims=True)
    ssq_ref[0] = jnp.sum(acc * acc, axis=1, keepdims=True)


def _fused_conv(x_flat, masks, scale, shift, w9, b, *, W, apply_prologue):
    N, Cin, HW = x_flat.shape
    Cout = w9.shape[1]
    kernel = functools.partial(_fused_conv_kernel, W=W,
                               apply_prologue=apply_prologue)
    return pl.pallas_call(
        kernel,
        out_shape=(
            jax.ShapeDtypeStruct((N, Cout, HW), x_flat.dtype),
            jax.ShapeDtypeStruct((N, Cout, 1), jnp.float32),
            jax.ShapeDtypeStruct((N, Cout, 1), jnp.float32),
        ),
        grid_spec=pltpu.PrefetchScalarGridSpec(
            num_scalar_prefetch=0,
            grid=(N,),
            in_specs=[
                pl.BlockSpec((1, Cin, HW), lambda n: (n, 0, 0)),
                pl.BlockSpec((9, 1, HW), lambda n: (0, 0, 0)),
                pl.BlockSpec((Cin, 1), lambda n: (0, 0)),
                pl.BlockSpec((Cin, 1), lambda n: (0, 0)),
                pl.BlockSpec((9, Cout, Cin), lambda n: (0, 0, 0)),
                pl.BlockSpec((Cout, 1), lambda n: (0, 0)),
            ],
            out_specs=(
                pl.BlockSpec((1, Cout, HW), lambda n: (n, 0, 0)),
                pl.BlockSpec((1, Cout, 1), lambda n: (n, 0, 0)),
                pl.BlockSpec((1, Cout, 1), lambda n: (n, 0, 0)),
            ),
        ),
        compiler_params=pltpu.CompilerParams(dimension_semantics=("parallel",)),
    )(x_flat, masks, scale, shift, w9, b)


# ----------------------------------------------------------------------------
# Kernel 2: final folded-BN affine + ReLU (needed as a separate lane-dense pass
# because train-mode BN requires full-batch statistics of y2 before it applies).
# ----------------------------------------------------------------------------
def _affine_relu_kernel(y_ref, scale_ref, shift_ref, o_ref):
    y = y_ref[0].astype(jnp.float32)
    o_ref[0] = jnp.maximum(
        y * scale_ref[...].astype(jnp.float32)
        + shift_ref[...].astype(jnp.float32), 0.0).astype(o_ref.dtype)


def _affine_relu(y_flat, scale, shift):
    N, C, HW = y_flat.shape
    return pl.pallas_call(
        _affine_relu_kernel,
        out_shape=jax.ShapeDtypeStruct((N, C, HW), y_flat.dtype),
        grid_spec=pltpu.PrefetchScalarGridSpec(
            num_scalar_prefetch=0,
            grid=(N,),
            in_specs=[
                pl.BlockSpec((1, C, HW), lambda n: (n, 0, 0)),
                pl.BlockSpec((C, 1), lambda n: (0, 0)),
                pl.BlockSpec((C, 1), lambda n: (0, 0)),
            ],
            out_specs=pl.BlockSpec((1, C, HW), lambda n: (n, 0, 0)),
        ),
        compiler_params=pltpu.CompilerParams(dimension_semantics=("parallel",)),
    )(y_flat, scale, shift)


# ----------------------------------------------------------------------------
# Host-side glue.
# ----------------------------------------------------------------------------
def _tap_masks(H, W):
    """0/1 halo masks, one (1, H*W) row per 3x3 tap (same tap order as the kernel)."""
    r = jnp.arange(H * W, dtype=jnp.int32) // W
    c = jnp.arange(H * W, dtype=jnp.int32) % W
    rows = []
    for oy in (-1, 0, 1):
        for ox in (-1, 0, 1):
            ok = (r + oy >= 0) & (r + oy < H) & (c + ox >= 0) & (c + ox < W)
            rows.append(ok.astype(jnp.float32))
    return jnp.stack(rows, axis=0).reshape(9, 1, H * W)


def _affine_from_stats(ssum, ssq, gamma, beta, count):
    # TODO(synk): this tiny (N, C) cross-batch reduction + rsqrt fold stays in plain
    # JAX -- train-mode BatchNorm is a whole-batch barrier between pallas_calls.
    total = jnp.sum(ssum, axis=0)[:, 0].astype(jnp.float32)
    total_sq = jnp.sum(ssq, axis=0)[:, 0].astype(jnp.float32)
    mean = total / count
    var = jnp.maximum(total_sq / count - mean * mean, 0.0)   # biased, as PyTorch BN
    scale = gamma.astype(jnp.float32) * jax.lax.rsqrt(var + _BN_EPS)
    shift = beta.astype(jnp.float32) - mean * scale
    return scale, shift


def double_conv_forward(x_nchw, params, batch_norm=True):
    """Equivalent of DoubleConv.forward on an NCHW input (train-mode BN)."""
    N, Cin, H, W = x_nchw.shape
    Cout = params["w1"].shape[-1]
    HW = H * W

    xf = x_nchw.reshape(N, Cin, HW)                 # contiguous reshape (free)
    masks = _tap_masks(H, W)

    # HWIO (3,3,Ci,Co) -> tap-major (9, Co, Ci) for (Co,Ci)x(Ci,HW) dots.
    w1 = jnp.transpose(params["w1"].reshape(9, Cin, Cout), (0, 2, 1))
    w2 = jnp.transpose(params["w2"].reshape(9, Cout, Cout), (0, 2, 1))
    b1 = params["b1"].reshape(Cout, 1)
    b2 = params["b2"].reshape(Cout, 1)

    # ---- conv1 (+bias), with fused per-sample BN partial sums ----------------
    dummy_s = jnp.ones((Cin, 1), jnp.float32)
    dummy_t = jnp.zeros((Cin, 1), jnp.float32)
    y1, s1sum, s1sq = _fused_conv(xf, masks, dummy_s, dummy_t, w1, b1,
                                  W=W, apply_prologue=False)

    if batch_norm:
        scale1, shift1 = _affine_from_stats(s1sum, s1sq, params["gamma"],
                                            params["beta"], N * HW)
    else:
        scale1 = jnp.ones((Cout,), jnp.float32)
        shift1 = jnp.zeros((Cout,), jnp.float32)

    # ---- BN1+ReLU fused into conv2's prologue; conv2 (+bias) + BN2 partials ---
    y2, s2sum, s2sq = _fused_conv(y1, masks, scale1.reshape(Cout, 1),
                                  shift1.reshape(Cout, 1), w2, b2,
                                  W=W, apply_prologue=True)

    if batch_norm:
        scale2, shift2 = _affine_from_stats(s2sum, s2sq, params["gamma"],
                                            params["beta"], N * HW)
    else:
        scale2 = jnp.ones((Cout,), jnp.float32)
        shift2 = jnp.zeros((Cout,), jnp.float32)

    out = _affine_relu(y2, scale2.reshape(Cout, 1), shift2.reshape(Cout, 1))
    return out.reshape(N, Cout, H, W)               # contiguous reshape (free)


# ----------------------------------------------------------------------------
# Pure-JAX reference (same math) for the correctness check.
# ----------------------------------------------------------------------------
def _reference(x_nchw, params):
    x = jnp.transpose(x_nchw, (0, 2, 3, 1))

    def conv(xx, w, b):
        y = jax.lax.conv_general_dilated(
            xx, w, window_strides=(1, 1), padding="SAME",
            dimension_numbers=("NHWC", "HWIO", "NHWC"))
        return y + b

    def bn_relu_ref(y, gamma, beta):
        mean = jnp.mean(y, axis=(0, 1, 2))
        var = jnp.mean(jnp.square(y - mean), axis=(0, 1, 2))
        yhat = (y - mean) * jax.lax.rsqrt(var + _BN_EPS)
        return jnp.maximum(yhat * gamma + beta, 0.0)

    y1 = conv(x, params["w1"], params["b1"])
    a1 = bn_relu_ref(y1, params["gamma"], params["beta"])
    y2 = conv(a1, params["w2"], params["b2"])
    out = bn_relu_ref(y2, params["gamma"], params["beta"])
    return jnp.transpose(out, (0, 3, 1, 2))


if __name__ == "__main__":
    # Small shapes consistent with the module: N=2, in_ch=4, out_ch=8, 16x16 spatial.
    N, IN_CH, OUT_CH, H, W = 2, 4, 8, 16, 16

    key = jax.random.PRNGKey(0)
    k_x, k_w1, k_b1, k_w2, k_b2, k_g, k_be = jax.random.split(key, 7)

    x = jax.random.normal(k_x, (N, IN_CH, H, W), jnp.float32)
    params = {
        # Conv2d(in_ch, out_ch, 3, padding=1) weights in HWIO layout.
        "w1": 0.1 * jax.random.normal(k_w1, (3, 3, IN_CH, OUT_CH), jnp.float32),
        "b1": 0.1 * jax.random.normal(k_b1, (OUT_CH,), jnp.float32),
        # Conv2d(out_ch, out_ch, 3, padding=1)
        "w2": 0.1 * jax.random.normal(k_w2, (3, 3, OUT_CH, OUT_CH), jnp.float32),
        "b2": 0.1 * jax.random.normal(k_b2, (OUT_CH,), jnp.float32),
        # Shared BatchNorm2d(out_ch) affine params (same layer used twice).
        "gamma": 1.0 + 0.1 * jax.random.normal(k_g, (OUT_CH,), jnp.float32),
        "beta": 0.1 * jax.random.normal(k_be, (OUT_CH,), jnp.float32),
    }

    fwd = jax.jit(functools.partial(double_conv_forward, batch_norm=True))
    out = jax.block_until_ready(fwd(x, params))
    ref = jax.block_until_ready(_reference(x, params))

    assert out.shape == (N, OUT_CH, H, W), out.shape
    assert jnp.allclose(out, ref, rtol=1e-3, atol=1e-3), float(jnp.max(jnp.abs(out - ref)))
    print("KERNEL_OK")
</pallas_src>

<mosaic_0001>
module attributes {stable_mosaic.version = 11 : i64} {
  func.func @_fused_conv_kernel(%arg0: i32, %arg1: memref<1x4x256xf32, #tpu.memory_space<vmem>>, %arg2: memref<9x1x256xf32, #tpu.memory_space<vmem>>, %arg3: memref<4x1xf32, #tpu.memory_space<vmem>>, %arg4: memref<4x1xf32, #tpu.memory_space<vmem>>, %arg5: memref<9x8x4xf32, #tpu.memory_space<vmem>>, %arg6: memref<8x1xf32, #tpu.memory_space<vmem>>, %arg7: memref<1x8x256xf32, #tpu.memory_space<vmem>>, %arg8: memref<1x8x1xf32, #tpu.memory_space<vmem>>, %arg9: memref<1x8x1xf32, #tpu.memory_space<vmem>>) attributes {dimension_semantics = [#tpu.dimension_semantics<parallel>], iteration_bounds = array<i64: 2>, scalar_prefetch = 0 : i64, scratch_operands = 0 : i64, tpu.core_type = #tpu.core_type<tc>, window_params = [{transform_indices = @transform_0, window_bounds = array<i64: 1, 4, 256>}, {pipeline_mode = #tpu.pipeline_mode<synchronous>, transform_indices = @transform_1, window_bounds = array<i64: 9, 1, 256>}, {pipeline_mode = #tpu.pipeline_mode<synchronous>, transform_indices = @transform_2, window_bounds = array<i64: 4, 1>}, {pipeline_mode = #tpu.pipeline_mode<synchronous>, transform_indices = @transform_3, window_bounds = array<i64: 4, 1>}, {pipeline_mode = #tpu.pipeline_mode<synchronous>, transform_indices = @transform_4, window_bounds = array<i64: 9, 8, 4>}, {pipeline_mode = #tpu.pipeline_mode<synchronous>, transform_indices = @transform_5, window_bounds = array<i64: 8, 1>}, {transform_indices = @transform_6, window_bounds = array<i64: 1, 8, 256>}, {transform_indices = @transform_7, window_bounds = array<i64: 1, 8, 1>}, {transform_indices = @transform_8, window_bounds = array<i64: 1, 8, 1>}]} {
    %c0 = arith.constant 0 : index
    %c0_0 = arith.constant 0 : index
    %c0_1 = arith.constant 0 : index
    %0 = vector.load %arg1[%c0, %c0_0, %c0_1] : memref<1x4x256xf32, #tpu.memory_space<vmem>>, vector<1x4x256xf32>
    %1 = vector.shape_cast %0 : vector<1x4x256xf32> to vector<4x256xf32>
    %cst = arith.constant 0.000000e+00 : f32
    %2 = vector.broadcast %cst : f32 to vector<8x256xf32>
    %c17_i32 = arith.constant 17 : i32
    %3 = tpu.dynamic_rotate %1 by %c17_i32 dim 1 : vector<4x256xf32>, i32 -> vector<4x256xf32>
    %c0_2 = arith.constant 0 : index
    %c0_3 = arith.constant 0 : index
    %c0_4 = arith.constant 0 : index
    %4 = vector.load %arg2[%c0_2, %c0_3, %c0_4] : memref<9x1x256xf32, #tpu.memory_space<vmem>>, vector<1x1x256xf32>
    %5 = vector.shape_cast %4 : vector<1x1x256xf32> to vector<1x256xf32>
    %6 = vector.broadcast %5 : vector<1x256xf32> to vector<4x256xf32>
    %7 = arith.mulf %3, %6 : vector<4x256xf32>
    %c0_5 = arith.constant 0 : index
    %c0_6 = arith.constant 0 : index
    %c0_7 = arith.constant 0 : index
    %8 = vector.load %arg5[%c0_5, %c0_6, %c0_7] : memref<9x8x4xf32, #tpu.memory_space<vmem>>, vector<1x8x4xf32>
    %9 = vector.shape_cast %8 : vector<1x8x4xf32> to vector<8x4xf32>
    %cst_8 = arith.constant dense<0.000000e+00> : vector<8x256xf32>
    %10 = tpu.matmul %9, %7, %cst_8 {dimension_numbers = #tpu.dot_dimension_numbers<[1], [0], [0], [1], [0, 0, 1, 1], [], []>} : vector<8x4xf32>, vector<4x256xf32>, vector<8x256xf32> -> vector<8x256xf32>
    %11 = arith.addf %2, %10 : vector<8x256xf32>
    %c16_i32 = arith.constant 16 : i32
    %12 = tpu.dynamic_rotate %1 by %c16_i32 dim 1 : vector<4x256xf32>, i32 -> vector<4x256xf32>
    %c1 = arith.constant 1 : index
    %c0_9 = arith.constant 0 : index
    %c0_10 = arith.constant 0 : index
    %13 = vector.load %arg2[%c1, %c0_9, %c0_10] : memref<9x1x256xf32, #tpu.memory_space<vmem>>, vector<1x1x256xf32>
    %14 = vector.shape_cast %13 : vector<1x1x256xf32> to vector<1x256xf32>
    %15 = vector.broadcast %14 : vector<1x256xf32> to vector<4x256xf32>
    %16 = arith.mulf %12, %15 : vector<4x256xf32>
    %c1_11 = arith.constant 1 : index
    %c0_12 = arith.constant 0 : index
    %c0_13 = arith.constant 0 : index
    %17 = vector.load %arg5[%c1_11, %c0_12, %c0_13] : memref<9x8x4xf32, #tpu.memory_space<vmem>>, vector<1x8x4xf32>
    %18 = vector.shape_cast %17 : vector<1x8x4xf32> to vector<8x4xf32>
    %cst_14 = arith.constant dense<0.000000e+00> : vector<8x256xf32>
    %19 = tpu.matmul %18, %16, %cst_14 {dimension_numbers = #tpu.dot_dimension_numbers<[1], [0], [0], [1], [0, 0, 1, 1], [], []>} : vector<8x4xf32>, vector<4x256xf32>, vector<8x256xf32> -> vector<8x256xf32>
    %20 = arith.addf %11, %19 : vector<8x256xf32>
    %c15_i32 = arith.constant 15 : i32
    %21 = tpu.dynamic_rotate %1 by %c15_i32 dim 1 : vector<4x256xf32>, i32 -> vector<4x256xf32>
    %c2 = arith.constant 2 : index
    %c0_15 = arith.constant 0 : index
    %c0_16 = arith.constant 0 : index
    %22 = vector.load %arg2[%c2, %c0_15, %c0_16] : memref<9x1x256xf32, #tpu.memory_space<vmem>>, vector<1x1x256xf32>
    %23 = vector.shape_cast %22 : vector<1x1x256xf32> to vector<1x256xf32>
    %24 = vector.broadcast %23 : vector<1x256xf32> to vector<4x256xf32>
    %25 = arith.mulf %21, %24 : vector<4x256xf32>
    %c2_17 = arith.constant 2 : index
    %c0_18 = arith.constant 0 : index
    %c0_19 = arith.constant 0 : index
    %26 = vector.load %arg5[%c2_17, %c0_18, %c0_19] : memref<9x8x4xf32, #tpu.memory_space<vmem>>, vector<1x8x4xf32>
    %27 = vector.shape_cast %26 : vector<1x8x4xf32> to vector<8x4xf32>
    %cst_20 = arith.constant dense<0.000000e+00> : vector<8x256xf32>
    %28 = tpu.matmul %27, %25, %cst_20 {dimension_numbers = #tpu.dot_dimension_numbers<[1], [0], [0], [1], [0, 0, 1, 1], [], []>} : vector<8x4xf32>, vector<4x256xf32>, vector<8x256xf32> -> vector<8x256xf32>
    %29 = arith.addf %20, %28 : vector<8x256xf32>
    %c1_i32 = arith.constant 1 : i32
    %30 = tpu.dynamic_rotate %1 by %c1_i32 dim 1 : vector<4x256xf32>, i32 -> vector<4x256xf32>
    %c3 = arith.constant 3 : index
    %c0_21 = arith.constant 0 : index
    %c0_22 = arith.constant 0 : index
    %31 = vector.load %arg2[%c3, %c0_21, %c0_22] : memref<9x1x256xf32, #tpu.memory_space<vmem>>, vector<1x1x256xf32>
    %32 = vector.shape_cast %31 : vector<1x1x256xf32> to vector<1x256xf32>
    %33 = vector.broadcast %32 : vector<1x256xf32> to vector<4x256xf32>
    %34 = arith.mulf %30, %33 : vector<4x256xf32>
    %c3_23 = arith.constant 3 : index
    %c0_24 = arith.constant 0 : index
    %c0_25 = arith.constant 0 : index
    %35 = vector.load %arg5[%c3_23, %c0_24, %c0_25] : memref<9x8x4xf32, #tpu.memory_space<vmem>>, vector<1x8x4xf32>
    %36 = vector.shape_cast %35 : vector<1x8x4xf32> to vector<8x4xf32>
    %cst_26 = arith.constant dense<0.000000e+00> : vector<8x256xf32>
    %37 = tpu.matmul %36, %34, %cst_26 {dimension_numbers = #tpu.dot_dimension_numbers<[1], [0], [0], [1], [0, 0, 1, 1], [], []>} : vector<8x4xf32>, vector<4x256xf32>, vector<8x256xf32> -> vector<8x256xf32>
    %38 = arith.addf %29, %37 : vector<8x256xf32>
    %c4 = arith.constant 4 : index
    %c0_27 = arith.constant 0 : index
    %c0_28 = arith.constant 0 : index
    %39 = vector.load %arg5[%c4, %c0_27, %c0_28] : memref<9x8x4xf32, #tpu.memory_space<vmem>>, vector<1x8x4xf32>
    %40 = vector.shape_cast %39 : vector<1x8x4xf32> to vector<8x4xf32>
    %cst_29 = arith.constant dense<0.000000e+00> : vector<8x256xf32>
    %41 = tpu.matmul %40, %1, %cst_29 {dimension_numbers = #tpu.dot_dimension_numbers<[1], [0], [0], [1], [0, 0, 1, 1], [], []>} : vector<8x4xf32>, vector<4x256xf32>, vector<8x256xf32> -> vector<8x256xf32>
    %42 = arith.addf %38, %41 : vector<8x256xf32>
    %c255_i32 = arith.constant 255 : i32
    %43 = tpu.dynamic_rotate %1 by %c255_i32 dim 1 : vector<4x256xf32>, i32 -> vector<4x256xf32>
    %c5 = arith.constant 5 : index
    %c0_30 = arith.constant 0 : index
    %c0_31 = arith.constant 0 : index
    %44 = vector.load %arg2[%c5, %c0_30, %c0_31] : memref<9x1x256xf32, #tpu.memory_space<vmem>>, vector<1x1x256xf32>
    %45 = vector.shape_cast %44 : vector<1x1x256xf32> to vector<1x256xf32>
    %46 = vector.broadcast %45 : vector<1x256xf32> to vector<4x256xf32>
    %47 = arith.mulf %43, %46 : vector<4x256xf32>
    %c5_32 = arith.constant 5 : index
    %c0_33 = arith.constant 0 : index
    %c0_34 = arith.constant 0 : index
    %48 = vector.load %arg5[%c5_32, %c0_33, %c0_34] : memref<9x8x4xf32, #tpu.memory_space<vmem>>, vector<1x8x4xf32>
    %49 = vector.shape_cast %48 : vector<1x8x4xf32> to vector<8x4xf32>
    %cst_35 = arith.constant dense<0.000000e+00> : vector<8x256xf32>
    %50 = tpu.matmul %49, %47, %cst_35 {dimension_numbers = #tpu.dot_dimension_numbers<[1], [0], [0], [1], [0, 0, 1, 1], [], []>} : vector<8x4xf32>, vector<4x256xf32>, vector<8x256xf32> -> vector<8x256xf32>
    %51 = arith.addf %42, %50 : vector<8x256xf32>
    %c241_i32 = arith.constant 241 : i32
    %52 = tpu.dynamic_rotate %1 by %c241_i32 dim 1 : vector<4x256xf32>, i32 -> vector<4x256xf32>
    %c6 = arith.constant 6 : index
    %c0_36 = arith.constant 0 : index
    %c0_37 = arith.constant 0 : index
    %53 = vector.load %arg2[%c6, %c0_36, %c0_37] : memref<9x1x256xf32, #tpu.memory_space<vmem>>, vector<1x1x256xf32>
    %54 = vector.shape_cast %53 : vector<1x1x256xf32> to vector<1x256xf32>
    %55 = vector.broadcast %54 : vector<1x256xf32> to vector<4x256xf32>
    %56 = arith.mulf %52, %55 : vector<4x256xf32>
    %c6_38 = arith.constant 6 : index
    %c0_39 = arith.constant 0 : index
    %c0_40 = arith.constant 0 : index
    %57 = vector.load %arg5[%c6_38, %c0_39, %c0_40] : memref<9x8x4xf32, #tpu.memory_space<vmem>>, vector<1x8x4xf32>
    %58 = vector.shape_cast %57 : vector<1x8x4xf32> to vector<8x4xf32>
    %cst_41 = arith.constant dense<0.000000e+00> : vector<8x256xf32>
    %59 = tpu.matmul %58, %56, %cst_41 {dimension_numbers = #tpu.dot_dimension_numbers<[1], [0], [0], [1], [0, 0, 1, 1], [], []>} : vector<8x4xf32>, vector<4x256xf32>, vector<8x256xf32> -> vector<8x256xf32>
    %60 = arith.addf %51, %59 : vector<8x256xf32>
    %c240_i32 = arith.constant 240 : i32
    %61 = tpu.dynamic_rotate %1 by %c240_i32 dim 1 : vector<4x256xf32>, i32 -> vector<4x256xf32>
    %c7 = arith.constant 7 : index
    %c0_42 = arith.constant 0 : index
    %c0_43 = arith.constant 0 : index
    %62 = vector.load %arg2[%c7, %c0_42, %c0_43] : memref<9x1x256xf32, #tpu.memory_space<vmem>>, vector<1x1x256xf32>
    %63 = vector.shape_cast %62 : vector<1x1x256xf32> to vector<1x256xf32>
    %64 = vector.broadcast %63 : vector<1x256xf32> to vector<4x256xf32>
    %65 = arith.mulf %61, %64 : vector<4x256xf32>
    %c7_44 = arith.constant 7 : index
    %c0_45 = arith.constant 0 : index
    %c0_46 = arith.constant 0 : index
    %66 = vector.load %arg5[%c7_44, %c0_45, %c0_46] : memref<9x8x4xf32, #tpu.memory_space<vmem>>, vector<1x8x4xf32>
    %67 = vector.shape_cast %66 : vector<1x8x4xf32> to vector<8x4xf32>
    %cst_47 = arith.constant dense<0.000000e+00> : vector<8x256xf32>
    %68 = tpu.matmul %67, %65, %cst_47 {dimension_numbers = #tpu.dot_dimension_numbers<[1], [0], [0], [1], [0, 0, 1, 1], [], []>} : vector<8x4xf32>, vector<4x256xf32>, vector<8x256xf32> -> vector<8x256xf32>
    %69 = arith.addf %60, %68 : vector<8x256xf32>
    %c239_i32 = arith.constant 239 : i32
    %70 = tpu.dynamic_rotate %1 by %c239_i32 dim 1 : vector<4x256xf32>, i32 -> vector<4x256xf32>
    %c8 = arith.constant 8 : index
    %c0_48 = arith.constant 0 : index
    %c0_49 = arith.constant 0 : index
    %71 = vector.load %arg2[%c8, %c0_48, %c0_49] : memref<9x1x256xf32, #tpu.memory_space<vmem>>, vector<1x1x256xf32>
    %72 = vector.shape_cast %71 : vector<1x1x256xf32> to vector<1x256xf32>
    %73 = vector.broadcast %72 : vector<1x256xf32> to vector<4x256xf32>
    %74 = arith.mulf %70, %73 : vector<4x256xf32>
    %c8_50 = arith.constant 8 : index
    %c0_51 = arith.constant 0 : index
    %c0_52 = arith.constant 0 : index
    %75 = vector.load %arg5[%c8_50, %c0_51, %c0_52] : memref<9x8x4xf32, #tpu.memory_space<vmem>>, vector<1x8x4xf32>
    %76 = vector.shape_cast %75 : vector<1x8x4xf32> to vector<8x4xf32>
    %cst_53 = arith.constant dense<0.000000e+00> : vector<8x256xf32>
    %77 = tpu.matmul %76, %74, %cst_53 {dimension_numbers = #tpu.dot_dimension_numbers<[1], [0], [0], [1], [0, 0, 1, 1], [], []>} : vector<8x4xf32>, vector<4x256xf32>, vector<8x256xf32> -> vector<8x256xf32>
    %78 = arith.addf %69, %77 : vector<8x256xf32>
    %c0_54 = arith.constant 0 : index
    %c0_55 = arith.constant 0 : index
    %79 = vector.load %arg6[%c0_54, %c0_55] : memref<8x1xf32, #tpu.memory_space<vmem>>, vector<8x1xf32>
    %80 = vector.broadcast %79 : vector<8x1xf32> to vector<8x256xf32>
    %81 = arith.addf %78, %80 : vector<8x256xf32>
    %c0_56 = arith.constant 0 : index
    %c0_57 = arith.constant 0 : index
    %c0_58 = arith.constant 0 : index
    %82 = vector.load %arg7[%c0_56, %c0_57, %c0_58] : memref<1x8x256xf32, #tpu.memory_space<vmem>>, vector<1x8x256xf32>
    %83 = vector.shape_cast %82 : vector<1x8x256xf32> to vector<8x256xf32>
    %84 = vector.shape_cast %81 : vector<8x256xf32> to vector<1x8x256xf32>
    tpu.vector_store %arg7[%c0_56, %c0_57, %c0_58], %84 {strides = array<i32>} : memref<1x8x256xf32, #tpu.memory_space<vmem>>, vector<1x8x256xf32>,
    %cst_59 = arith.constant dense<0.000000e+00> : vector<8xf32>
    %85 = vector.multi_reduction <add>, %81, %cst_59 [1] : vector<8x256xf32> to vector<8xf32>
    %86 = vector.shape_cast %85 : vector<8xf32> to vector<8x1xf32>
    %c0_60 = arith.constant 0 : index
    %c0_61 = arith.constant 0 : index
    %c0_62 = arith.constant 0 : index
    %87 = vector.load %arg8[%c0_60, %c0_61, %c0_62] : memref<1x8x1xf32, #tpu.memory_space<vmem>>, vector<1x8x1xf32>
    %88 = vector.shape_cast %87 : vector<1x8x1xf32> to vector<8x1xf32>
    %89 = vector.shape_cast %86 : vector<8x1xf32> to vector<1x8x1xf32>
    tpu.vector_store %arg8[%c0_60, %c0_61, %c0_62], %89 {strides = array<i32>} : memref<1x8x1xf32, #tpu.memory_space<vmem>>, vector<1x8x1xf32>,
    %90 = arith.mulf %81, %81 : vector<8x256xf32>
    %cst_63 = arith.constant dense<0.000000e+00> : vector<8xf32>
    %91 = vector.multi_reduction <add>, %90, %cst_63 [1] : vector<8x256xf32> to vector<8xf32>
    %92 = vector.shape_cast %91 : vector<8xf32> to vector<8x1xf32>
    %c0_64 = arith.constant 0 : index
    %c0_65 = arith.constant 0 : index
    %c0_66 = arith.constant 0 : index
    %93 = vector.load %arg9[%c0_64, %c0_65, %c0_66] : memref<1x8x1xf32, #tpu.memory_space<vmem>>, vector<1x8x1xf32>
    %94 = vector.shape_cast %93 : vector<1x8x1xf32> to vector<8x1xf32>
    %95 = vector.shape_cast %92 : vector<8x1xf32> to vector<1x8x1xf32>
    tpu.vector_store %arg9[%c0_64, %c0_65, %c0_66], %95 {strides = array<i32>} : memref<1x8x1xf32, #tpu.memory_space<vmem>>, vector<1x8x1xf32>,
    return
  }
  func.func @transform_0(%arg0: i32) -> (i32, i32, i32) {
    %c0_i32 = arith.constant 0 : i32
    %c0_i32_0 = arith.constant 0 : i32
    %c0_i32_1 = arith.constant 0 : i32
    return %arg0, %c0_i32, %c0_i32_0 : i32, i32, i32
  }
  func.func @transform_1(%arg0: i32) -> (i32, i32, i32) {
    %c0_i32 = arith.constant 0 : i32
    %c0_i32_0 = arith.constant 0 : i32
    %c0_i32_1 = arith.constant 0 : i32
    %c0_i32_2 = arith.constant 0 : i32
    return %c0_i32, %c0_i32_0, %c0_i32_1 : i32, i32, i32
  }
  func.func @transform_2(%arg0: i32) -> (i32, i32) {
    %c0_i32 = arith.constant 0 : i32
    %c0_i32_0 = arith.constant 0 : i32
    %c0_i32_1 = arith.constant 0 : i32
    return %c0_i32, %c0_i32_0 : i32, i32
  }
  func.func @transform_3(%arg0: i32) -> (i32, i32) {
    %c0_i32 = arith.constant 0 : i32
    %c0_i32_0 = arith.constant 0 : i32
    %c0_i32_1 = arith.constant 0 : i32
    return %c0_i32, %c0_i32_0 : i32, i32
  }
  func.func @transform_4(%arg0: i32) -> (i32, i32, i32) {
    %c0_i32 = arith.constant 0 : i32
    %c0_i32_0 = arith.constant 0 : i32
    %c0_i32_1 = arith.constant 0 : i32
    %c0_i32_2 = arith.constant 0 : i32
    return %c0_i32, %c0_i32_0, %c0_i32_1 : i32, i32, i32
  }
  func.func @transform_5(%arg0: i32) -> (i32, i32) {
    %c0_i32 = arith.constant 0 : i32
    %c0_i32_0 = arith.constant 0 : i32
    %c0_i32_1 = arith.constant 0 : i32
    return %c0_i32, %c0_i32_0 : i32, i32
  }
  func.func @transform_6(%arg0: i32) -> (i32, i32, i32) {
    %c0_i32 = arith.constant 0 : i32
    %c0_i32_0 = arith.constant 0 : i32
    %c0_i32_1 = arith.constant 0 : i32
    return %arg0, %c0_i32, %c0_i32_0 : i32, i32, i32
  }
  func.func @transform_7(%arg0: i32) -> (i32, i32, i32) {
    %c0_i32 = arith.constant 0 : i32
    %c0_i32_0 = arith.constant 0 : i32
    %c0_i32_1 = arith.constant 0 : i32
    return %arg0, %c0_i32, %c0_i32_0 : i32, i32, i32
  }
  func.func @transform_8(%arg0: i32) -> (i32, i32, i32) {
    %c0_i32 = arith.constant 0 : i32
    %c0_i32_0 = arith.constant 0 : i32
    %c0_i32_1 = arith.constant 0 : i32
    return %arg0, %c0_i32, %c0_i32_0 : i32, i32, i32
  }
}

module attributes {stable_mosaic.version = 11 : i64} {
  func.func @_fused_conv_kernel(%arg0: i32, %arg1: memref<1x8x256xf32, #tpu.memory_space<vmem>>, %arg2: memref<9x1x256xf32, #tpu.memory_space<vmem>>, %arg3: memref<8x1xf32, #tpu.memory_space<vmem>>, %arg4: memref<8x1xf32, #tpu.memory_space<vmem>>, %arg5: memref<9x8x8xf32, #tpu.memory_space<vmem>>, %arg6: memref<8x1xf32, #tpu.memory_space<vmem>>, %arg7: memref<1x8x256xf32, #tpu.memory_space<vmem>>, %arg8: memref<1x8x1xf32, #tpu.memory_space<vmem>>, %arg9: memref<1x8x1xf32, #tpu.memory_space<vmem>>) attributes {dimension_semantics = [#tpu.dimension_semantics<parallel>], iteration_bounds = array<i64: 2>, scalar_prefetch = 0 : i64, scratch_operands = 0 : i64, tpu.core_type = #tpu.core_type<tc>, window_params = [{transform_indices = @transform_0, window_bounds = array<i64: 1, 8, 256>}, {pipeline_mode = #tpu.pipeline_mode<synchronous>, transform_indices = @transform_1, window_bounds = array<i64: 9, 1, 256>}, {pipeline_mode = #tpu.pipeline_mode<synchronous>, transform_indices = @transform_2, window_bounds = array<i64: 8, 1>}, {pipeline_mode = #tpu.pipeline_mode<synchronous>, transform_indices = @transform_3, window_bounds = array<i64: 8, 1>}, {pipeline_mode = #tpu.pipeline_mode<synchronous>, transform_indices = @transform_4, window_bounds = array<i64: 9, 8, 8>}, {pipeline_mode = #tpu.pipeline_mode<synchronous>, transform_indices = @transform_5, window_bounds = array<i64: 8, 1>}, {transform_indices = @transform_6, window_bounds = array<i64: 1, 8, 256>}, {transform_indices = @transform_7, window_bounds = array<i64: 1, 8, 1>}, {transform_indices = @transform_8, window_bounds = array<i64: 1, 8, 1>}]} {
    %c0 = arith.constant 0 : index
    %c0_0 = arith.constant 0 : index
    %c0_1 = arith.constant 0 : index
    %0 = vector.load %arg1[%c0, %c0_0, %c0_1] : memref<1x8x256xf32, #tpu.memory_space<vmem>>, vector<1x8x256xf32>
    %1 = vector.shape_cast %0 : vector<1x8x256xf32> to vector<8x256xf32>
    %c0_2 = arith.constant 0 : index
    %c0_3 = arith.constant 0 : index
    %2 = vector.load %arg3[%c0_2, %c0_3] : memref<8x1xf32, #tpu.memory_space<vmem>>, vector<8x1xf32>
    %3 = vector.broadcast %2 : vector<8x1xf32> to vector<8x256xf32>
    %4 = arith.mulf %1, %3 : vector<8x256xf32>
    %c0_4 = arith.constant 0 : index
    %c0_5 = arith.constant 0 : index
    %5 = vector.load %arg4[%c0_4, %c0_5] : memref<8x1xf32, #tpu.memory_space<vmem>>, vector<8x1xf32>
    %6 = vector.broadcast %5 : vector<8x1xf32> to vector<8x256xf32>
    %7 = arith.addf %4, %6 : vector<8x256xf32>
    %cst = arith.constant 0.000000e+00 : f32
    %8 = vector.broadcast %cst : f32 to vector<8x256xf32>
    %9 = arith.maximumf %7, %8 : vector<8x256xf32>
    %cst_6 = arith.constant 0.000000e+00 : f32
    %10 = vector.broadcast %cst_6 : f32 to vector<8x256xf32>
    %c17_i32 = arith.constant 17 : i32
    %11 = tpu.dynamic_rotate %9 by %c17_i32 dim 1 : vector<8x256xf32>, i32 -> vector<8x256xf32>
    %c0_7 = arith.constant 0 : index
    %c0_8 = arith.constant 0 : index
    %c0_9 = arith.constant 0 : index
    %12 = vector.load %arg2[%c0_7, %c0_8, %c0_9] : memref<9x1x256xf32, #tpu.memory_space<vmem>>, vector<1x1x256xf32>
    %13 = vector.shape_cast %12 : vector<1x1x256xf32> to vector<1x256xf32>
    %14 = vector.broadcast %13 : vector<1x256xf32> to vector<8x256xf32>
    %15 = arith.mulf %11, %14 : vector<8x256xf32>
    %c0_10 = arith.constant 0 : index
    %c0_11 = arith.constant 0 : index
    %c0_12 = arith.constant 0 : index
    %16 = vector.load %arg5[%c0_10, %c0_11, %c0_12] : memref<9x8x8xf32, #tpu.memory_space<vmem>>, vector<1x8x8xf32>
    %17 = vector.shape_cast %16 : vector<1x8x8xf32> to vector<8x8xf32>
    %cst_13 = arith.constant dense<0.000000e+00> : vector<8x256xf32>
    %18 = tpu.matmul %17, %15, %cst_13 {dimension_numbers = #tpu.dot_dimension_numbers<[1], [0], [0], [1], [0, 0, 1, 1], [], []>} : vector<8x8xf32>, vector<8x256xf32>, vector<8x256xf32> -> vector<8x256xf32>
    %19 = arith.addf %10, %18 : vector<8x256xf32>
    %c16_i32 = arith.constant 16 : i32
    %20 = tpu.dynamic_rotate %9 by %c16_i32 dim 1 : vector<8x256xf32>, i32 -> vector<8x256xf32>
    %c1 = arith.constant 1 : index
    %c0_14 = arith.constant 0 : index
    %c0_15 = arith.constant 0 : index
    %21 = vector.load %arg2[%c1, %c0_14, %c0_15] : memref<9x1x256xf32, #tpu.memory_space<vmem>>, vector<1x1x256xf32>
    %22 = vector.shape_cast %21 : vector<1x1x256xf32> to vector<1x256xf32>
    %23 = vector.broadcast %22 : vector<1x256xf32> to vector<8x256xf32>
    %24 = arith.mulf %20, %23 : vector<8x256xf32>
    %c1_16 = arith.constant 1 : index
    %c0_17 = arith.constant 0 : index
    %c0_18 = arith.constant 0 : index
    %25 = vector.load %arg5[%c1_16, %c0_17, %c0_18] : memref<9x8x8xf32, #tpu.memory_space<vmem>>, vector<1x8x8xf32>
    %26 = vector.shape_cast %25 : vector<1x8x8xf32> to vector<8x8xf32>
    %cst_19 = arith.constant dense<0.000000e+00> : vector<8x256xf32>
    %27 = tpu.matmul %26, %24, %cst_19 {dimension_numbers = #tpu.dot_dimension_numbers<[1], [0], [0], [1], [0, 0, 1, 1], [], []>} : vector<8x8xf32>, vector<8x256xf32>, vector<8x256xf32> -> vector<8x256xf32>
    %28 = arith.addf %19, %27 : vector<8x256xf32>
    %c15_i32 = arith.constant 15 : i32
    %29 = tpu.dynamic_rotate %9 by %c15_i32 dim 1 : vector<8x256xf32>, i32 -> vector<8x256xf32>
    %c2 = arith.constant 2 : index
    %c0_20 = arith.constant 0 : index
    %c0_21 = arith.constant 0 : index
    %30 = vector.load %arg2[%c2, %c0_20, %c0_21] : memref<9x1x256xf32, #tpu.memory_space<vmem>>, vector<1x1x256xf32>
    %31 = vector.shape_cast %30 : vector<1x1x256xf32> to vector<1x256xf32>
    %32 = vector.broadcast %31 : vector<1x256xf32> to vector<8x256xf32>
    %33 = arith.mulf %29, %32 : vector<8x256xf32>
    %c2_22 = arith.constant 2 : index
    %c0_23 = arith.constant 0 : index
    %c0_24 = arith.constant 0 : index
    %34 = vector.load %arg5[%c2_22, %c0_23, %c0_24] : memref<9x8x8xf32, #tpu.memory_space<vmem>>, vector<1x8x8xf32>
    %35 = vector.shape_cast %34 : vector<1x8x8xf32> to vector<8x8xf32>
    %cst_25 = arith.constant dense<0.000000e+00> : vector<8x256xf32>
    %36 = tpu.matmul %35, %33, %cst_25 {dimension_numbers = #tpu.dot_dimension_numbers<[1], [0], [0], [1], [0, 0, 1, 1], [], []>} : vector<8x8xf32>, vector<8x256xf32>, vector<8x256xf32> -> vector<8x256xf32>
    %37 = arith.addf %28, %36 : vector<8x256xf32>
    %c1_i32 = arith.constant 1 : i32
    %38 = tpu.dynamic_rotate %9 by %c1_i32 dim 1 : vector<8x256xf32>, i32 -> vector<8x256xf32>
    %c3 = arith.constant 3 : index
    %c0_26 = arith.constant 0 : index
    %c0_27 = arith.constant 0 : index
    %39 = vector.load %arg2[%c3, %c0_26, %c0_27] : memref<9x1x256xf32, #tpu.memory_space<vmem>>, vector<1x1x256xf32>
    %40 = vector.shape_cast %39 : vector<1x1x256xf32> to vector<1x256xf32>
    %41 = vector.broadcast %40 : vector<1x256xf32> to vector<8x256xf32>
    %42 = arith.mulf %38, %41 : vector<8x256xf32>
    %c3_28 = arith.constant 3 : index
    %c0_29 = arith.constant 0 : index
    %c0_30 = arith.constant 0 : index
    %43 = vector.load %arg5[%c3_28, %c0_29, %c0_30] : memref<9x8x8xf32, #tpu.memory_space<vmem>>, vector<1x8x8xf32>
    %44 = vector.shape_cast %43 : vector<1x8x8xf32> to vector<8x8xf32>
    %cst_31 = arith.constant dense<0.000000e+00> : vector<8x256xf32>
    %45 = tpu.matmul %44, %42, %cst_31 {dimension_numbers = #tpu.dot_dimension_numbers<[1], [0], [0], [1], [0, 0, 1, 1], [], []>} : vector<8x8xf32>, vector<8x256xf32>, vector<8x256xf32> -> vector<8x256xf32>
    %46 = arith.addf %37, %45 : vector<8x256xf32>
    %c4 = arith.constant 4 : index
    %c0_32 = arith.constant 0 : index
    %c0_33 = arith.constant 0 : index
    %47 = vector.load %arg5[%c4, %c0_32, %c0_33] : memref<9x8x8xf32, #tpu.memory_space<vmem>>, vector<1x8x8xf32>
    %48 = vector.shape_cast %47 : vector<1x8x8xf32> to vector<8x8xf32>
    %cst_34 = arith.constant dense<0.000000e+00> : vector<8x256xf32>
    %49 = tpu.matmul %48, %9, %cst_34 {dimension_numbers = #tpu.dot_dimension_numbers<[1], [0], [0], [1], [0, 0, 1, 1], [], []>} : vector<8x8xf32>, vector<8x256xf32>, vector<8x256xf32> -> vector<8x256xf32>
    %50 = arith.addf %46, %49 : vector<8x256xf32>
    %c255_i32 = arith.constant 255 : i32
    %51 = tpu.dynamic_rotate %9 by %c255_i32 dim 1 : vector<8x256xf32>, i32 -> vector<8x256xf32>
    %c5 = arith.constant 5 : index
    %c0_35 = arith.constant 0 : index
    %c0_36 = arith.constant 0 : index
    %52 = vector.load %arg2[%c5, %c0_35, %c0_36] : memref<9x1x256xf32, #tpu.memory_space<vmem>>, vector<1x1x256xf32>
    %53 = vector.shape_cast %52 : vector<1x1x256xf32> to vector<1x256xf32>
    %54 = vector.broadcast %53 : vector<1x256xf32> to vector<8x256xf32>
    %55 = arith.mulf %51, %54 : vector<8x256xf32>
    %c5_37 = arith.constant 5 : index
    %c0_38 = arith.constant 0 : index
    %c0_39 = arith.constant 0 : index
    %56 = vector.load %arg5[%c5_37, %c0_38, %c0_39] : memref<9x8x8xf32, #tpu.memory_space<vmem>>, vector<1x8x8xf32>
    %57 = vector.shape_cast %56 : vector<1x8x8xf32> to vector<8x8xf32>
    %cst_40 = arith.constant dense<0.000000e+00> : vector<8x256xf32>
    %58 = tpu.matmul %57, %55, %cst_40 {dimension_numbers = #tpu.dot_dimension_numbers<[1], [0], [0], [1], [0, 0, 1, 1], [], []>} : vector<8x8xf32>, vector<8x256xf32>, vector<8x256xf32> -> vector<8x256xf32>
    %59 = arith.addf %50, %58 : vector<8x256xf32>
    %c241_i32 = arith.constant 241 : i32
    %60 = tpu.dynamic_rotate %9 by %c241_i32 dim 1 : vector<8x256xf32>, i32 -> vector<8x256xf32>
    %c6 = arith.constant 6 : index
    %c0_41 = arith.constant 0 : index
    %c0_42 = arith.constant 0 : index
    %61 = vector.load %arg2[%c6, %c0_41, %c0_42] : memref<9x1x256xf32, #tpu.memory_space<vmem>>, vector<1x1x256xf32>
    %62 = vector.shape_cast %61 : vector<1x1x256xf32> to vector<1x256xf32>
    %63 = vector.broadcast %62 : vector<1x256xf32> to vector<8x256xf32>
    %64 = arith.mulf %60, %63 : vector<8x256xf32>
    %c6_43 = arith.constant 6 : index
    %c0_44 = arith.constant 0 : index
    %c0_45 = arith.constant 0 : index
    %65 = vector.load %arg5[%c6_43, %c0_44, %c0_45] : memref<9x8x8xf32, #tpu.memory_space<vmem>>, vector<1x8x8xf32>
    %66 = vector.shape_cast %65 : vector<1x8x8xf32> to vector<8x8xf32>
    %cst_46 = arith.constant dense<0.000000e+00> : vector<8x256xf32>
    %67 = tpu.matmul %66, %64, %cst_46 {dimension_numbers = #tpu.dot_dimension_numbers<[1], [0], [0], [1], [0, 0, 1, 1], [], []>} : vector<8x8xf32>, vector<8x256xf32>, vector<8x256xf32> -> vector<8x256xf32>
    %68 = arith.addf %59, %67 : vector<8x256xf32>
    %c240_i32 = arith.constant 240 : i32
    %69 = tpu.dynamic_rotate %9 by %c240_i32 dim 1 : vector<8x256xf32>, i32 -> vector<8x256xf32>
    %c7 = arith.constant 7 : index
    %c0_47 = arith.constant 0 : index
    %c0_48 = arith.constant 0 : index
    %70 = vector.load %arg2[%c7, %c0_47, %c0_48] : memref<9x1x256xf32, #tpu.memory_space<vmem>>, vector<1x1x256xf32>
    %71 = vector.shape_cast %70 : vector<1x1x256xf32> to vector<1x256xf32>
    %72 = vector.broadcast %71 : vector<1x256xf32> to vector<8x256xf32>
    %73 = arith.mulf %69, %72 : vector<8x256xf32>
    %c7_49 = arith.constant 7 : index
    %c0_50 = arith.constant 0 : index
    %c0_51 = arith.constant 0 : index
    %74 = vector.load %arg5[%c7_49, %c0_50, %c0_51] : memref<9x8x8xf32, #tpu.memory_space<vmem>>, vector<1x8x8xf32>
    %75 = vector.shape_cast %74 : vector<1x8x8xf32> to vector<8x8xf32>
    %cst_52 = arith.constant dense<0.000000e+00> : vector<8x256xf32>
    %76 = tpu.matmul %75, %73, %cst_52 {dimension_numbers = #tpu.dot_dimension_numbers<[1], [0], [0], [1], [0, 0, 1, 1], [], []>} : vector<8x8xf32>, vector<8x256xf32>, vector<8x256xf32> -> vector<8x256xf32>
    %77 = arith.addf %68, %76 : vector<8x256xf32>
    %c239_i32 = arith.constant 239 : i32
    %78 = tpu.dynamic_rotate %9 by %c239_i32 dim 1 : vector<8x256xf32>, i32 -> vector<8x256xf32>
    %c8 = arith.constant 8 : index
    %c0_53 = arith.constant 0 : index
    %c0_54 = arith.constant 0 : index
    %79 = vector.load %arg2[%c8, %c0_53, %c0_54] : memref<9x1x256xf32, #tpu.memory_space<vmem>>, vector<1x1x256xf32>
    %80 = vector.shape_cast %79 : vector<1x1x256xf32> to vector<1x256xf32>
    %81 = vector.broadcast %80 : vector<1x256xf32> to vector<8x256xf32>
    %82 = arith.mulf %78, %81 : vector<8x256xf32>
    %c8_55 = arith.constant 8 : index
    %c0_56 = arith.constant 0 : index
    %c0_57 = arith.constant 0 : index
    %83 = vector.load %arg5[%c8_55, %c0_56, %c0_57] : memref<9x8x8xf32, #tpu.memory_space<vmem>>, vector<1x8x8xf32>
    %84 = vector.shape_cast %83 : vector<1x8x8xf32> to vector<8x8xf32>
    %cst_58 = arith.constant dense<0.000000e+00> : vector<8x256xf32>
    %85 = tpu.matmul %84, %82, %cst_58 {dimension_numbers = #tpu.dot_dimension_numbers<[1], [0], [0], [1], [0, 0, 1, 1], [], []>} : vector<8x8xf32>, vector<8x256xf32>, vector<8x256xf32> -> vector<8x256xf32>
    %86 = arith.addf %77, %85 : vector<8x256xf32>
    %c0_59 = arith.constant 0 : index
    %c0_60 = arith.constant 0 : index
    %87 = vector.load %arg6[%c0_59, %c0_60] : memref<8x1xf32, #tpu.memory_space<vmem>>, vector<8x1xf32>
    %88 = vector.broadcast %87 : vector<8x1xf32> to vector<8x256xf32>
    %89 = arith.addf %86, %88 : vector<8x256xf32>
    %c0_61 = arith.constant 0 : index
    %c0_62 = arith.constant 0 : index
    %c0_63 = arith.constant 0 : index
    %90 = vector.load %arg7[%c0_61, %c0_62, %c0_63] : memref<1x8x256xf32, #tpu.memory_space<vmem>>, vector<1x8x256xf32>
    %91 = vector.shape_cast %90 : vector<1x8x256xf32> to vector<8x256xf32>
    %92 = vector.shape_cast %89 : vector<8x256xf32> to vector<1x8x256xf32>
    tpu.vector_store %arg7[%c0_61, %c0_62, %c0_63], %92 {strides = array<i32>} : memref<1x8x256xf32, #tpu.memory_space<vmem>>, vector<1x8x256xf32>,
    %cst_64 = arith.constant dense<0.000000e+00> : vector<8xf32>
    %93 = vector.multi_reduction <add>, %89, %cst_64 [1] : vector<8x256xf32> to vector<8xf32>
    %94 = vector.shape_cast %93 : vector<8xf32> to vector<8x1xf32>
    %c0_65 = arith.constant 0 : index
    %c0_66 = arith.constant 0 : index
    %c0_67 = arith.constant 0 : index
    %95 = vector.load %arg8[%c0_65, %c0_66, %c0_67] : memref<1x8x1xf32, #tpu.memory_space<vmem>>, vector<1x8x1xf32>
    %96 = vector.shape_cast %95 : vector<1x8x1xf32> to vector<8x1xf32>
    %97 = vector.shape_cast %94 : vector<8x1xf32> to vector<1x8x1xf32>
    tpu.vector_store %arg8[%c0_65, %c0_66, %c0_67], %97 {strides = array<i32>} : memref<1x8x1xf32, #tpu.memory_space<vmem>>, vector<1x8x1xf32>,
    %98 = arith.mulf %89, %89 : vector<8x256xf32>
    %cst_68 = arith.constant dense<0.000000e+00> : vector<8xf32>
    %99 = vector.multi_reduction <add>, %98, %cst_68 [1] : vector<8x256xf32> to vector<8xf32>
    %100 = vector.shape_cast %99 : vector<8xf32> to vector<8x1xf32>
    %c0_69 = arith.constant 0 : index
    %c0_70 = arith.constant 0 : index
    %c0_71 = arith.constant 0 : index
    %101 = vector.load %arg9[%c0_69, %c0_70, %c0_71] : memref<1x8x1xf32, #tpu.memory_space<vmem>>, vector<1x8x1xf32>
    %102 = vector.shape_cast %101 : vector<1x8x1xf32> to vector<8x1xf32>
    %103 = vector.shape_cast %100 : vector<8x1xf32> to vector<1x8x1xf32>
    tpu.vector_store %arg9[%c0_69, %c0_70, %c0_71], %103 {strides = array<i32>} : memref<1x8x1xf32, #tpu.memory_space<vmem>>, vector<1x8x1xf32>,
    return
  }
  func.func @transform_0(%arg0: i32) -> (i32, i32, i32) {
    %c0_i32 = arith.constant 0 : i32
    %c0_i32_0 = arith.constant 0 : i32
    %c0_i32_1 = arith.constant 0 : i32
    return %arg0, %c0_i32, %c0_i32_0 : i32, i32, i32
  }
  func.func @transform_1(%arg0: i32) -> (i32, i32, i32) {
    %c0_i32 = arith.constant 0 : i32
    %c0_i32_0 = arith.constant 0 : i32
    %c0_i32_1 = arith.constant 0 : i32
    %c0_i32_2 = arith.constant 0 : i32
    return %c0_i32, %c0_i32_0, %c0_i32_1 : i32, i32, i32
  }
  func.func @transform_2(%arg0: i32) -> (i32, i32) {
    %c0_i32 = arith.constant 0 : i32
    %c0_i32_0 = arith.constant 0 : i32
    %c0_i32_1 = arith.constant 0 : i32
    return %c0_i32, %c0_i32_0 : i32, i32
  }
  func.func @transform_3(%arg0: i32) -> (i32, i32) {
    %c0_i32 = arith.constant 0 : i32
    %c0_i32_0 = arith.constant 0 : i32
    %c0_i32_1 = arith.constant 0 : i32
    return %c0_i32, %c0_i32_0 : i32, i32
  }
  func.func @transform_4(%arg0: i32) -> (i32, i32, i32) {
    %c0_i32 = arith.constant 0 : i32
    %c0_i32_0 = arith.constant 0 : i32
    %c0_i32_1 = arith.constant 0 : i32
    %c0_i32_2 = arith.constant 0 : i32
    return %c0_i32, %c0_i32_0, %c0_i32_1 : i32, i32, i32
  }
  func.func @transform_5(%arg0: i32) -> (i32, i32) {
    %c0_i32 = arith.constant 0 : i32
    %c0_i32_0 = arith.constant 0 : i32
    %c0_i32_1 = arith.constant 0 : i32
    return %c0_i32, %c0_i32_0 : i32, i32
  }
  func.func @transform_6(%arg0: i32) -> (i32, i32, i32) {
    %c0_i32 = arith.constant 0 : i32
    %c0_i32_0 = arith.constant 0 : i32
    %c0_i32_1 = arith.constant 0 : i32
    return %arg0, %c0_i32, %c0_i32_0 : i32, i32, i32
  }
  func.func @transform_7(%arg0: i32) -> (i32, i32, i32) {
    %c0_i32 = arith.constant 0 : i32
    %c0_i32_0 = arith.constant 0 : i32
    %c0_i32_1 = arith.constant 0 : i32
    return %arg0, %c0_i32, %c0_i32_0 : i32, i32, i32
  }
  func.func @transform_8(%arg0: i32) -> (i32, i32, i32) {
    %c0_i32 = arith.constant 0 : i32
    %c0_i32_0 = arith.constant 0 : i32
    %c0_i32_1 = arith.constant 0 : i32
    return %arg0, %c0_i32, %c0_i32_0 : i32, i32, i32
  }
}

module attributes {stable_mosaic.version = 11 : i64} {
  func.func @_affine_relu_kernel(%arg0: i32, %arg1: memref<1x8x256xf32, #tpu.memory_space<vmem>>, %arg2: memref<8x1xf32, #tpu.memory_space<vmem>>, %arg3: memref<8x1xf32, #tpu.memory_space<vmem>>, %arg4: memref<1x8x256xf32, #tpu.memory_space<vmem>>) attributes {dimension_semantics = [#tpu.dimension_semantics<parallel>], iteration_bounds = array<i64: 2>, scalar_prefetch = 0 : i64, scratch_operands = 0 : i64, tpu.core_type = #tpu.core_type<tc>, window_params = [{transform_indices = @transform_0, window_bounds = array<i64: 1, 8, 256>}, {pipeline_mode = #tpu.pipeline_mode<synchronous>, transform_indices = @transform_1, window_bounds = array<i64: 8, 1>}, {pipeline_mode = #tpu.pipeline_mode<synchronous>, transform_indices = @transform_2, window_bounds = array<i64: 8, 1>}, {transform_indices = @transform_3, window_bounds = array<i64: 1, 8, 256>}]} {
    %c0 = arith.constant 0 : index
    %c0_0 = arith.constant 0 : index
    %c0_1 = arith.constant 0 : index
    %0 = vector.load %arg1[%c0, %c0_0, %c0_1] : memref<1x8x256xf32, #tpu.memory_space<vmem>>, vector<1x8x256xf32>
    %1 = vector.shape_cast %0 : vector<1x8x256xf32> to vector<8x256xf32>
    %c0_2 = arith.constant 0 : index
    %c0_3 = arith.constant 0 : index
    %2 = vector.load %arg2[%c0_2, %c0_3] : memref<8x1xf32, #tpu.memory_space<vmem>>, vector<8x1xf32>
    %3 = vector.broadcast %2 : vector<8x1xf32> to vector<8x256xf32>
    %4 = arith.mulf %1, %3 : vector<8x256xf32>
    %c0_4 = arith.constant 0 : index
    %c0_5 = arith.constant 0 : index
    %5 = vector.load %arg3[%c0_4, %c0_5] : memref<8x1xf32, #tpu.memory_space<vmem>>, vector<8x1xf32>
    %6 = vector.broadcast %5 : vector<8x1xf32> to vector<8x256xf32>
    %7 = arith.addf %4, %6 : vector<8x256xf32>
    %cst = arith.constant 0.000000e+00 : f32
    %8 = vector.broadcast %cst : f32 to vector<8x256xf32>
    %9 = arith.maximumf %7, %8 : vector<8x256xf32>
    %c0_6 = arith.constant 0 : index
    %c0_7 = arith.constant 0 : index
    %c0_8 = arith.constant 0 : index
    %10 = vector.load %arg4[%c0_6, %c0_7, %c0_8] : memref<1x8x256xf32, #tpu.memory_space<vmem>>, vector<1x8x256xf32>
    %11 = vector.shape_cast %10 : vector<1x8x256xf32> to vector<8x256xf32>
    %12 = vector.shape_cast %9 : vector<8x256xf32> to vector<1x8x256xf32>
    tpu.vector_store %arg4[%c0_6, %c0_7, %c0_8], %12 {strides = array<i32>} : memref<1x8x256xf32, #tpu.memory_space<vmem>>, vector<1x8x256xf32>,
    return
  }
  func.func @transform_0(%arg0: i32) -> (i32, i32, i32) {
    %c0_i32 = arith.constant 0 : i32
    %c0_i32_0 = arith.constant 0 : i32
    %c0_i32_1 = arith.constant 0 : i32
    return %arg0, %c0_i32, %c0_i32_0 : i32, i32, i32
  }
  func.func @transform_1(%arg0: i32) -> (i32, i32) {
    %c0_i32 = arith.constant 0 : i32
    %c0_i32_0 = arith.constant 0 : i32
    %c0_i32_1 = arith.constant 0 : i32
    return %c0_i32, %c0_i32_0 : i32, i32
  }
  func.func @transform_2(%arg0: i32) -> (i32, i32) {
    %c0_i32 = arith.constant 0 : i32
    %c0_i32_0 = arith.constant 0 : i32
    %c0_i32_1 = arith.constant 0 : i32
    return %c0_i32, %c0_i32_0 : i32, i32
  }
  func.func @transform_3(%arg0: i32) -> (i32, i32, i32) {
    %c0_i32 = arith.constant 0 : i32
    %c0_i32_0 = arith.constant 0 : i32
    %c0_i32_1 = arith.constant 0 : i32
    return %arg0, %c0_i32, %c0_i32_0 : i32, i32, i32
  }
}

</mosaic_0001>

<llo_original>
// kernel: double_conv_forward.5
$region0: #{double_conv_forward.5}
  #allocation0 [shape = 'u32[]', space=smem, size = 0x4, offset = 0x4, fixed_abs, tag = 'smem constant byte address 0x4 - core index']
  #allocation1 [shape = 'u32[144,128]{1,0:T(1,128)}', space=vmem, size = 0x12000, scoped, tag = 'internal scratch']
  %s0 = inlined_call_operand.vmem [shape: f32[2,8,256], index: 0, kind: input, shape index: {}]
  %s1 = inlined_call_operand.vmem [shape: f32[8,1], index: 1, kind: input, shape index: {}]
  %s2 = inlined_call_operand.vmem [shape: f32[8,1], index: 2, kind: input, shape index: {}]
  %s3 = inlined_call_operand.vmem [shape: f32[2,8,256], index: 3, kind: output, shape index: {}]
  %s4 = sld [smem:[#allocation0]]
  $region45: #{double_conv_forward.5} parent=0
    _
  %s6 = ssub.s32 1, %s4
  %s7 = scalar_select 0, %s6, %s4
  loop: start=0, step=1, limit=4
  $region2: #{double_conv_forward.5} parent=0 // loop_pre_header
    _
  $region3: #{double_conv_forward.5} parent=0 // loop_header
    %s9 = sphi 0, %s13
    %p10 = scmp.ge.s32.totalorder %s9, 4
    %s19 = sphi 0, %s21
    %s22 = sphi 0, %s19
    %s23 = sphi 0, %s22
    %s39 = sphi 0, %s23
    %s43 = sphi 0, %s43
    %s45 = sphi 0, %s43
    %s46 = sphi 0, %s45
    %s60 = sphi 0, %s46
    %s64 = sphi 0, %s64
    %s66 = sphi 0, %s64
    %s67 = sphi 0, %s66
    %s81 = sphi 0, %s67
    %s87 = sphi 0, %s89
    %s90 = sphi 0, %s87
    %s91 = sphi 0, %s90
    %s107 = sphi 0, %s91
  $region4: #{double_conv_forward.5} parent=0 // loop_header_branch
    %12 = sbr.rel (%p10) target = $region8
  $region5: #{double_conv_forward.5} parent=0 // loop_body
    %s14 = ssub.s32 %s9, 1
    %s15 = ssub.s32 %s9, 2
    %s16 = sadd.s32 %s9, 1
    %s17 = ssub.s32 %s9, %s16
    %p18 = scmp.eq.s32.totalorder %s17, 0
    %s20 = sadd.s32 %s19, 1
    %s21 = scalar_select %p18, %s19, %s20
    %p24 = pneg %p18
    %p25 = scmp.eq.s32.totalorder %s9, 1
    %p26 = por %p24, %p25
    %p27 = scmp.ne.s32.totalorder %s19, %s22
    %p28 = scmp.eq.s32.totalorder %s9, 0
    %p29 = por %p27, %p28
    %p30 = scmp.ne.s32.totalorder %s19, %s22
    %p31 = scmp.eq.s32.totalorder %s14, 1
    %p32 = por %p30, %p31
    %p33 = scmp.ne.s32.totalorder %s22, %s23
    %p34 = scmp.eq.s32.totalorder %s14, 0
    %p35 = por %p33, %p34
    %p36 = scmp.ne.s32.totalorder %s22, %s23
    %p37 = scmp.eq.s32.totalorder %s15, 1
    %p38 = por %p36, %p37
    %p40 = scmp.ne.s32.totalorder %s23, %s39
    %p41 = scmp.eq.s32.totalorder %s15, 0
    %p42 = por %p40, %p41
    %s44 = sadd.s32 %s43, 1
    %p47 = scmp.eq.s32.totalorder %s9, 1
    %p48 = scmp.ne.s32.totalorder %s43, %s45
    %p49 = scmp.eq.s32.totalorder %s9, 0
    %p50 = por %p48, %p49
    %p51 = scmp.ne.s32.totalorder %s43, %s45
    %p52 = scmp.eq.s32.totalorder %s14, 1
    %p53 = por %p51, %p52
    %p54 = scmp.ne.s32.totalorder %s45, %s46
    %p55 = scmp.eq.s32.totalorder %s14, 0
    %p56 = por %p54, %p55
    %p57 = scmp.ne.s32.totalorder %s45, %s46
    %p58 = scmp.eq.s32.totalorder %s15, 1
    %p59 = por %p57, %p58
    %p61 = scmp.ne.s32.totalorder %s46, %s60
    %p62 = scmp.eq.s32.totalorder %s15, 0
    %p63 = por %p61, %p62
    %s65 = sadd.s32 %s64, 1
    %p68 = scmp.eq.s32.totalorder %s9, 1
    %p69 = scmp.ne.s32.totalorder %s64, %s66
    %p70 = scmp.eq.s32.totalorder %s9, 0
    %p71 = por %p69, %p70
    %p72 = scmp.ne.s32.totalorder %s64, %s66
    %p73 = scmp.eq.s32.totalorder %s14, 1
    %p74 = por %p72, %p73
    %p75 = scmp.ne.s32.totalorder %s66, %s67
    %p76 = scmp.eq.s32.totalorder %s14, 0
    %p77 = por %p75, %p76
    %p78 = scmp.ne.s32.totalorder %s66, %s67
    %p79 = scmp.eq.s32.totalorder %s15, 1
    %p80 = por %p78, %p79
    %p82 = scmp.ne.s32.totalorder %s67, %s81
    %p83 = scmp.eq.s32.totalorder %s15, 0
    %p84 = por %p82, %p83
    %s85 = ssub.s32 %s9, %s16
    %p86 = scmp.eq.s32.totalorder %s85, 0
    %s88 = sadd.s32 %s87, 1
    %s89 = scalar_select %p86, %s87, %s88
    %p92 = pneg %p86
    %p93 = scmp.eq.s32.totalorder %s9, 1
    %p94 = por %p92, %p93
    %p95 = scmp.ne.s32.totalorder %s87, %s90
    %p96 = scmp.eq.s32.totalorder %s9, 0
    %p97 = por %p95, %p96
    %p98 = scmp.ne.s32.totalorder %s87, %s90
    %p99 = scmp.eq.s32.totalorder %s14, 1
    %p100 = por %p98, %p99
    %p101 = scmp.ne.s32.totalorder %s90, %s91
    %p102 = scmp.eq.s32.totalorder %s14, 0
    %p103 = por %p101, %p102
    %p104 = scmp.ne.s32.totalorder %s90, %s91
    %p105 = scmp.eq.s32.totalorder %s15, 1
    %p106 = por %p104, %p105
    %p108 = scmp.ne.s32.totalorder %s91, %s107
    %p109 = scmp.eq.s32.totalorder %s15, 0
    %p110 = por %p108, %p109
    %p111 = scmp.le.s32.totalorder 1, %s9
    %p112 = scmp.lt.s32.totalorder %s9, 3
    %p113 = pnand %p111, %p112
    %p114 = pneg %p113
    // Predicated region
    $region9: #{double_conv_forward.5} parent=5 // pred_check
      _
    $region10: #{double_conv_forward.5} parent=5 // pred_check_branch
      %116 = sbr.rel (%p113) target = $region12
    $region11: #{double_conv_forward.5} parent=5 // pred_region
      %s117 = ssub.s32 %s9, 1
      // Predicated region
      $region13: #{double_conv_forward.5} parent=11 // pred_check
        %p118 = pneg %p56
      $region14: #{double_conv_forward.5} parent=11 // pred_check_branch
        %120 = sbr.rel (%p118) target = $region16
      $region15: #{double_conv_forward.5} parent=11 // pred_region
        _
      $region16: #{double_conv_forward.5} parent=11 // pred_fallthru
        _
      // Predicated region
      $region17: #{double_conv_forward.5} parent=11 // pred_check
        %p121 = pneg %p77
      $region18: #{double_conv_forward.5} parent=11 // pred_check_branch
        %123 = sbr.rel (%p121) target = $region20
      $region19: #{double_conv_forward.5} parent=11 // pred_region
        _
      $region20: #{double_conv_forward.5} parent=11 // pred_fallthru
        _
    $region12: #{double_conv_forward.5} parent=5 // pred_fallthru
      _
    %p124 = scmp.lt.s32.totalorder %s9, 2
    // Predicated region
    $region21: #{double_conv_forward.5} parent=5 // pred_check
      %p125 = pneg %p124
    $region22: #{double_conv_forward.5} parent=5 // pred_check_branch
      %127 = sbr.rel (%p125) target = $region24
    $region23: #{double_conv_forward.5} parent=5 // pred_region
      // Predicated region
      $region25: #{double_conv_forward.5} parent=23 // pred_check
        %p128 = pneg %p29
      $region26: #{double_conv_forward.5} parent=23 // pred_check_branch
        %130 = sbr.rel (%p128) target = $region28
      $region27: #{double_conv_forward.5} parent=23 // pred_region
        %p131 = scmp.lt.s32.totalorder %s9, 1
        %s132 = scalar_select %p131, %s9, 1
        %s133 = smul.addr %s132, 2
        %s134 = smul.addr %s133, 8
        %s135 = scalar_lea.vmem %s0, %s134
      $region28: #{double_conv_forward.5} parent=23 // pred_fallthru
        _
    $region24: #{double_conv_forward.5} parent=5 // pred_fallthru
      _
    %p136 = scmp.le.s32.totalorder 1, %s9
    %p137 = scmp.lt.s32.totalorder %s9, 3
    %p138 = pnand %p136, %p137
    %p139 = pneg %p138
    // Predicated region
    $region29: #{double_conv_forward.5} parent=5 // pred_check
      _
    $region30: #{double_conv_forward.5} parent=5 // pred_check_branch
      %141 = sbr.rel (%p138) target = $region32
    $region31: #{double_conv_forward.5} parent=5 // pred_region
      %s142 = ssub.s32 %s9, 1
      %p143 = scmp.lt.s32.totalorder %s14, 1
      %s144 = scalar_select %p143, %s14, 1
      %s145 = smul.addr %s144, 2
      %s146 = smul.addr %s145, 8
      %s147 = scalar_lea.vmem %s0, %s146
      %p148 = pneg %p35
      %p149 = pneg %p32
      %p150 = pneg %p56
      %p151 = pneg %p53
      %p152 = pneg %p77
      %p153 = pneg %p74
      %p154 = pneg %p103
      %p155 = pneg %p100
      %p156 = scmp.lt.s32.totalorder %s14, 1
      %s157 = scalar_select %p156, %s14, 1
      %s158 = smul.addr %s157, 2
      %s159 = smul.addr %s158, 8
      %s160 = scalar_lea.vmem %s3, %s159
      %p161 = scmp.lt.s32.totalorder %s14, 1
      %s162 = scalar_select %p161, %s14, 1
      %s163 = smul.addr %s162, 2
      %s164 = smul.addr %s163, 8
      %s165 = scalar_lea.vmem %s0, %s164
      %p166 = scmp.lt.s32.totalorder %s14, 1
      %s167 = scalar_select %p166, %s14, 1
      %s168 = smul.addr %s167, 2
      %s169 = smul.addr %s168, 8
      %s170 = scalar_lea.vmem %s3, %s169
      %v171 = vld [vmem:[%s165] sm:$0xff]
      %v172 = vld [vmem:[%s165 + $0x8] sm:$0xff]
      %v173 = vld [vmem:[%s1] sm:$0xff]
      %175 = vset.pattern.permute.xlu0 0
      %176 = vperm.xlu0 %175, %v173
      %v177 = vpop.permute.xlu0 %176
      %v179 = vmul.f32 %v171, %v177
      %v180 = vmul.f32 %v172, %v177
      %v181 = vld [vmem:[%s2] sm:$0xff]
      %183 = vset.pattern.permute.xlu0 0
      %184 = vperm.xlu0 %183, %v181
      %v185 = vpop.permute.xlu0 %184
      %v187 = vadd.f32 %v179, %v185
      %v188 = vadd.f32 %v180, %v185
      %v189 = vmax.f32 %v187, 0.0
      %v190 = vmax.f32 %v188, 0.0
      %191 = vst [vmem:[%s170] sm:$0xff] %v189
      %192 = vst [vmem:[%s170 + $0x8] sm:$0xff] %v190
      %p193 = scmp.lt.s32.totalorder %s14, 1
      %s194 = scalar_select %p193, %s14, 1
      %s195 = smul.addr %s194, 2
      %s196 = smul.addr %s195, 8
      %s197 = scalar_lea.vmem %s3, %s196
      // Predicated region
      $region33: #{double_conv_forward.5} parent=31 // pred_check
        %p198 = pneg %p100
      $region34: #{double_conv_forward.5} parent=31 // pred_check_branch
        %200 = sbr.rel (%p198) target = $region36
      $region35: #{double_conv_forward.5} parent=31 // pred_region
        _
      $region36: #{double_conv_forward.5} parent=31 // pred_fallthru
        _
    $region32: #{double_conv_forward.5} parent=5 // pred_fallthru
      _
    %p201 = scmp.le.s32.totalorder 2, %s9
    // Predicated region
    $region37: #{double_conv_forward.5} parent=5 // pred_check
      %p202 = pneg %p201
    $region38: #{double_conv_forward.5} parent=5 // pred_check_branch
      %204 = sbr.rel (%p202) target = $region40
    $region39: #{double_conv_forward.5} parent=5 // pred_region
      %s205 = ssub.s32 %s9, 2
      // Predicated region
      $region41: #{double_conv_forward.5} parent=39 // pred_check
        %p206 = pneg %p106
      $region42: #{double_conv_forward.5} parent=39 // pred_check_branch
        %208 = sbr.rel (%p206) target = $region44
      $region43: #{double_conv_forward.5} parent=39 // pred_region
        %p209 = scmp.lt.s32.totalorder %s15, 1
        %s210 = scalar_select %p209, %s15, 1
        %s211 = smul.addr %s210, 2
        %s212 = smul.addr %s211, 8
        %s213 = scalar_lea.vmem %s3, %s212
      $region44: #{double_conv_forward.5} parent=39 // pred_fallthru
        _
    $region40: #{double_conv_forward.5} parent=5 // pred_fallthru
      _
  $region6: #{double_conv_forward.5} parent=0 // loop_footer
    %s13 = sadd.s32 1, %s9
  $region7: #{double_conv_forward.5} parent=0 // loop_footer_branch
    %8 = sbr.rel target = $region3
  $region8: #{double_conv_forward.5} parent=0 // loop_exit
    _

// kernel: double_conv_forward.4
$region0: #{double_conv_forward.4}
  #allocation0 [shape = 'u32[]', space=smem, size = 0x4, offset = 0x4, fixed_abs, tag = 'smem constant byte address 0x4 - core index']
  #allocation1 [shape = 'u32[144,128]{1,0:T(1,128)}', space=vmem, size = 0x12000, scoped, tag = 'internal scratch']
  %s0 = inlined_call_operand.vmem [shape: f32[2,8,256], index: 0, kind: input, shape index: {}]
  %s1 = inlined_call_operand.vmem [shape: f32[9,1,256], index: 1, kind: input, shape index: {}]
  %s2 = inlined_call_operand.vmem [shape: f32[8,1], index: 2, kind: input, shape index: {}]
  %s3 = inlined_call_operand.vmem [shape: f32[8,1], index: 3, kind: input, shape index: {}]
  %s4 = inlined_call_operand.vmem [shape: f32[9,8,8], index: 4, kind: input, shape index: {}]
  %s5 = inlined_call_operand.vmem [shape: f32[8,1], index: 5, kind: input, shape index: {}]
  %s6 = inlined_call_operand.vmem [shape: f32[2,8,256], index: 6, kind: output, shape index: {0}]
  %s7 = inlined_call_operand.vmem [shape: f32[2,8,1], index: 7, kind: output, shape index: {1}]
  %s8 = inlined_call_operand.vmem [shape: f32[2,8,1], index: 8, kind: output, shape index: {2}]
  %9 = xla_tuple %s6, %s7, %s8
  %s10 = sld [smem:[#allocation0]]
  $region73: #{double_conv_forward.4} parent=0
    _
  %s12 = ssub.s32 1, %s10
  %s13 = scalar_select 0, %s12, %s10
  loop: start=0, step=1, limit=4
  $region2: #{double_conv_forward.4} parent=0 // loop_pre_header
    _
  $region3: #{double_conv_forward.4} parent=0 // loop_header
    %s15 = sphi 0, %s19
    %p16 = scmp.ge.s32.totalorder %s15, 4
    %s25 = sphi 0, %s27
    %s28 = sphi 0, %s25
    %s29 = sphi 0, %s28
    %s45 = sphi 0, %s29
    %s49 = sphi 0, %s49
    %s51 = sphi 0, %s49
    %s52 = sphi 0, %s51
    %s66 = sphi 0, %s52
    %s70 = sphi 0, %s70
    %s72 = sphi 0, %s70
    %s73 = sphi 0, %s72
    %s87 = sphi 0, %s73
    %s91 = sphi 0, %s91
    %s93 = sphi 0, %s91
    %s94 = sphi 0, %s93
    %s108 = sphi 0, %s94
    %s112 = sphi 0, %s112
    %s114 = sphi 0, %s112
    %s115 = sphi 0, %s114
    %s129 = sphi 0, %s115
    %s133 = sphi 0, %s133
    %s135 = sphi 0, %s133
    %s136 = sphi 0, %s135
    %s150 = sphi 0, %s136
    %s156 = sphi 0, %s158
    %s159 = sphi 0, %s156
    %s160 = sphi 0, %s159
    %s176 = sphi 0, %s160
    %s182 = sphi 0, %s184
    %s185 = sphi 0, %s182
    %s186 = sphi 0, %s185
    %s202 = sphi 0, %s186
    %s208 = sphi 0, %s210
    %s211 = sphi 0, %s208
    %s212 = sphi 0, %s211
    %s228 = sphi 0, %s212
  $region4: #{double_conv_forward.4} parent=0 // loop_header_branch
    %18 = sbr.rel (%p16) target = $region8
  $region5: #{double_conv_forward.4} parent=0 // loop_body
    %s20 = ssub.s32 %s15, 1
    %s21 = ssub.s32 %s15, 2
    %s22 = sadd.s32 %s15, 1
    %s23 = ssub.s32 %s15, %s22
    %p24 = scmp.eq.s32.totalorder %s23, 0
    %s26 = sadd.s32 %s25, 1
    %s27 = scalar_select %p24, %s25, %s26
    %p30 = pneg %p24
    %p31 = scmp.eq.s32.totalorder %s15, 1
    %p32 = por %p30, %p31
    %p33 = scmp.ne.s32.totalorder %s25, %s28
    %p34 = scmp.eq.s32.totalorder %s15, 0
    %p35 = por %p33, %p34
    %p36 = scmp.ne.s32.totalorder %s25, %s28
    %p37 = scmp.eq.s32.totalorder %s20, 1
    %p38 = por %p36, %p37
    %p39 = scmp.ne.s32.totalorder %s28, %s29
    %p40 = scmp.eq.s32.totalorder %s20, 0
    %p41 = por %p39, %p40
    %p42 = scmp.ne.s32.totalorder %s28, %s29
    %p43 = scmp.eq.s32.totalorder %s21, 1
    %p44 = por %p42, %p43
    %p46 = scmp.ne.s32.totalorder %s29, %s45
    %p47 = scmp.eq.s32.totalorder %s21, 0
    %p48 = por %p46, %p47
    %s50 = sadd.s32 %s49, 1
    %p53 = scmp.eq.s32.totalorder %s15, 1
    %p54 = scmp.ne.s32.totalorder %s49, %s51
    %p55 = scmp.eq.s32.totalorder %s15, 0
    %p56 = por %p54, %p55
    %p57 = scmp.ne.s32.totalorder %s49, %s51
    %p58 = scmp.eq.s32.totalorder %s20, 1
    %p59 = por %p57, %p58
    %p60 = scmp.ne.s32.totalorder %s51, %s52
    %p61 = scmp.eq.s32.totalorder %s20, 0
    %p62 = por %p60, %p61
    %p63 = scmp.ne.s32.totalorder %s51, %s52
    %p64 = scmp.eq.s32.totalorder %s21, 1
    %p65 = por %p63, %p64
    %p67 = scmp.ne.s32.totalorder %s52, %s66
    %p68 = scmp.eq.s32.totalorder %s21, 0
    %p69 = por %p67, %p68
    %s71 = sadd.s32 %s70, 1
    %p74 = scmp.eq.s32.totalorder %s15, 1
    %p75 = scmp.ne.s32.totalorder %s70, %s72
    %p76 = scmp.eq.s32.totalorder %s15, 0
    %p77 = por %p75, %p76
    %p78 = scmp.ne.s32.totalorder %s70, %s72
    %p79 = scmp.eq.s32.totalorder %s20, 1
    %p80 = por %p78, %p79
    %p81 = scmp.ne.s32.totalorder %s72, %s73
    %p82 = scmp.eq.s32.totalorder %s20, 0
    %p83 = por %p81, %p82
    %p84 = scmp.ne.s32.totalorder %s72, %s73
    %p85 = scmp.eq.s32.totalorder %s21, 1
    %p86 = por %p84, %p85
    %p88 = scmp.ne.s32.totalorder %s73, %s87
    %p89 = scmp.eq.s32.totalorder %s21, 0
    %p90 = por %p88, %p89
    %s92 = sadd.s32 %s91, 1
    %p95 = scmp.eq.s32.totalorder %s15, 1
    %p96 = scmp.ne.s32.totalorder %s91, %s93
    %p97 = scmp.eq.s32.totalorder %s15, 0
    %p98 = por %p96, %p97
    %p99 = scmp.ne.s32.totalorder %s91, %s93
    %p100 = scmp.eq.s32.totalorder %s20, 1
    %p101 = por %p99, %p100
    %p102 = scmp.ne.s32.totalorder %s93, %s94
    %p103 = scmp.eq.s32.totalorder %s20, 0
    %p104 = por %p102, %p103
    %p105 = scmp.ne.s32.totalorder %s93, %s94
    %p106 = scmp.eq.s32.totalorder %s21, 1
    %p107 = por %p105, %p106
    %p109 = scmp.ne.s32.totalorder %s94, %s108
    %p110 = scmp.eq.s32.totalorder %s21, 0
    %p111 = por %p109, %p110
    %s113 = sadd.s32 %s112, 1
    %p116 = scmp.eq.s32.totalorder %s15, 1
    %p117 = scmp.ne.s32.totalorder %s112, %s114
    %p118 = scmp.eq.s32.totalorder %s15, 0
    %p119 = por %p117, %p118
    %p120 = scmp.ne.s32.totalorder %s112, %s114
    %p121 = scmp.eq.s32.totalorder %s20, 1
    %p122 = por %p120, %p121
    %p123 = scmp.ne.s32.totalorder %s114, %s115
    %p124 = scmp.eq.s32.totalorder %s20, 0
    %p125 = por %p123, %p124
    %p126 = scmp.ne.s32.totalorder %s114, %s115
    %p127 = scmp.eq.s32.totalorder %s21, 1
    %p128 = por %p126, %p127
    %p130 = scmp.ne.s32.totalorder %s115, %s129
    %p131 = scmp.eq.s32.totalorder %s21, 0
    %p132 = por %p130, %p131
    %s134 = sadd.s32 %s133, 1
    %p137 = scmp.eq.s32.totalorder %s15, 1
    %p138 = scmp.ne.s32.totalorder %s133, %s135
    %p139 = scmp.eq.s32.totalorder %s15, 0
    %p140 = por %p138, %p139
    %p141 = scmp.ne.s32.totalorder %s133, %s135
    %p142 = scmp.eq.s32.totalorder %s20, 1
    %p143 = por %p141, %p142
    %p144 = scmp.ne.s32.totalorder %s135, %s136
    %p145 = scmp.eq.s32.totalorder %s20, 0
    %p146 = por %p144, %p145
    %p147 = scmp.ne.s32.totalorder %s135, %s136
    %p148 = scmp.eq.s32.totalorder %s21, 1
    %p149 = por %p147, %p148
    %p151 = scmp.ne.s32.totalorder %s136, %s150
    %p152 = scmp.eq.s32.totalorder %s21, 0
    %p153 = por %p151, %p152
    %s154 = ssub.s32 %s15, %s22
    %p155 = scmp.eq.s32.totalorder %s154, 0
    %s157 = sadd.s32 %s156, 1
    %s158 = scalar_select %p155, %s156, %s157
    %p161 = pneg %p155
    %p162 = scmp.eq.s32.totalorder %s15, 1
    %p163 = por %p161, %p162
    %p164 = scmp.ne.s32.totalorder %s156, %s159
    %p165 = scmp.eq.s32.totalorder %s15, 0
    %p166 = por %p164, %p165
    %p167 = scmp.ne.s32.totalorder %s156, %s159
    %p168 = scmp.eq.s32.totalorder %s20, 1
    %p169 = por %p167, %p168
    %p170 = scmp.ne.s32.totalorder %s159, %s160
    %p171 = scmp.eq.s32.totalorder %s20, 0
    %p172 = por %p170, %p171
    %p173 = scmp.ne.s32.totalorder %s159, %s160
    %p174 = scmp.eq.s32.totalorder %s21, 1
    %p175 = por %p173, %p174
    %p177 = scmp.ne.s32.totalorder %s160, %s176
    %p178 = scmp.eq.s32.totalorder %s21, 0
    %p179 = por %p177, %p178
    %s180 = ssub.s32 %s15, %s22
    %p181 = scmp.eq.s32.totalorder %s180, 0
    %s183 = sadd.s32 %s182, 1
    %s184 = scalar_select %p181, %s182, %s183
    %p187 = pneg %p181
    %p188 = scmp.eq.s32.totalorder %s15, 1
    %p189 = por %p187, %p188
    %p190 = scmp.ne.s32.totalorder %s182, %s185
    %p191 = scmp.eq.s32.totalorder %s15, 0
    %p192 = por %p190, %p191
    %p193 = scmp.ne.s32.totalorder %s182, %s185
    %p194 = scmp.eq.s32.totalorder %s20, 1
    %p195 = por %p193, %p194
    %p196 = scmp.ne.s32.totalorder %s185, %s186
    %p197 = scmp.eq.s32.totalorder %s20, 0
    %p198 = por %p196, %p197
    %p199 = scmp.ne.s32.totalorder %s185, %s186
    %p200 = scmp.eq.s32.totalorder %s21, 1
    %p201 = por %p199, %p200
    %p203 = scmp.ne.s32.totalorder %s186, %s202
    %p204 = scmp.eq.s32.totalorder %s21, 0
    %p205 = por %p203, %p204
    %s206 = ssub.s32 %s15, %s22
    %p207 = scmp.eq.s32.totalorder %s206, 0
    %s209 = sadd.s32 %s208, 1
    %s210 = scalar_select %p207, %s208, %s209
    %p213 = pneg %p207
    %p214 = scmp.eq.s32.totalorder %s15, 1
    %p215 = por %p213, %p214
    %p216 = scmp.ne.s32.totalorder %s208, %s211
    %p217 = scmp.eq.s32.totalorder %s15, 0
    %p218 = por %p216, %p217
    %p219 = scmp.ne.s32.totalorder %s208, %s211
    %p220 = scmp.eq.s32.totalorder %s20, 1
    %p221 = por %p219, %p220
    %p222 = scmp.ne.s32.totalorder %s211, %s212
    %p223 = scmp.eq.s32.totalorder %s20, 0
    %p224 = por %p222, %p223
    %p225 = scmp.ne.s32.totalorder %s211, %s212
    %p226 = scmp.eq.s32.totalorder %s21, 1
    %p227 = por %p225, %p226
    %p229 = scmp.ne.s32.totalorder %s212, %s228
    %p230 = scmp.eq.s32.totalorder %s21, 0
    %p231 = por %p229, %p230
    %p232 = scmp.le.s32.totalorder 1, %s15
    %p233 = scmp.lt.s32.totalorder %s15, 3
    %p234 = pnand %p232, %p233
    %p235 = pneg %p234
    // Predicated region
    $region9: #{double_conv_forward.4} parent=5 // pred_check
      _
    $region10: #{double_conv_forward.4} parent=5 // pred_check_branch
      %237 = sbr.rel (%p234) target = $region12
    $region11: #{double_conv_forward.4} parent=5 // pred_region
      %s238 = ssub.s32 %s15, 1
      // Predicated region
      $region13: #{double_conv_forward.4} parent=11 // pred_check
        %p239 = pneg %p62
      $region14: #{double_conv_forward.4} parent=11 // pred_check_branch
        %241 = sbr.rel (%p239) target = $region16
      $region15: #{double_conv_forward.4} parent=11 // pred_region
        _
      $region16: #{double_conv_forward.4} parent=11 // pred_fallthru
        _
      // Predicated region
      $region17: #{double_conv_forward.4} parent=11 // pred_check
        %p242 = pneg %p83
      $region18: #{double_conv_forward.4} parent=11 // pred_check_branch
        %244 = sbr.rel (%p242) target = $region20
      $region19: #{double_conv_forward.4} parent=11 // pred_region
        _
      $region20: #{double_conv_forward.4} parent=11 // pred_fallthru
        _
      // Predicated region
      $region21: #{double_conv_forward.4} parent=11 // pred_check
        %p245 = pneg %p104
      $region22: #{double_conv_forward.4} parent=11 // pred_check_branch
        %247 = sbr.rel (%p245) target = $region24
      $region23: #{double_conv_forward.4} parent=11 // pred_region
        _
      $region24: #{double_conv_forward.4} parent=11 // pred_fallthru
        _
      // Predicated region
      $region25: #{double_conv_forward.4} parent=11 // pred_check
        %p248 = pneg %p125
      $region26: #{double_conv_forward.4} parent=11 // pred_check_branch
        %250 = sbr.rel (%p248) target = $region28
      $region27: #{double_conv_forward.4} parent=11 // pred_region
        _
      $region28: #{double_conv_forward.4} parent=11 // pred_fallthru
        _
      // Predicated region
      $region29: #{double_conv_forward.4} parent=11 // pred_check
        %p251 = pneg %p146
      $region30: #{double_conv_forward.4} parent=11 // pred_check_branch
        %253 = sbr.rel (%p251) target = $region32
      $region31: #{double_conv_forward.4} parent=11 // pred_region
        _
      $region32: #{double_conv_forward.4} parent=11 // pred_fallthru
        _
    $region12: #{double_conv_forward.4} parent=5 // pred_fallthru
      _
    %p254 = scmp.lt.s32.totalorder %s15, 2
    // Predicated region
    $region33: #{double_conv_forward.4} parent=5 // pred_check
      %p255 = pneg %p254
    $region34: #{double_conv_forward.4} parent=5 // pred_check_branch
      %257 = sbr.rel (%p255) target = $region36
    $region35: #{double_conv_forward.4} parent=5 // pred_region
      // Predicated region
      $region37: #{double_conv_forward.4} parent=35 // pred_check
        %p258 = pneg %p35
      $region38: #{double_conv_forward.4} parent=35 // pred_check_branch
        %260 = sbr.rel (%p258) target = $region40
      $region39: #{double_conv_forward.4} parent=35 // pred_region
        %p261 = scmp.lt.s32.totalorder %s15, 1
        %s262 = scalar_select %p261, %s15, 1
        %s263 = smul.addr %s262, 2
        %s264 = smul.addr %s263, 8
        %s265 = scalar_lea.vmem %s0, %s264
      $region40: #{double_conv_forward.4} parent=35 // pred_fallthru
        _
    $region36: #{double_conv_forward.4} parent=5 // pred_fallthru
      _
    %p266 = scmp.le.s32.totalorder 1, %s15
    %p267 = scmp.lt.s32.totalorder %s15, 3
    %p268 = pnand %p266, %p267
    %p269 = pneg %p268
    // Predicated region
    $region41: #{double_conv_forward.4} parent=5 // pred_check
      _
    $region42: #{double_conv_forward.4} parent=5 // pred_check_branch
      %271 = sbr.rel (%p268) target = $region44
    $region43: #{double_conv_forward.4} parent=5 // pred_region
      %s272 = ssub.s32 %s15, 1
      %p273 = scmp.lt.s32.totalorder %s20, 1
      %s274 = scalar_select %p273, %s20, 1
      %s275 = smul.addr %s274, 2
      %s276 = smul.addr %s275, 8
      %s277 = scalar_lea.vmem %s0, %s276
      %p278 = pneg %p41
      %p279 = pneg %p38
      %p280 = pneg %p62
      %p281 = pneg %p59
      %p282 = pneg %p83
      %p283 = pneg %p80
      %p284 = pneg %p104
      %p285 = pneg %p101
      %p286 = pneg %p125
      %p287 = pneg %p122
      %p288 = pneg %p146
      %p289 = pneg %p143
      %p290 = pneg %p172
      %p291 = pneg %p169
      %p292 = scmp.lt.s32.totalorder %s20, 1
      %s293 = scalar_select %p292, %s20, 1
      %s294 = smul.addr %s293, 2
      %s295 = smul.addr %s294, 8
      %s296 = scalar_lea.vmem %s6, %s295
      %p297 = pneg %p198
      %p298 = pneg %p195
      %p299 = scmp.lt.s32.totalorder %s20, 1
      %s300 = scalar_select %p299, %s20, 1
      %s301 = smul.addr %s300, 8
      %s302 = scalar_lea.vmem %s7, %s301
      %p303 = pneg %p224
      %p304 = pneg %p221
      %p305 = scmp.lt.s32.totalorder %s20, 1
      %s306 = scalar_select %p305, %s20, 1
      %s307 = smul.addr %s306, 8
      %s308 = scalar_lea.vmem %s8, %s307
      %p309 = scmp.lt.s32.totalorder %s20, 1
      %s310 = scalar_select %p309, %s20, 1
      %s311 = smul.addr %s310, 2
      %s312 = smul.addr %s311, 8
      %s313 = scalar_lea.vmem %s0, %s312
      %p314 = scmp.lt.s32.totalorder %s20, 1
      %s315 = scalar_select %p314, %s20, 1
      %s316 = smul.addr %s315, 2
      %s317 = smul.addr %s316, 8
      %s318 = scalar_lea.vmem %s6, %s317
      %p319 = scmp.lt.s32.totalorder %s20, 1
      %s320 = scalar_select %p319, %s20, 1
      %s321 = smul.addr %s320, 8
      %s322 = scalar_lea.vmem %s7, %s321
      %p323 = scmp.lt.s32.totalorder %s20, 1
      %s324 = scalar_select %p323, %s20, 1
      %s325 = smul.addr %s324, 8
      %s326 = scalar_lea.vmem %s8, %s325
      %v327 = vld [vmem:[%s313] sm:$0xff]
      %v328 = vld [vmem:[%s313 + $0x8] sm:$0xff]
      %v329 = vld [vmem:[%s2] sm:$0xff]
      %331 = vset.pattern.permute.xlu0 0
      %332 = vperm.xlu0 %331, %v329
      %v333 = vpop.permute.xlu0 %332
      %v335 = vmul.f32 %v327, %v333
      %v336 = vmul.f32 %v328, %v333
      %v337 = vld [vmem:[%s3] sm:$0xff]
      %339 = vset.pattern.permute.xlu0 0
      %340 = vperm.xlu0 %339, %v337
      %v341 = vpop.permute.xlu0 %340
      %v343 = vadd.f32 %v335, %v341
      %v344 = vadd.f32 %v336, %v341
      %v345 = vmax.f32 %v343, 0.0
      %v346 = vmax.f32 %v344, 0.0
      %347 = vrot.lane.b32.xlu0 %v345, 17
      %v348 = vpop.permute.xlu0 %347
      %349 = vrot.lane.b32.xlu0 %v346, 17
      %v350 = vpop.permute.xlu0 %349
      %v351 = vlaneseq
      %v352 = vand.u32 %v351, 127
      %vm353 = vcmp.lt.s32.totalorder %v352, 17
      %v354 = vsel %vm353, %v348, %v350
      %v355 = vsel %vm353, %v350, %v348
      %v356 = vld [vmem:[%s1] sm:$0x3]
      %v358 = vlaneseq
      %v359 = vshrl.u32 %v358, 7
      %v360 = vsub.s32 0, %v359
      %v361 = vrot.slane %v356, %v360
      %v362 = vlaneseq
      %v363 = vshrl.u32 %v362, 7
      %v364 = vsub.s32 1, %v363
      %v365 = vrot.slane %v356, %v364
      %v368 = vmul.f32 %v355, %v361
      %v369 = vmul.f32 %v354, %v365
      %v370 = vld [vmem:[%s4] sm:$0xff]
      %371 = vrot.lane.b32.xlu0 %v345, 16
      %v372 = vpop.permute.xlu0 %371
      %373 = vrot.lane.b32.xlu0 %v346, 16
      %v374 = vpop.permute.xlu0 %373
      %vm375 = vcmp.lt.s32.totalorder %v352, 16
      %v376 = vsel %vm375, %v372, %v374
      %v377 = vsel %vm375, %v374, %v372
      %s378 = scalar_lea.vmem %s1, 2
      %v379 = vld [vmem:[%s378] sm:$0x3]
      %v381 = vlaneseq
      %v382 = vshrl.u32 %v381, 7
      %v383 = vsub.s32 0, %v382
      %v384 = vrot.slane %v379, %v383
      %v385 = vlaneseq
      %v386 = vshrl.u32 %v385, 7
      %v387 = vsub.s32 1, %v386
      %v388 = vrot.slane %v379, %v387
      %v391 = vmul.f32 %v377, %v384
      %v392 = vmul.f32 %v376, %v388
      %s393 = scalar_lea.vmem %s4, 8
      %v394 = vld [vmem:[%s393] sm:$0xff]
      %vm395 = vcmask 64512
      %v397 = vsel %vm395, %v394, 0
      %399 = vmatprep.subr.mxu0 %v392
      %400 = vmatpush1.msra.mxu0 %v391
      %401 = vmatprep.subr.mxu0 0.0
      %402 = vmatpush1.msra.mxu0 0.0
      %403 = vmatprep.subr.mxu0 0.0
      %404 = vmatpush1.msra.mxu0 0.0
      %405 = vmatprep.subr.mxu0 0.0
      %406 = vmatpush1.msra.mxu0 0.0
      %407 = vmatprep.subr.mxu0 0.0
      %408 = vmatpush1.msra.mxu0 0.0
      %409 = vmatprep.subr.mxu0 0.0
      %410 = vmatpush1.msra.mxu0 0.0
      %411 = vmatprep.subr.mxu0 0.0
      %412 = vmatpush1.msra.mxu0 0.0
      %413 = vmatprep.subr.mxu0 0.0
      %414 = vmatpush1.msra.mxu0 0.0
      %415 = vmatprep.subr.mxu0 0.0
      %416 = vmatpush1.msra.mxu0 0.0
      %417 = vmatprep.subr.mxu0 0.0
      %418 = vmatpush1.msra.mxu0 0.0
      %419 = vmatprep.subr.mxu0 0.0
      %420 = vmatpush1.msra.mxu0 0.0
      %421 = vmatprep.subr.mxu0 0.0
      %422 = vmatpush1.msra.mxu0 0.0
      %423 = vmatprep.subr.mxu0 0.0
      %424 = vmatpush1.msra.mxu0 0.0
      %425 = vmatprep.subr.mxu0 0.0
      %426 = vmatpush1.msra.mxu0 0.0
      %427 = vmatprep.subr.mxu0 0.0
      %428 = vmatpush1.msra.mxu0 0.0
      %429 = vmatprep.subr.mxu0 0.0
      %430 = vmatpush1.msra.mxu0 0.0
      %431 = vmatprep.subr.mxu0 0.0
      %432 = vmatpush1.msra.mxu0 0.0
      %433 = vmatprep.subr.mxu0 0.0
      %434 = vmatpush1.msra.mxu0 0.0
      %435 = vmatprep.subr.mxu0 0.0
      %436 = vmatpush1.msra.mxu0 0.0
      %437 = vmatprep.subr.mxu0 0.0
      %438 = vmatpush1.msra.mxu0 0.0
      %439 = vmatprep.subr.mxu0 0.0
      %440 = vmatpush1.msra.mxu0 0.0
      %441 = vmatprep.subr.mxu0 0.0
      %442 = vmatpush1.msra.mxu0 0.0
      %443 = vmatprep.subr.mxu0 0.0
      %444 = vmatpush1.msra.mxu0 0.0
      %445 = vmatprep.subr.mxu0 0.0
      %446 = vmatpush1.msra.mxu0 0.0
      %447 = vmatprep.subr.mxu0 0.0
      %448 = vmatpush1.msra.mxu0 0.0
      %449 = vmatprep.subr.mxu0 0.0
      %450 = vmatpush1.msra.mxu0 0.0
      %451 = vmatprep.subr.mxu0 0.0
      %452 = vmatpush1.msra.mxu0 0.0
      %453 = vmatprep.subr.mxu0 0.0
      %454 = vmatpush1.msra.mxu0 0.0
      %455 = vmatprep.subr.mxu0 0.0
      %456 = vmatpush1.msra.mxu0 0.0
      %457 = vmatprep.subr.mxu0 0.0
      %458 = vmatpush1.msra.mxu0 0.0
      %459 = vmatprep.subr.mxu0 0.0
      %460 = vmatpush1.msra.mxu0 0.0
      %461 = vmatprep.subr.mxu0 0.0
      %462 = vmatpush1.msra.mxu0 0.0
      %463 = vmatprep.mubr.f32.mxu0 0.0
      %464 = vmatmul.mubr.f32.gmra.mrb[0].mxu0 %v397
      %v465 = vpop.f32.mrb[0].mxu0
      %v466 = vadd.f32 0.0, %v465
      %v467 = vpop.f32.mrb[0].mxu0
      %v468 = vadd.f32 0.0, %v467
      %469 = vdwg.mxu0
      %v471 = vsel %vm395, %v370, 0
      %473 = vmatprep.subr.mxu0 %v369
      %474 = vmatpush1.msra.mxu0 %v368
      %475 = vmatprep.subr.mxu0 0.0
      %476 = vmatpush1.msra.mxu0 0.0
      %477 = vmatprep.subr.mxu0 0.0
      %478 = vmatpush1.msra.mxu0 0.0
      %479 = vmatprep.subr.mxu0 0.0
      %480 = vmatpush1.msra.mxu0 0.0
      %481 = vmatprep.subr.mxu0 0.0
      %482 = vmatpush1.msra.mxu0 0.0
      %483 = vmatprep.subr.mxu0 0.0
      %484 = vmatpush1.msra.mxu0 0.0
      %485 = vmatprep.subr.mxu0 0.0
      %486 = vmatpush1.msra.mxu0 0.0
      %487 = vmatprep.subr.mxu0 0.0
      %488 = vmatpush1.msra.mxu0 0.0
      %489 = vmatprep.subr.mxu0 0.0
      %490 = vmatpush1.msra.mxu0 0.0
      %491 = vmatprep.subr.mxu0 0.0
      %492 = vmatpush1.msra.mxu0 0.0
      %493 = vmatprep.subr.mxu0 0.0
      %494 = vmatpush1.msra.mxu0 0.0
      %495 = vmatprep.subr.mxu0 0.0
      %496 = vmatpush1.msra.mxu0 0.0
      %497 = vmatprep.subr.mxu0 0.0
      %498 = vmatpush1.msra.mxu0 0.0
      %499 = vmatprep.subr.mxu0 0.0
      %500 = vmatpush1.msra.mxu0 0.0
      %501 = vmatprep.subr.mxu0 0.0
      %502 = vmatpush1.msra.mxu0 0.0
      %503 = vmatprep.subr.mxu0 0.0
      %504 = vmatpush1.msra.mxu0 0.0
      %505 = vmatprep.subr.mxu0 0.0
      %506 = vmatpush1.msra.mxu0 0.0
      %507 = vmatprep.subr.mxu0 0.0
      %508 = vmatpush1.msra.mxu0 0.0
      %509 = vmatprep.subr.mxu0 0.0
      %510 = vmatpush1.msra.mxu0 0.0
      %511 = vmatprep.subr.mxu0 0.0
      %512 = vmatpush1.msra.mxu0 0.0
      %513 = vmatprep.subr.mxu0 0.0
      %514 = vmatpush1.msra.mxu0 0.0
      %515 = vmatprep.subr.mxu0 0.0
      %516 = vmatpush1.msra.mxu0 0.0
      %517 = vmatprep.subr.mxu0 0.0
      %518 = vmatpush1.msra.mxu0 0.0
      %519 = vmatprep.subr.mxu0 0.0
      %520 = vmatpush1.msra.mxu0 0.0
      %521 = vmatprep.subr.mxu0 0.0
      %522 = vmatpush1.msra.mxu0 0.0
      %523 = vmatprep.subr.mxu0 0.0
      %524 = vmatpush1.msra.mxu0 0.0
      %525 = vmatprep.subr.mxu0 0.0
      %526 = vmatpush1.msra.mxu0 0.0
      %527 = vmatprep.subr.mxu0 0.0
      %528 = vmatpush1.msra.mxu0 0.0
      %529 = vmatprep.subr.mxu0 0.0
      %530 = vmatpush1.msra.mxu0 0.0
      %531 = vmatprep.subr.mxu0 0.0
      %532 = vmatpush1.msra.mxu0 0.0
      %533 = vmatprep.subr.mxu0 0.0
      %534 = vmatpush1.msra.mxu0 0.0
      %535 = vmatprep.subr.mxu0 0.0
      %536 = vmatpush1.msra.mxu0 0.0
      %537 = vmatprep.mubr.f32.mxu0 0.0
      %538 = vmatmul.mubr.f32.gmra.mrb[0].mxu0 %v471
      %v539 = vpop.f32.mrb[0].mxu0
      %v540 = vadd.f32 %v466, %v539
      %v541 = vpop.f32.mrb[0].mxu0
      %v542 = vadd.f32 %v468, %v541
      %543 = vdwg.mxu0
      %544 = vrot.lane.b32.xlu0 %v345, 15
      %v545 = vpop.permute.xlu0 %544
      %546 = vrot.lane.b32.xlu0 %v346, 15
      %v547 = vpop.permute.xlu0 %546
      %vm548 = vcmp.lt.s32.totalorder %v352, 15
      %v549 = vsel %vm548, %v545, %v547
      %v550 = vsel %vm548, %v547, %v545
      %s551 = scalar_lea.vmem %s1, 4
      %v552 = vld [vmem:[%s551] sm:$0x3]
      %v554 = vlaneseq
      %v555 = vshrl.u32 %v554, 7
      %v556 = vsub.s32 0, %v555
      %v557 = vrot.slane %v552, %v556
      %v558 = vlaneseq
      %v559 = vshrl.u32 %v558, 7
      %v560 = vsub.s32 1, %v559
      %v561 = vrot.slane %v552, %v560
      %v564 = vmul.f32 %v550, %v557
      %v565 = vmul.f32 %v549, %v561
      %s566 = scalar_lea.vmem %s4, 16
      %v567 = vld [vmem:[%s566] sm:$0xff]
      %v569 = vsel %vm395, %v567, 0
      %571 = vmatprep.subr.mxu0 %v565
      %572 = vmatpush1.msra.mxu0 %v564
      %573 = vmatprep.subr.mxu0 0.0
      %574 = vmatpush1.msra.mxu0 0.0
      %575 = vmatprep.subr.mxu0 0.0
      %576 = vmatpush1.msra.mxu0 0.0
      %577 = vmatprep.subr.mxu0 0.0
      %578 = vmatpush1.msra.mxu0 0.0
      %579 = vmatprep.subr.mxu0 0.0
      %580 = vmatpush1.msra.mxu0 0.0
      %581 = vmatprep.subr.mxu0 0.0
      %582 = vmatpush1.msra.mxu0 0.0
      %583 = vmatprep.subr.mxu0 0.0
      %584 = vmatpush1.msra.mxu0 0.0
      %585 = vmatprep.subr.mxu0 0.0
      %586 = vmatpush1.msra.mxu0 0.0
      %587 = vmatprep.subr.mxu0 0.0
      %588 = vmatpush1.msra.mxu0 0.0
      %589 = vmatprep.subr.mxu0 0.0
      %590 = vmatpush1.msra.mxu0 0.0
      %591 = vmatprep.subr.mxu0 0.0
      %592 = vmatpush1.msra.mxu0 0.0
      %593 = vmatprep.subr.mxu0 0.0
      %594 = vmatpush1.msra.mxu0 0.0
      %595 = vmatprep.subr.mxu0 0.0
      %596 = vmatpush1.msra.mxu0 0.0
      %597 = vmatprep.subr.mxu0 0.0
      %598 = vmatpush1.msra.mxu0 0.0
      %599 = vmatprep.subr.mxu0 0.0
      %600 = vmatpush1.msra.mxu0 0.0
      %601 = vmatprep.subr.mxu0 0.0
      %602 = vmatpush1.msra.mxu0 0.0
      %603 = vmatprep.subr.mxu0 0.0
      %604 = vmatpush1.msra.mxu0 0.0
      %605 = vmatprep.subr.mxu0 0.0
      %606 = vmatpush1.msra.mxu0 0.0
      %607 = vmatprep.subr.mxu0 0.0
      %608 = vmatpush1.msra.mxu0 0.0
      %609 = vmatprep.subr.mxu0 0.0
      %610 = vmatpush1.msra.mxu0 0.0
      %611 = vmatprep.subr.mxu0 0.0
      %612 = vmatpush1.msra.mxu0 0.0
      %613 = vmatprep.subr.mxu0 0.0
      %614 = vmatpush1.msra.mxu0 0.0
      %615 = vmatprep.subr.mxu0 0.0
      %616 = vmatpush1.msra.mxu0 0.0
      %617 = vmatprep.subr.mxu0 0.0
      %618 = vmatpush1.msra.mxu0 0.0
      %619 = vmatprep.subr.mxu0 0.0
      %620 = vmatpush1.msra.mxu0 0.0
      %621 = vmatprep.subr.mxu0 0.0
      %622 = vmatpush1.msra.mxu0 0.0
      %623 = vmatprep.subr.mxu0 0.0
      %624 = vmatpush1.msra.mxu0 0.0
      %625 = vmatprep.subr.mxu0 0.0
      %626 = vmatpush1.msra.mxu0 0.0
      %627 = vmatprep.subr.mxu0 0.0
      %628 = vmatpush1.msra.mxu0 0.0
      %629 = vmatprep.subr.mxu0 0.0
      %630 = vmatpush1.msra.mxu0 0.0
      %631 = vmatprep.subr.mxu0 0.0
      %632 = vmatpush1.msra.mxu0 0.0
      %633 = vmatprep.subr.mxu0 0.0
      %634 = vmatpush1.msra.mxu0 0.0
      %635 = vmatprep.mubr.f32.mxu0 0.0
      %636 = vmatmul.mubr.f32.gmra.mrb[0].mxu0 %v569
      %v637 = vpop.f32.mrb[0].mxu0
      %v638 = vadd.f32 0.0, %v637
      %v639 = vpop.f32.mrb[0].mxu0
      %v640 = vadd.f32 0.0, %v639
      %641 = vdwg.mxu0
      %v642 = vadd.f32 %v540, %v638
      %v643 = vadd.f32 %v542, %v640
      %644 = vrot.lane.b32.xlu0 %v345, 1
      %v645 = vpop.permute.xlu0 %644
      %646 = vrot.lane.b32.xlu0 %v346, 1
      %v647 = vpop.permute.xlu0 %646
      %vm648 = vcmp.lt.s32.totalorder %v352, 1
      %v649 = vsel %vm648, %v645, %v647
      %v650 = vsel %vm648, %v647, %v645
      %s651 = scalar_lea.vmem %s1, 6
      %v652 = vld [vmem:[%s651] sm:$0x3]
      %v654 = vlaneseq
      %v655 = vshrl.u32 %v654, 7
      %v656 = vsub.s32 0, %v655
      %v657 = vrot.slane %v652, %v656
      %v658 = vlaneseq
      %v659 = vshrl.u32 %v658, 7
      %v660 = vsub.s32 1, %v659
      %v661 = vrot.slane %v652, %v660
      %v664 = vmul.f32 %v650, %v657
      %v665 = vmul.f32 %v649, %v661
      %s666 = scalar_lea.vmem %s4, 24
      %v667 = vld [vmem:[%s666] sm:$0xff]
      %v669 = vsel %vm395, %v667, 0
      %671 = vmatprep.subr.mxu0 %v665
      %672 = vmatpush1.msra.mxu0 %v664
      %673 = vmatprep.subr.mxu0 0.0
      %674 = vmatpush1.msra.mxu0 0.0
      %675 = vmatprep.subr.mxu0 0.0
      %676 = vmatpush1.msra.mxu0 0.0
      %677 = vmatprep.subr.mxu0 0.0
      %678 = vmatpush1.msra.mxu0 0.0
      %679 = vmatprep.subr.mxu0 0.0
      %680 = vmatpush1.msra.mxu0 0.0
      %681 = vmatprep.subr.mxu0 0.0
      %682 = vmatpush1.msra.mxu0 0.0
      %683 = vmatprep.subr.mxu0 0.0
      %684 = vmatpush1.msra.mxu0 0.0
      %685 = vmatprep.subr.mxu0 0.0
      %686 = vmatpush1.msra.mxu0 0.0
      %687 = vmatprep.subr.mxu0 0.0
      %688 = vmatpush1.msra.mxu0 0.0
      %689 = vmatprep.subr.mxu0 0.0
      %690 = vmatpush1.msra.mxu0 0.0
      %691 = vmatprep.subr.mxu0 0.0
      %692 = vmatpush1.msra.mxu0 0.0
      %693 = vmatprep.subr.mxu0 0.0
      %694 = vmatpush1.msra.mxu0 0.0
      %695 = vmatprep.subr.mxu0 0.0
      %696 = vmatpush1.msra.mxu0 0.0
      %697 = vmatprep.subr.mxu0 0.0
      %698 = vmatpush1.msra.mxu0 0.0
      %699 = vmatprep.subr.mxu0 0.0
      %700 = vmatpush1.msra.mxu0 0.0
      %701 = vmatprep.subr.mxu0 0.0
      %702 = vmatpush1.msra.mxu0 0.0
      %703 = vmatprep.subr.mxu0 0.0
      %704 = vmatpush1.msra.mxu0 0.0
      %705 = vmatprep.subr.mxu0 0.0
      %706 = vmatpush1.msra.mxu0 0.0
      %707 = vmatprep.subr.mxu0 0.0
      %708 = vmatpush1.msra.mxu0 0.0
      %709 = vmatprep.subr.mxu0 0.0
      %710 = vmatpush1.msra.mxu0 0.0
      %711 = vmatprep.subr.mxu0 0.0
      %712 = vmatpush1.msra.mxu0 0.0
      %713 = vmatprep.subr.mxu0 0.0
      %714 = vmatpush1.msra.mxu0 0.0
      %715 = vmatprep.subr.mxu0 0.0
      %716 = vmatpush1.msra.mxu0 0.0
      %717 = vmatprep.subr.mxu0 0.0
      %718 = vmatpush1.msra.mxu0 0.0
      %719 = vmatprep.subr.mxu0 0.0
      %720 = vmatpush1.msra.mxu0 0.0
      %721 = vmatprep.subr.mxu0 0.0
      %722 = vmatpush1.msra.mxu0 0.0
      %723 = vmatprep.subr.mxu0 0.0
      %724 = vmatpush1.msra.mxu0 0.0
      %725 = vmatprep.subr.mxu0 0.0
      %726 = vmatpush1.msra.mxu0 0.0
      %727 = vmatprep.subr.mxu0 0.0
      %728 = vmatpush1.msra.mxu0 0.0
      %729 = vmatprep.subr.mxu0 0.0
      %730 = vmatpush1.msra.mxu0 0.0
      %731 = vmatprep.subr.mxu0 0.0
      %732 = vmatpush1.msra.mxu0 0.0
      %733 = vmatprep.subr.mxu0 0.0
      %734 = vmatpush1.msra.mxu0 0.0
      %735 = vmatprep.mubr.f32.mxu0 0.0
      %736 = vmatmul.mubr.f32.gmra.mrb[0].mxu0 %v669
      %v737 = vpop.f32.mrb[0].mxu0
      %v738 = vadd.f32 0.0, %v737
      %v739 = vpop.f32.mrb[0].mxu0
      %v740 = vadd.f32 0.0, %v739
      %741 = vdwg.mxu0
      %v742 = vadd.f32 %v642, %v738
      %v743 = vadd.f32 %v643, %v740
      %s744 = scalar_lea.vmem %s4, 32
      %v745 = vld [vmem:[%s744] sm:$0xff]
      %v747 = vsel %vm395, %v745, 0
      %749 = vmatprep.subr.mxu0 %v346
      %750 = vmatpush1.msra.mxu0 %v345
      %751 = vmatprep.subr.mxu0 0.0
      %752 = vmatpush1.msra.mxu0 0.0
      %753 = vmatprep.subr.mxu0 0.0
      %754 = vmatpush1.msra.mxu0 0.0
      %755 = vmatprep.subr.mxu0 0.0
      %756 = vmatpush1.msra.mxu0 0.0
      %757 = vmatprep.subr.mxu0 0.0
      %758 = vmatpush1.msra.mxu0 0.0
      %759 = vmatprep.subr.mxu0 0.0
      %760 = vmatpush1.msra.mxu0 0.0
      %761 = vmatprep.subr.mxu0 0.0
      %762 = vmatpush1.msra.mxu0 0.0
      %763 = vmatprep.subr.mxu0 0.0
      %764 = vmatpush1.msra.mxu0 0.0
      %765 = vmatprep.subr.mxu0 0.0
      %766 = vmatpush1.msra.mxu0 0.0
      %767 = vmatprep.subr.mxu0 0.0
      %768 = vmatpush1.msra.mxu0 0.0
      %769 = vmatprep.subr.mxu0 0.0
      %770 = vmatpush1.msra.mxu0 0.0
      %771 = vmatprep.subr.mxu0 0.0
      %772 = vmatpush1.msra.mxu0 0.0
      %773 = vmatprep.subr.mxu0 0.0
      %774 = vmatpush1.msra.mxu0 0.0
      %775 = vmatprep.subr.mxu0 0.0
      %776 = vmatpush1.msra.mxu0 0.0
      %777 = vmatprep.subr.mxu0 0.0
      %778 = vmatpush1.msra.mxu0 0.0
      %779 = vmatprep.subr.mxu0 0.0
      %780 = vmatpush1.msra.mxu0 0.0
      %781 = vmatprep.subr.mxu0 0.0
      %782 = vmatpush1.msra.mxu0 0.0
      %783 = vmatprep.subr.mxu0 0.0
      %784 = vmatpush1.msra.mxu0 0.0
      %785 = vmatprep.subr.mxu0 0.0
      %786 = vmatpush1.msra.mxu0 0.0
      %787 = vmatprep.subr.mxu0 0.0
      %788 = vmatpush1.msra.mxu0 0.0
      %789 = vmatprep.subr.mxu0 0.0
      %790 = vmatpush1.msra.mxu0 0.0
      %791 = vmatprep.subr.mxu0 0.0
      %792 = vmatpush1.msra.mxu0 0.0
      %793 = vmatprep.subr.mxu0 0.0
      %794 = vmatpush1.msra.mxu0 0.0
      %795 = vmatprep.subr.mxu0 0.0
      %796 = vmatpush1.msra.mxu0 0.0
      %797 = vmatprep.subr.mxu0 0.0
      %798 = vmatpush1.msra.mxu0 0.0
      %799 = vmatprep.subr.mxu0 0.0
      %800 = vmatpush1.msra.mxu0 0.0
      %801 = vmatprep.subr.mxu0 0.0
      %802 = vmatpush1.msra.mxu0 0.0
      %803 = vmatprep.subr.mxu0 0.0
      %804 = vmatpush1.msra.mxu0 0.0
      %805 = vmatprep.subr.mxu0 0.0
      %806 = vmatpush1.msra.mxu0 0.0
      %807 = vmatprep.subr.mxu0 0.0
      %808 = vmatpush1.msra.mxu0 0.0
      %809 = vmatprep.subr.mxu0 0.0
      %810 = vmatpush1.msra.mxu0 0.0
      %811 = vmatprep.subr.mxu0 0.0
      %812 = vmatpush1.msra.mxu0 0.0
      %813 = vmatprep.mubr.f32.mxu0 0.0
      %814 = vmatmul.mubr.f32.gmra.mrb[0].mxu0 %v747
      %v815 = vpop.f32.mrb[0].mxu0
      %v816 = vadd.f32 0.0, %v815
      %v817 = vpop.f32.mrb[0].mxu0
      %v818 = vadd.f32 0.0, %v817
      %819 = vdwg.mxu0
      %v820 = vadd.f32 %v742, %v816
      %v821 = vadd.f32 %v743, %v818
      %822 = vrot.lane.b32.xlu0 %v345, 127
      %v823 = vpop.permute.xlu0 %822
      %824 = vrot.lane.b32.xlu0 %v346, 127
      %v825 = vpop.permute.xlu0 %824
      %vm826 = vcmp.lt.s32.totalorder %v352, 127
      %v827 = vsel %vm826, %v823, %v825
      %v828 = vsel %vm826, %v825, %v823
      %s829 = scalar_lea.vmem %s1, 10
      %v830 = vld [vmem:[%s829] sm:$0x3]
      %v832 = vlaneseq
      %v833 = vshrl.u32 %v832, 7
      %v834 = vsub.s32 0, %v833
      %v835 = vrot.slane %v830, %v834
      %v836 = vlaneseq
      %v837 = vshrl.u32 %v836, 7
      %v838 = vsub.s32 1, %v837
      %v839 = vrot.slane %v830, %v838
      %v842 = vmul.f32 %v827, %v835
      %v843 = vmul.f32 %v828, %v839
      %s844 = scalar_lea.vmem %s4, 40
      %v845 = vld [vmem:[%s844] sm:$0xff]
      %v847 = vsel %vm395, %v845, 0
      %849 = vmatprep.subr.mxu0 %v843
      %850 = vmatpush1.msra.mxu0 %v842
      %851 = vmatprep.subr.mxu0 0.0
      %852 = vmatpush1.msra.mxu0 0.0
      %853 = vmatprep.subr.mxu0 0.0
      %854 = vmatpush1.msra.mxu0 0.0
      %855 = vmatprep.subr.mxu0 0.0
      %856 = vmatpush1.msra.mxu0 0.0
      %857 = vmatprep.subr.mxu0 0.0
      %858 = vmatpush1.msra.mxu0 0.0
      %859 = vmatprep.subr.mxu0 0.0
      %860 = vmatpush1.msra.mxu0 0.0
      %861 = vmatprep.subr.mxu0 0.0
      %862 = vmatpush1.msra.mxu0 0.0
      %863 = vmatprep.subr.mxu0 0.0
      %864 = vmatpush1.msra.mxu0 0.0
      %865 = vmatprep.subr.mxu0 0.0
      %866 = vmatpush1.msra.mxu0 0.0
      %867 = vmatprep.subr.mxu0 0.0
      %868 = vmatpush1.msra.mxu0 0.0
      %869 = vmatprep.subr.mxu0 0.0
      %870 = vmatpush1.msra.mxu0 0.0
      %871 = vmatprep.subr.mxu0 0.0
      %872 = vmatpush1.msra.mxu0 0.0
      %873 = vmatprep.subr.mxu0 0.0
      %874 = vmatpush1.msra.mxu0 0.0
      %875 = vmatprep.subr.mxu0 0.0
      %876 = vmatpush1.msra.mxu0 0.0
      %877 = vmatprep.subr.mxu0 0.0
      %878 = vmatpush1.msra.mxu0 0.0
      %879 = vmatprep.subr.mxu0 0.0
      %880 = vmatpush1.msra.mxu0 0.0
      %881 = vmatprep.subr.mxu0 0.0
      %882 = vmatpush1.msra.mxu0 0.0
      %883 = vmatprep.subr.mxu0 0.0
      %884 = vmatpush1.msra.mxu0 0.0
      %885 = vmatprep.subr.mxu0 0.0
      %886 = vmatpush1.msra.mxu0 0.0
      %887 = vmatprep.subr.mxu0 0.0
      %888 = vmatpush1.msra.mxu0 0.0
      %889 = vmatprep.subr.mxu0 0.0
      %890 = vmatpush1.msra.mxu0 0.0
      %891 = vmatprep.subr.mxu0 0.0
      %892 = vmatpush1.msra.mxu0 0.0
      %893 = vmatprep.subr.mxu0 0.0
      %894 = vmatpush1.msra.mxu0 0.0
      %895 = vmatprep.subr.mxu0 0.0
      %896 = vmatpush1.msra.mxu0 0.0
      %897 = vmatprep.subr.mxu0 0.0
      %898 = vmatpush1.msra.mxu0 0.0
      %899 = vmatprep.subr.mxu0 0.0
      %900 = vmatpush1.msra.mxu0 0.0
      %901 = vmatprep.subr.mxu0 0.0
      %902 = vmatpush1.msra.mxu0 0.0
      %903 = vmatprep.subr.mxu0 0.0
      %904 = vmatpush1.msra.mxu0 0.0
      %905 = vmatprep.subr.mxu0 0.0
      %906 = vmatpush1.msra.mxu0 0.0
      %907 = vmatprep.subr.mxu0 0.0
      %908 = vmatpush1.msra.mxu0 0.0
      %909 = vmatprep.subr.mxu0 0.0
      %910 = vmatpush1.msra.mxu0 0.0
      %911 = vmatprep.subr.mxu0 0.0
      %912 = vmatpush1.msra.mxu0 0.0
      %913 = vmatprep.mubr.f32.mxu0 0.0
      %914 = vmatmul.mubr.f32.gmra.mrb[0].mxu0 %v847
      %v915 = vpop.f32.mrb[0].mxu0
      %v916 = vadd.f32 0.0, %v915
      %v917 = vpop.f32.mrb[0].mxu0
      %v918 = vadd.f32 0.0, %v917
      %919 = vdwg.mxu0
      %v920 = vadd.f32 %v820, %v916
      %v921 = vadd.f32 %v821, %v918
      %922 = vrot.lane.b32.xlu0 %v345, 113
      %v923 = vpop.permute.xlu0 %922
      %924 = vrot.lane.b32.xlu0 %v346, 113
      %v925 = vpop.permute.xlu0 %924
      %vm926 = vcmp.lt.s32.totalorder %v352, 113
      %v927 = vsel %vm926, %v923, %v925
      %v928 = vsel %vm926, %v925, %v923
      %s929 = scalar_lea.vmem %s1, 12
      %v930 = vld [vmem:[%s929] sm:$0x3]
      %v932 = vlaneseq
      %v933 = vshrl.u32 %v932, 7
      %v934 = vsub.s32 0, %v933
      %v935 = vrot.slane %v930, %v934
      %v936 = vlaneseq
      %v937 = vshrl.u32 %v936, 7
      %v938 = vsub.s32 1, %v937
      %v939 = vrot.slane %v930, %v938
      %v942 = vmul.f32 %v927, %v935
      %v943 = vmul.f32 %v928, %v939
      %s944 = scalar_lea.vmem %s4, 48
      %v945 = vld [vmem:[%s944] sm:$0xff]
      %v947 = vsel %vm395, %v945, 0
      %949 = vmatprep.subr.mxu0 %v943
      %950 = vmatpush1.msra.mxu0 %v942
      %951 = vmatprep.subr.mxu0 0.0
      %952 = vmatpush1.msra.mxu0 0.0
      %953 = vmatprep.subr.mxu0 0.0
      %954 = vmatpush1.msra.mxu0 0.0
      %955 = vmatprep.subr.mxu0 0.0
      %956 = vmatpush1.msra.mxu0 0.0
      %957 = vmatprep.subr.mxu0 0.0
      %958 = vmatpush1.msra.mxu0 0.0
      %959 = vmatprep.subr.mxu0 0.0
      %960 = vmatpush1.msra.mxu0 0.0
      %961 = vmatprep.subr.mxu0 0.0
      %962 = vmatpush1.msra.mxu0 0.0
      %963 = vmatprep.subr.mxu0 0.0
      %964 = vmatpush1.msra.mxu0 0.0
      %965 = vmatprep.subr.mxu0 0.0
      %966 = vmatpush1.msra.mxu0 0.0
      %967 = vmatprep.subr.mxu0 0.0
      %968 = vmatpush1.msra.mxu0 0.0
      %969 = vmatprep.subr.mxu0 0.0
      %970 = vmatpush1.msra.mxu0 0.0
      %971 = vmatprep.subr.mxu0 0.0
      %972 = vmatpush1.msra.mxu0 0.0
      %973 = vmatprep.subr.mxu0 0.0
      %974 = vmatpush1.msra.mxu0 0.0
      %975 = vmatprep.subr.mxu0 0.0
      %976 = vmatpush1.msra.mxu0 0.0
      %977 = vmatprep.subr.mxu0 0.0
      %978 = vmatpush1.msra.mxu0 0.0
      %979 = vmatprep.subr.mxu0 0.0
      %980 = vmatpush1.msra.mxu0 0.0
      %981 = vmatprep.subr.mxu0 0.0
      %982 = vmatpush1.msra.mxu0 0.0
      %983 = vmatprep.subr.mxu0 0.0
      %984 = vmatpush1.msra.mxu0 0.0
      %985 = vmatprep.subr.mxu0 0.0
      %986 = vmatpush1.msra.mxu0 0.0
      %987 = vmatprep.subr.mxu0 0.0
      %988 = vmatpush1.msra.mxu0 0.0
      %989 = vmatprep.subr.mxu0 0.0
      %990 = vmatpush1.msra.mxu0 0.0
      %991 = vmatprep.subr.mxu0 0.0
      %992 = vmatpush1.msra.mxu0 0.0
      %993 = vmatprep.subr.mxu0 0.0
      %994 = vmatpush1.msra.mxu0 0.0
      %995 = vmatprep.subr.mxu0 0.0
      %996 = vmatpush1.msra.mxu0 0.0
      %997 = vmatprep.subr.mxu0 0.0
      %998 = vmatpush1.msra.mxu0 0.0
      %999 = vmatprep.subr.mxu0 0.0
      %1000 = vmatpush1.msra.mxu0 0.0
      %1001 = vmatprep.subr.mxu0 0.0
      %1002 = vmatpush1.msra.mxu0 0.0
      %1003 = vmatprep.subr.mxu0 0.0
      %1004 = vmatpush1.msra.mxu0 0.0
      %1005 = vmatprep.subr.mxu0 0.0
      %1006 = vmatpush1.msra.mxu0 0.0
      %1007 = vmatprep.subr.mxu0 0.0
      %1008 = vmatpush1.msra.mxu0 0.0
      %1009 = vmatprep.subr.mxu0 0.0
      %1010 = vmatpush1.msra.mxu0 0.0
      %1011 = vmatprep.subr.mxu0 0.0
      %1012 = vmatpush1.msra.mxu0 0.0
      %1013 = vmatprep.mubr.f32.mxu0 0.0
      %1014 = vmatmul.mubr.f32.gmra.mrb[0].mxu0 %v947
      %v1015 = vpop.f32.mrb[0].mxu0
      %v1016 = vadd.f32 0.0, %v1015
      %v1017 = vpop.f32.mrb[0].mxu0
      %v1018 = vadd.f32 0.0, %v1017
      %1019 = vdwg.mxu0
      %v1020 = vadd.f32 %v920, %v1016
      %v1021 = vadd.f32 %v921, %v1018
      %1022 = vrot.lane.b32.xlu0 %v345, 112
      %v1023 = vpop.permute.xlu0 %1022
      %1024 = vrot.lane.b32.xlu0 %v346, 112
      %v1025 = vpop.permute.xlu0 %1024
      %vm1026 = vcmp.lt.s32.totalorder %v352, 112
      %v1027 = vsel %vm1026, %v1023, %v1025
      %v1028 = vsel %vm1026, %v1025, %v1023
      %s1029 = scalar_lea.vmem %s1, 14
      %v1030 = vld [vmem:[%s1029] sm:$0x3]
      %v1032 = vlaneseq
      %v1033 = vshrl.u32 %v1032, 7
      %v1034 = vsub.s32 0, %v1033
      %v1035 = vrot.slane %v1030, %v1034
      %v1036 = vlaneseq
      %v1037 = vshrl.u32 %v1036, 7
      %v1038 = vsub.s32 1, %v1037
      %v1039 = vrot.slane %v1030, %v1038
      %v1042 = vmul.f32 %v1027, %v1035
      %v1043 = vmul.f32 %v1028, %v1039
      %s1044 = scalar_lea.vmem %s4, 56
      %v1045 = vld [vmem:[%s1044] sm:$0xff]
      %v1047 = vsel %vm395, %v1045, 0
      %1049 = vmatprep.subr.mxu0 %v1043
      %1050 = vmatpush1.msra.mxu0 %v1042
      %1051 = vmatprep.subr.mxu0 0.0
      %1052 = vmatpush1.msra.mxu0 0.0
      %1053 = vmatprep.subr.mxu0 0.0
      %1054 = vmatpush1.msra.mxu0 0.0
      %1055 = vmatprep.subr.mxu0 0.0
      %1056 = vmatpush1.msra.mxu0 0.0
      %1057 = vmatprep.subr.mxu0 0.0
      %1058 = vmatpush1.msra.mxu0 0.0
      %1059 = vmatprep.subr.mxu0 0.0
      %1060 = vmatpush1.msra.mxu0 0.0
      %1061 = vmatprep.subr.mxu0 0.0
      %1062 = vmatpush1.msra.mxu0 0.0
      %1063 = vmatprep.subr.mxu0 0.0
      %1064 = vmatpush1.msra.mxu0 0.0
      %1065 = vmatprep.subr.mxu0 0.0
      %1066 = vmatpush1.msra.mxu0 0.0
      %1067 = vmatprep.subr.mxu0 0.0
      %1068 = vmatpush1.msra.mxu0 0.0
      %1069 = vmatprep.subr.mxu0 0.0
      %1070 = vmatpush1.msra.mxu0 0.0
      %1071 = vmatprep.subr.mxu0 0.0
      %1072 = vmatpush1.msra.mxu0 0.0
      %1073 = vmatprep.subr.mxu0 0.0
      %1074 = vmatpush1.msra.mxu0 0.0
      %1075 = vmatprep.subr.mxu0 0.0
      %1076 = vmatpush1.msra.mxu0 0.0
      %1077 = vmatprep.subr.mxu0 0.0
      %1078 = vmatpush1.msra.mxu0 0.0
      %1079 = vmatprep.subr.mxu0 0.0
      %1080 = vmatpush1.msra.mxu0 0.0
      %1081 = vmatprep.subr.mxu0 0.0
      %1082 = vmatpush1.msra.mxu0 0.0
      %1083 = vmatprep.subr.mxu0 0.0
      %1084 = vmatpush1.msra.mxu0 0.0
      %1085 = vmatprep.subr.mxu0 0.0
      %1086 = vmatpush1.msra.mxu0 0.0
      %1087 = vmatprep.subr.mxu0 0.0
      %1088 = vmatpush1.msra.mxu0 0.0
      %1089 = vmatprep.subr.mxu0 0.0
      %1090 = vmatpush1.msra.mxu0 0.0
      %1091 = vmatprep.subr.mxu0 0.0
      %1092 = vmatpush1.msra.mxu0 0.0
      %1093 = vmatprep.subr.mxu0 0.0
      %1094 = vmatpush1.msra.mxu0 0.0
      %1095 = vmatprep.subr.mxu0 0.0
      %1096 = vmatpush1.msra.mxu0 0.0
      %1097 = vmatprep.subr.mxu0 0.0
      %1098 = vmatpush1.msra.mxu0 0.0
      %1099 = vmatprep.subr.mxu0 0.0
      %1100 = vmatpush1.msra.mxu0 0.0
      %1101 = vmatprep.subr.mxu0 0.0
      %1102 = vmatpush1.msra.mxu0 0.0
      %1103 = vmatprep.subr.mxu0 0.0
      %1104 = vmatpush1.msra.mxu0 0.0
      %1105 = vmatprep.subr.mxu0 0.0
      %1106 = vmatpush1.msra.mxu0 0.0
      %1107 = vmatprep.subr.mxu0 0.0
      %1108 = vmatpush1.msra.mxu0 0.0
      %1109 = vmatprep.subr.mxu0 0.0
      %1110 = vmatpush1.msra.mxu0 0.0
      %1111 = vmatprep.subr.mxu0 0.0
      %1112 = vmatpush1.msra.mxu0 0.0
      %1113 = vmatprep.mubr.f32.mxu0 0.0
      %1114 = vmatmul.mubr.f32.gmra.mrb[0].mxu0 %v1047
      %v1115 = vpop.f32.mrb[0].mxu0
      %v1116 = vadd.f32 0.0, %v1115
      %v1117 = vpop.f32.mrb[0].mxu0
      %v1118 = vadd.f32 0.0, %v1117
      %1119 = vdwg.mxu0
      %v1120 = vadd.f32 %v1020, %v1116
      %v1121 = vadd.f32 %v1021, %v1118
      %1122 = vrot.lane.b32.xlu0 %v345, 111
      %v1123 = vpop.permute.xlu0 %1122
      %1124 = vrot.lane.b32.xlu0 %v346, 111
      %v1125 = vpop.permute.xlu0 %1124
      %vm1126 = vcmp.lt.s32.totalorder %v352, 111
      %v1127 = vsel %vm1126, %v1123, %v1125
      %v1128 = vsel %vm1126, %v1125, %v1123
      %s1129 = scalar_lea.vmem %s1, 16
      %v1130 = vld [vmem:[%s1129] sm:$0x3]
      %v1132 = vlaneseq
      %v1133 = vshrl.u32 %v1132, 7
      %v1134 = vsub.s32 0, %v1133
      %v1135 = vrot.slane %v1130, %v1134
      %v1136 = vlaneseq
      %v1137 = vshrl.u32 %v1136, 7
      %v1138 = vsub.s32 1, %v1137
      %v1139 = vrot.slane %v1130, %v1138
      %v1142 = vmul.f32 %v1127, %v1135
      %v1143 = vmul.f32 %v1128, %v1139
      %s1144 = scalar_lea.vmem %s4, 64
      %v1145 = vld [vmem:[%s1144] sm:$0xff]
      %v1147 = vsel %vm395, %v1145, 0
      %1149 = vmatprep.subr.mxu0 %v1143
      %1150 = vmatpush1.msra.mxu0 %v1142
      %1151 = vmatprep.subr.mxu0 0.0
      %1152 = vmatpush1.msra.mxu0 0.0
      %1153 = vmatprep.subr.mxu0 0.0
      %1154 = vmatpush1.msra.mxu0 0.0
      %1155 = vmatprep.subr.mxu0 0.0
      %1156 = vmatpush1.msra.mxu0 0.0
      %1157 = vmatprep.subr.mxu0 0.0
      %1158 = vmatpush1.msra.mxu0 0.0
      %1159 = vmatprep.subr.mxu0 0.0
      %1160 = vmatpush1.msra.mxu0 0.0
      %1161 = vmatprep.subr.mxu0 0.0
      %1162 = vmatpush1.msra.mxu0 0.0
      %1163 = vmatprep.subr.mxu0 0.0
      %1164 = vmatpush1.msra.mxu0 0.0
      %1165 = vmatprep.subr.mxu0 0.0
      %1166 = vmatpush1.msra.mxu0 0.0
      %1167 = vmatprep.subr.mxu0 0.0
      %1168 = vmatpush1.msra.mxu0 0.0
      %1169 = vmatprep.subr.mxu0 0.0
      %1170 = vmatpush1.msra.mxu0 0.0
      %1171 = vmatprep.subr.mxu0 0.0
      %1172 = vmatpush1.msra.mxu0 0.0
      %1173 = vmatprep.subr.mxu0 0.0
      %1174 = vmatpush1.msra.mxu0 0.0
      %1175 = vmatprep.subr.mxu0 0.0
      %1176 = vmatpush1.msra.mxu0 0.0
      %1177 = vmatprep.subr.mxu0 0.0
      %1178 = vmatpush1.msra.mxu0 0.0
      %1179 = vmatprep.subr.mxu0 0.0
      %1180 = vmatpush1.msra.mxu0 0.0
      %1181 = vmatprep.subr.mxu0 0.0
      %1182 = vmatpush1.msra.mxu0 0.0
      %1183 = vmatprep.subr.mxu0 0.0
      %1184 = vmatpush1.msra.mxu0 0.0
      %1185 = vmatprep.subr.mxu0 0.0
      %1186 = vmatpush1.msra.mxu0 0.0
      %1187 = vmatprep.subr.mxu0 0.0
      %1188 = vmatpush1.msra.mxu0 0.0
      %1189 = vmatprep.subr.mxu0 0.0
      %1190 = vmatpush1.msra.mxu0 0.0
      %1191 = vmatprep.subr.mxu0 0.0
      %1192 = vmatpush1.msra.mxu0 0.0
      %1193 = vmatprep.subr.mxu0 0.0
      %1194 = vmatpush1.msra.mxu0 0.0
      %1195 = vmatprep.subr.mxu0 0.0
      %1196 = vmatpush1.msra.mxu0 0.0
      %1197 = vmatprep.subr.mxu0 0.0
      %1198 = vmatpush1.msra.mxu0 0.0
      %1199 = vmatprep.subr.mxu0 0.0
      %1200 = vmatpush1.msra.mxu0 0.0
      %1201 = vmatprep.subr.mxu0 0.0
      %1202 = vmatpush1.msra.mxu0 0.0
      %1203 = vmatprep.subr.mxu0 0.0
      %1204 = vmatpush1.msra.mxu0 0.0
      %1205 = vmatprep.subr.mxu0 0.0
      %1206 = vmatpush1.msra.mxu0 0.0
      %1207 = vmatprep.subr.mxu0 0.0
      %1208 = vmatpush1.msra.mxu0 0.0
      %1209 = vmatprep.subr.mxu0 0.0
      %1210 = vmatpush1.msra.mxu0 0.0
      %1211 = vmatprep.subr.mxu0 0.0
      %1212 = vmatpush1.msra.mxu0 0.0
      %1213 = vmatprep.mubr.f32.mxu0 0.0
      %1214 = vmatmul.mubr.f32.gmra.mrb[0].mxu0 %v1147
      %v1215 = vpop.f32.mrb[0].mxu0
      %v1216 = vadd.f32 0.0, %v1215
      %v1217 = vpop.f32.mrb[0].mxu0
      %v1218 = vadd.f32 0.0, %v1217
      %1219 = vdwg.mxu0
      %v1220 = vadd.f32 %v1120, %v1216
      %v1221 = vadd.f32 %v1121, %v1218
      %v1222 = vld [vmem:[%s5] sm:$0xff]
      %1224 = vset.pattern.permute.xlu0 0
      %1225 = vperm.xlu0 %1224, %v1222
      %v1226 = vpop.permute.xlu0 %1225
      %v1228 = vadd.f32 %v1220, %v1226
      %v1229 = vadd.f32 %v1221, %v1226
      %1230 = vst [vmem:[%s318] sm:$0xff] %v1228
      %1231 = vst [vmem:[%s318 + $0x8] sm:$0xff] %v1229
      %v1232 = vadd.f32 %v1228, %v1229
      %1233 = vadd.xlane.f32.xlu0 %v1232
      %v1234 = vpop.xlane.xlu0 %1233
      %vm1235 = vcmask 7168
      %1236 = vst.msk [vmem:[%s322] sm:$0xff] %vm1235, %v1234
      %v1237 = vmul.f32 %v1228, %v1228
      %v1238 = vmul.f32 %v1229, %v1229
      %v1239 = vadd.f32 %v1237, %v1238
      %1240 = vadd.xlane.f32.xlu0 %v1239
      %v1241 = vpop.xlane.xlu0 %1240
      %1242 = vst.msk [vmem:[%s326] sm:$0xff] %vm1235, %v1241
      %p1243 = scmp.lt.s32.totalorder %s20, 1
      %s1244 = scalar_select %p1243, %s20, 1
      %s1245 = smul.addr %s1244, 2
      %s1246 = smul.addr %s1245, 8
      %s1247 = scalar_lea.vmem %s6, %s1246
      %p1248 = scmp.lt.s32.totalorder %s20, 1
      %s1249 = scalar_select %p1248, %s20, 1
      %s1250 = smul.addr %s1249, 8
      %s1251 = scalar_lea.vmem %s7, %s1250
      %p1252 = scmp.lt.s32.totalorder %s20, 1
      %s1253 = scalar_select %p1252, %s20, 1
      %s1254 = smul.addr %s1253, 8
      %s1255 = scalar_lea.vmem %s8, %s1254
      // Predicated region
      $region45: #{double_conv_forward.4} parent=43 // pred_check
        %p1256 = pneg %p169
      $region46: #{double_conv_forward.4} parent=43 // pred_check_branch
        %1258 = sbr.rel (%p1256) target = $region48
      $region47: #{double_conv_forward.4} parent=43 // pred_region
        _
      $region48: #{double_conv_forward.4} parent=43 // pred_fallthru
        _
      // Predicated region
      $region49: #{double_conv_forward.4} parent=43 // pred_check
        %p1259 = pneg %p195
      $region50: #{double_conv_forward.4} parent=43 // pred_check_branch
        %1261 = sbr.rel (%p1259) target = $region52
      $region51: #{double_conv_forward.4} parent=43 // pred_region
        _
      $region52: #{double_conv_forward.4} parent=43 // pred_fallthru
        _
      // Predicated region
      $region53: #{double_conv_forward.4} parent=43 // pred_check
        %p1262 = pneg %p221
      $region54: #{double_conv_forward.4} parent=43 // pred_check_branch
        %1264 = sbr.rel (%p1262) target = $region56
      $region55: #{double_conv_forward.4} parent=43 // pred_region
        _
      $region56: #{double_conv_forward.4} parent=43 // pred_fallthru
        _
    $region44: #{double_conv_forward.4} parent=5 // pred_fallthru
      _
    %p1265 = scmp.le.s32.totalorder 2, %s15
    // Predicated region
    $region57: #{double_conv_forward.4} parent=5 // pred_check
      %p1266 = pneg %p1265
    $region58: #{double_conv_forward.4} parent=5 // pred_check_branch
      %1268 = sbr.rel (%p1266) target = $region60
    $region59: #{double_conv_forward.4} parent=5 // pred_region
      %s1269 = ssub.s32 %s15, 2
      // Predicated region
      $region61: #{double_conv_forward.4} parent=59 // pred_check
        %p1270 = pneg %p175
      $region62: #{double_conv_forward.4} parent=59 // pred_check_branch
        %1272 = sbr.rel (%p1270) target = $region64
      $region63: #{double_conv_forward.4} parent=59 // pred_region
        %p1273 = scmp.lt.s32.totalorder %s21, 1
        %s1274 = scalar_select %p1273, %s21, 1
        %s1275 = smul.addr %s1274, 2
        %s1276 = smul.addr %s1275, 8
        %s1277 = scalar_lea.vmem %s6, %s1276
      $region64: #{double_conv_forward.4} parent=59 // pred_fallthru
        _
      // Predicated region
      $region65: #{double_conv_forward.4} parent=59 // pred_check
        %p1278 = pneg %p201
      $region66: #{double_conv_forward.4} parent=59 // pred_check_branch
        %1280 = sbr.rel (%p1278) target = $region68
      $region67: #{double_conv_forward.4} parent=59 // pred_region
        %p1281 = scmp.lt.s32.totalorder %s21, 1
        %s1282 = scalar_select %p1281, %s21, 1
        %s1283 = smul.addr %s1282, 8
        %s1284 = scalar_lea.vmem %s7, %s1283
      $region68: #{double_conv_forward.4} parent=59 // pred_fallthru
        _
      // Predicated region
      $region69: #{double_conv_forward.4} parent=59 // pred_check
        %p1285 = pneg %p227
      $region70: #{double_conv_forward.4} parent=59 // pred_check_branch
        %1287 = sbr.rel (%p1285) target = $region72
      $region71: #{double_conv_forward.4} parent=59 // pred_region
        %p1288 = scmp.lt.s32.totalorder %s21, 1
        %s1289 = scalar_select %p1288, %s21, 1
        %s1290 = smul.addr %s1289, 8
        %s1291 = scalar_lea.vmem %s8, %s1290
      $region72: #{double_conv_forward.4} parent=59 // pred_fallthru
        _
    $region60: #{double_conv_forward.4} parent=5 // pred_fallthru
      _
  $region6: #{double_conv_forward.4} parent=0 // loop_footer
    %s19 = sadd.s32 1, %s15
  $region7: #{double_conv_forward.4} parent=0 // loop_footer_branch
    %14 = sbr.rel target = $region3
  $region8: #{double_conv_forward.4} parent=0 // loop_exit
    _

// kernel: double_conv_forward.3
$region0: #{double_conv_forward.3}
  #allocation0 [shape = 'u32[]', space=smem, size = 0x4, offset = 0x4, fixed_abs, tag = 'smem constant byte address 0x4 - core index']
  #allocation1 [shape = 'u32[144,128]{1,0:T(1,128)}', space=vmem, size = 0x12000, scoped, tag = 'internal scratch']
  %s0 = inlined_call_operand.vmem [shape: f32[2,4,256], index: 0, kind: input, shape index: {}]
  %s1 = inlined_call_operand.vmem [shape: f32[9,1,256], index: 1, kind: input, shape index: {}]
  %s2 = inlined_call_operand.vmem [shape: f32[4,1], index: 2, kind: input, shape index: {}]
  %s3 = inlined_call_operand.vmem [shape: f32[4,1], index: 3, kind: input, shape index: {}]
  %s4 = inlined_call_operand.vmem [shape: f32[9,8,4], index: 4, kind: input, shape index: {}]
  %s5 = inlined_call_operand.vmem [shape: f32[8,1], index: 5, kind: input, shape index: {}]
  %s6 = inlined_call_operand.vmem [shape: f32[2,8,256], index: 6, kind: output, shape index: {0}]
  %s7 = inlined_call_operand.vmem [shape: f32[2,8,1], index: 7, kind: output, shape index: {1}]
  %s8 = inlined_call_operand.vmem [shape: f32[2,8,1], index: 8, kind: output, shape index: {2}]
  %9 = xla_tuple %s6, %s7, %s8
  %s10 = sld [smem:[#allocation0]]
  $region73: #{double_conv_forward.3} parent=0
    _
  %s12 = ssub.s32 1, %s10
  %s13 = scalar_select 0, %s12, %s10
  loop: start=0, step=1, limit=4
  $region2: #{double_conv_forward.3} parent=0 // loop_pre_header
    _
  $region3: #{double_conv_forward.3} parent=0 // loop_header
    %s15 = sphi 0, %s19
    %p16 = scmp.ge.s32.totalorder %s15, 4
    %s25 = sphi 0, %s27
    %s28 = sphi 0, %s25
    %s29 = sphi 0, %s28
    %s45 = sphi 0, %s29
    %s49 = sphi 0, %s49
    %s51 = sphi 0, %s49
    %s52 = sphi 0, %s51
    %s66 = sphi 0, %s52
    %s70 = sphi 0, %s70
    %s72 = sphi 0, %s70
    %s73 = sphi 0, %s72
    %s87 = sphi 0, %s73
    %s91 = sphi 0, %s91
    %s93 = sphi 0, %s91
    %s94 = sphi 0, %s93
    %s108 = sphi 0, %s94
    %s112 = sphi 0, %s112
    %s114 = sphi 0, %s112
    %s115 = sphi 0, %s114
    %s129 = sphi 0, %s115
    %s133 = sphi 0, %s133
    %s135 = sphi 0, %s133
    %s136 = sphi 0, %s135
    %s150 = sphi 0, %s136
    %s156 = sphi 0, %s158
    %s159 = sphi 0, %s156
    %s160 = sphi 0, %s159
    %s176 = sphi 0, %s160
    %s182 = sphi 0, %s184
    %s185 = sphi 0, %s182
    %s186 = sphi 0, %s185
    %s202 = sphi 0, %s186
    %s208 = sphi 0, %s210
    %s211 = sphi 0, %s208
    %s212 = sphi 0, %s211
    %s228 = sphi 0, %s212
  $region4: #{double_conv_forward.3} parent=0 // loop_header_branch
    %18 = sbr.rel (%p16) target = $region8
  $region5: #{double_conv_forward.3} parent=0 // loop_body
    %s20 = ssub.s32 %s15, 1
    %s21 = ssub.s32 %s15, 2
    %s22 = sadd.s32 %s15, 1
    %s23 = ssub.s32 %s15, %s22
    %p24 = scmp.eq.s32.totalorder %s23, 0
    %s26 = sadd.s32 %s25, 1
    %s27 = scalar_select %p24, %s25, %s26
    %p30 = pneg %p24
    %p31 = scmp.eq.s32.totalorder %s15, 1
    %p32 = por %p30, %p31
    %p33 = scmp.ne.s32.totalorder %s25, %s28
    %p34 = scmp.eq.s32.totalorder %s15, 0
    %p35 = por %p33, %p34
    %p36 = scmp.ne.s32.totalorder %s25, %s28
    %p37 = scmp.eq.s32.totalorder %s20, 1
    %p38 = por %p36, %p37
    %p39 = scmp.ne.s32.totalorder %s28, %s29
    %p40 = scmp.eq.s32.totalorder %s20, 0
    %p41 = por %p39, %p40
    %p42 = scmp.ne.s32.totalorder %s28, %s29
    %p43 = scmp.eq.s32.totalorder %s21, 1
    %p44 = por %p42, %p43
    %p46 = scmp.ne.s32.totalorder %s29, %s45
    %p47 = scmp.eq.s32.totalorder %s21, 0
    %p48 = por %p46, %p47
    %s50 = sadd.s32 %s49, 1
    %p53 = scmp.eq.s32.totalorder %s15, 1
    %p54 = scmp.ne.s32.totalorder %s49, %s51
    %p55 = scmp.eq.s32.totalorder %s15, 0
    %p56 = por %p54, %p55
    %p57 = scmp.ne.s32.totalorder %s49, %s51
    %p58 = scmp.eq.s32.totalorder %s20, 1
    %p59 = por %p57, %p58
    %p60 = scmp.ne.s32.totalorder %s51, %s52
    %p61 = scmp.eq.s32.totalorder %s20, 0
    %p62 = por %p60, %p61
    %p63 = scmp.ne.s32.totalorder %s51, %s52
    %p64 = scmp.eq.s32.totalorder %s21, 1
    %p65 = por %p63, %p64
    %p67 = scmp.ne.s32.totalorder %s52, %s66
    %p68 = scmp.eq.s32.totalorder %s21, 0
    %p69 = por %p67, %p68
    %s71 = sadd.s32 %s70, 1
    %p74 = scmp.eq.s32.totalorder %s15, 1
    %p75 = scmp.ne.s32.totalorder %s70, %s72
    %p76 = scmp.eq.s32.totalorder %s15, 0
    %p77 = por %p75, %p76
    %p78 = scmp.ne.s32.totalorder %s70, %s72
    %p79 = scmp.eq.s32.totalorder %s20, 1
    %p80 = por %p78, %p79
    %p81 = scmp.ne.s32.totalorder %s72, %s73
    %p82 = scmp.eq.s32.totalorder %s20, 0
    %p83 = por %p81, %p82
    %p84 = scmp.ne.s32.totalorder %s72, %s73
    %p85 = scmp.eq.s32.totalorder %s21, 1
    %p86 = por %p84, %p85
    %p88 = scmp.ne.s32.totalorder %s73, %s87
    %p89 = scmp.eq.s32.totalorder %s21, 0
    %p90 = por %p88, %p89
    %s92 = sadd.s32 %s91, 1
    %p95 = scmp.eq.s32.totalorder %s15, 1
    %p96 = scmp.ne.s32.totalorder %s91, %s93
    %p97 = scmp.eq.s32.totalorder %s15, 0
    %p98 = por %p96, %p97
    %p99 = scmp.ne.s32.totalorder %s91, %s93
    %p100 = scmp.eq.s32.totalorder %s20, 1
    %p101 = por %p99, %p100
    %p102 = scmp.ne.s32.totalorder %s93, %s94
    %p103 = scmp.eq.s32.totalorder %s20, 0
    %p104 = por %p102, %p103
    %p105 = scmp.ne.s32.totalorder %s93, %s94
    %p106 = scmp.eq.s32.totalorder %s21, 1
    %p107 = por %p105, %p106
    %p109 = scmp.ne.s32.totalorder %s94, %s108
    %p110 = scmp.eq.s32.totalorder %s21, 0
    %p111 = por %p109, %p110
    %s113 = sadd.s32 %s112, 1
    %p116 = scmp.eq.s32.totalorder %s15, 1
    %p117 = scmp.ne.s32.totalorder %s112, %s114
    %p118 = scmp.eq.s32.totalorder %s15, 0
    %p119 = por %p117, %p118
    %p120 = scmp.ne.s32.totalorder %s112, %s114
    %p121 = scmp.eq.s32.totalorder %s20, 1
    %p122 = por %p120, %p121
    %p123 = scmp.ne.s32.totalorder %s114, %s115
    %p124 = scmp.eq.s32.totalorder %s20, 0
    %p125 = por %p123, %p124
    %p126 = scmp.ne.s32.totalorder %s114, %s115
    %p127 = scmp.eq.s32.totalorder %s21, 1
    %p128 = por %p126, %p127
    %p130 = scmp.ne.s32.totalorder %s115, %s129
    %p131 = scmp.eq.s32.totalorder %s21, 0
    %p132 = por %p130, %p131
    %s134 = sadd.s32 %s133, 1
    %p137 = scmp.eq.s32.totalorder %s15, 1
    %p138 = scmp.ne.s32.totalorder %s133, %s135
    %p139 = scmp.eq.s32.totalorder %s15, 0
    %p140 = por %p138, %p139
    %p141 = scmp.ne.s32.totalorder %s133, %s135
    %p142 = scmp.eq.s32.totalorder %s20, 1
    %p143 = por %p141, %p142
    %p144 = scmp.ne.s32.totalorder %s135, %s136
    %p145 = scmp.eq.s32.totalorder %s20, 0
    %p146 = por %p144, %p145
    %p147 = scmp.ne.s32.totalorder %s135, %s136
    %p148 = scmp.eq.s32.totalorder %s21, 1
    %p149 = por %p147, %p148
    %p151 = scmp.ne.s32.totalorder %s136, %s150
    %p152 = scmp.eq.s32.totalorder %s21, 0
    %p153 = por %p151, %p152
    %s154 = ssub.s32 %s15, %s22
    %p155 = scmp.eq.s32.totalorder %s154, 0
    %s157 = sadd.s32 %s156, 1
    %s158 = scalar_select %p155, %s156, %s157
    %p161 = pneg %p155
    %p162 = scmp.eq.s32.totalorder %s15, 1
    %p163 = por %p161, %p162
    %p164 = scmp.ne.s32.totalorder %s156, %s159
    %p165 = scmp.eq.s32.totalorder %s15, 0
    %p166 = por %p164, %p165
    %p167 = scmp.ne.s32.totalorder %s156, %s159
    %p168 = scmp.eq.s32.totalorder %s20, 1
    %p169 = por %p167, %p168
    %p170 = scmp.ne.s32.totalorder %s159, %s160
    %p171 = scmp.eq.s32.totalorder %s20, 0
    %p172 = por %p170, %p171
    %p173 = scmp.ne.s32.totalorder %s159, %s160
    %p174 = scmp.eq.s32.totalorder %s21, 1
    %p175 = por %p173, %p174
    %p177 = scmp.ne.s32.totalorder %s160, %s176
    %p178 = scmp.eq.s32.totalorder %s21, 0
    %p179 = por %p177, %p178
    %s180 = ssub.s32 %s15, %s22
    %p181 = scmp.eq.s32.totalorder %s180, 0
    %s183 = sadd.s32 %s182, 1
    %s184 = scalar_select %p181, %s182, %s183
    %p187 = pneg %p181
    %p188 = scmp.eq.s32.totalorder %s15, 1
    %p189 = por %p187, %p188
    %p190 = scmp.ne.s32.totalorder %s182, %s185
    %p191 = scmp.eq.s32.totalorder %s15, 0
    %p192 = por %p190, %p191
    %p193 = scmp.ne.s32.totalorder %s182, %s185
    %p194 = scmp.eq.s32.totalorder %s20, 1
    %p195 = por %p193, %p194
    %p196 = scmp.ne.s32.totalorder %s185, %s186
    %p197 = scmp.eq.s32.totalorder %s20, 0
    %p198 = por %p196, %p197
    %p199 = scmp.ne.s32.totalorder %s185, %s186
    %p200 = scmp.eq.s32.totalorder %s21, 1
    %p201 = por %p199, %p200
    %p203 = scmp.ne.s32.totalorder %s186, %s202
    %p204 = scmp.eq.s32.totalorder %s21, 0
    %p205 = por %p203, %p204
    %s206 = ssub.s32 %s15, %s22
    %p207 = scmp.eq.s32.totalorder %s206, 0
    %s209 = sadd.s32 %s208, 1
    %s210 = scalar_select %p207, %s208, %s209
    %p213 = pneg %p207
    %p214 = scmp.eq.s32.totalorder %s15, 1
    %p215 = por %p213, %p214
    %p216 = scmp.ne.s32.totalorder %s208, %s211
    %p217 = scmp.eq.s32.totalorder %s15, 0
    %p218 = por %p216, %p217
    %p219 = scmp.ne.s32.totalorder %s208, %s211
    %p220 = scmp.eq.s32.totalorder %s20, 1
    %p221 = por %p219, %p220
    %p222 = scmp.ne.s32.totalorder %s211, %s212
    %p223 = scmp.eq.s32.totalorder %s20, 0
    %p224 = por %p222, %p223
    %p225 = scmp.ne.s32.totalorder %s211, %s212
    %p226 = scmp.eq.s32.totalorder %s21, 1
    %p227 = por %p225, %p226
    %p229 = scmp.ne.s32.totalorder %s212, %s228
    %p230 = scmp.eq.s32.totalorder %s21, 0
    %p231 = por %p229, %p230
    %p232 = scmp.le.s32.totalorder 1, %s15
    %p233 = scmp.lt.s32.totalorder %s15, 3
    %p234 = pnand %p232, %p233
    %p235 = pneg %p234
    // Predicated region
    $region9: #{double_conv_forward.3} parent=5 // pred_check
      _
    $region10: #{double_conv_forward.3} parent=5 // pred_check_branch
      %237 = sbr.rel (%p234) target = $region12
    $region11: #{double_conv_forward.3} parent=5 // pred_region
      %s238 = ssub.s32 %s15, 1
      // Predicated region
      $region13: #{double_conv_forward.3} parent=11 // pred_check
        %p239 = pneg %p62
      $region14: #{double_conv_forward.3} parent=11 // pred_check_branch
        %241 = sbr.rel (%p239) target = $region16
      $region15: #{double_conv_forward.3} parent=11 // pred_region
        _
      $region16: #{double_conv_forward.3} parent=11 // pred_fallthru
        _
      // Predicated region
      $region17: #{double_conv_forward.3} parent=11 // pred_check
        %p242 = pneg %p83
      $region18: #{double_conv_forward.3} parent=11 // pred_check_branch
        %244 = sbr.rel (%p242) target = $region20
      $region19: #{double_conv_forward.3} parent=11 // pred_region
        _
      $region20: #{double_conv_forward.3} parent=11 // pred_fallthru
        _
      // Predicated region
      $region21: #{double_conv_forward.3} parent=11 // pred_check
        %p245 = pneg %p104
      $region22: #{double_conv_forward.3} parent=11 // pred_check_branch
        %247 = sbr.rel (%p245) target = $region24
      $region23: #{double_conv_forward.3} parent=11 // pred_region
        _
      $region24: #{double_conv_forward.3} parent=11 // pred_fallthru
        _
      // Predicated region
      $region25: #{double_conv_forward.3} parent=11 // pred_check
        %p248 = pneg %p125
      $region26: #{double_conv_forward.3} parent=11 // pred_check_branch
        %250 = sbr.rel (%p248) target = $region28
      $region27: #{double_conv_forward.3} parent=11 // pred_region
        _
      $region28: #{double_conv_forward.3} parent=11 // pred_fallthru
        _
      // Predicated region
      $region29: #{double_conv_forward.3} parent=11 // pred_check
        %p251 = pneg %p146
      $region30: #{double_conv_forward.3} parent=11 // pred_check_branch
        %253 = sbr.rel (%p251) target = $region32
      $region31: #{double_conv_forward.3} parent=11 // pred_region
        _
      $region32: #{double_conv_forward.3} parent=11 // pred_fallthru
        _
    $region12: #{double_conv_forward.3} parent=5 // pred_fallthru
      _
    %p254 = scmp.lt.s32.totalorder %s15, 2
    // Predicated region
    $region33: #{double_conv_forward.3} parent=5 // pred_check
      %p255 = pneg %p254
    $region34: #{double_conv_forward.3} parent=5 // pred_check_branch
      %257 = sbr.rel (%p255) target = $region36
    $region35: #{double_conv_forward.3} parent=5 // pred_region
      // Predicated region
      $region37: #{double_conv_forward.3} parent=35 // pred_check
        %p258 = pneg %p35
      $region38: #{double_conv_forward.3} parent=35 // pred_check_branch
        %260 = sbr.rel (%p258) target = $region40
      $region39: #{double_conv_forward.3} parent=35 // pred_region
        %p261 = scmp.lt.s32.totalorder %s15, 1
        %s262 = scalar_select %p261, %s15, 1
        %s263 = smul.addr %s262, 2
        %s264 = smul.addr %s263, 4
        %s265 = scalar_lea.vmem %s0, %s264
      $region40: #{double_conv_forward.3} parent=35 // pred_fallthru
        _
    $region36: #{double_conv_forward.3} parent=5 // pred_fallthru
      _
    %p266 = scmp.le.s32.totalorder 1, %s15
    %p267 = scmp.lt.s32.totalorder %s15, 3
    %p268 = pnand %p266, %p267
    %p269 = pneg %p268
    // Predicated region
    $region41: #{double_conv_forward.3} parent=5 // pred_check
      _
    $region42: #{double_conv_forward.3} parent=5 // pred_check_branch
      %271 = sbr.rel (%p268) target = $region44
    $region43: #{double_conv_forward.3} parent=5 // pred_region
      %s272 = ssub.s32 %s15, 1
      %p273 = scmp.lt.s32.totalorder %s20, 1
      %s274 = scalar_select %p273, %s20, 1
      %s275 = smul.addr %s274, 2
      %s276 = smul.addr %s275, 4
      %s277 = scalar_lea.vmem %s0, %s276
      %p278 = pneg %p41
      %p279 = pneg %p38
      %p280 = pneg %p62
      %p281 = pneg %p59
      %p282 = pneg %p83
      %p283 = pneg %p80
      %p284 = pneg %p104
      %p285 = pneg %p101
      %p286 = pneg %p125
      %p287 = pneg %p122
      %p288 = pneg %p146
      %p289 = pneg %p143
      %p290 = pneg %p172
      %p291 = pneg %p169
      %p292 = scmp.lt.s32.totalorder %s20, 1
      %s293 = scalar_select %p292, %s20, 1
      %s294 = smul.addr %s293, 2
      %s295 = smul.addr %s294, 8
      %s296 = scalar_lea.vmem %s6, %s295
      %p297 = pneg %p198
      %p298 = pneg %p195
      %p299 = scmp.lt.s32.totalorder %s20, 1
      %s300 = scalar_select %p299, %s20, 1
      %s301 = smul.addr %s300, 8
      %s302 = scalar_lea.vmem %s7, %s301
      %p303 = pneg %p224
      %p304 = pneg %p221
      %p305 = scmp.lt.s32.totalorder %s20, 1
      %s306 = scalar_select %p305, %s20, 1
      %s307 = smul.addr %s306, 8
      %s308 = scalar_lea.vmem %s8, %s307
      %p309 = scmp.lt.s32.totalorder %s20, 1
      %s310 = scalar_select %p309, %s20, 1
      %s311 = smul.addr %s310, 2
      %s312 = smul.addr %s311, 4
      %s313 = scalar_lea.vmem %s0, %s312
      %p314 = scmp.lt.s32.totalorder %s20, 1
      %s315 = scalar_select %p314, %s20, 1
      %s316 = smul.addr %s315, 2
      %s317 = smul.addr %s316, 8
      %s318 = scalar_lea.vmem %s6, %s317
      %p319 = scmp.lt.s32.totalorder %s20, 1
      %s320 = scalar_select %p319, %s20, 1
      %s321 = smul.addr %s320, 8
      %s322 = scalar_lea.vmem %s7, %s321
      %p323 = scmp.lt.s32.totalorder %s20, 1
      %s324 = scalar_select %p323, %s20, 1
      %s325 = smul.addr %s324, 8
      %s326 = scalar_lea.vmem %s8, %s325
      %v327 = vld [vmem:[%s313] sm:$0xff]
      %v329 = vcombine.high %v327, %v327
      %331 = vrot.lane.b32.xlu0 %v327, 17
      %v332 = vpop.permute.xlu0 %331
      %333 = vrot.lane.b32.xlu0 %v329, 17
      %v334 = vpop.permute.xlu0 %333
      %v335 = vlaneseq
      %v336 = vand.u32 %v335, 127
      %vm337 = vcmp.lt.s32.totalorder %v336, 17
      %v338 = vsel %vm337, %v332, %v334
      %v339 = vsel %vm337, %v334, %v332
      %v340 = vld [vmem:[%s1] sm:$0x3]
      %v342 = vlaneseq
      %v343 = vshrl.u32 %v342, 7
      %v344 = vsub.s32 0, %v343
      %v345 = vrot.slane %v340, %v344
      %v346 = vlaneseq
      %v347 = vshrl.u32 %v346, 7
      %v348 = vsub.s32 1, %v347
      %v349 = vrot.slane %v340, %v348
      %v352 = vmul.f32 %v339, %v345
      %v353 = vmul.f32 %v338, %v349
      %v354 = vld [vmem:[%s4] sm:$0xff]
      %355 = vrot.lane.b32.xlu0 %v327, 16
      %v356 = vpop.permute.xlu0 %355
      %357 = vrot.lane.b32.xlu0 %v329, 16
      %v358 = vpop.permute.xlu0 %357
      %vm359 = vcmp.lt.s32.totalorder %v336, 16
      %v360 = vsel %vm359, %v356, %v358
      %v361 = vsel %vm359, %v358, %v356
      %s362 = scalar_lea.vmem %s1, 2
      %v363 = vld [vmem:[%s362] sm:$0x3]
      %v365 = vlaneseq
      %v366 = vshrl.u32 %v365, 7
      %v367 = vsub.s32 0, %v366
      %v368 = vrot.slane %v363, %v367
      %v369 = vlaneseq
      %v370 = vshrl.u32 %v369, 7
      %v371 = vsub.s32 1, %v370
      %v372 = vrot.slane %v363, %v371
      %v375 = vmul.f32 %v361, %v368
      %v376 = vmul.f32 %v360, %v372
      %s377 = scalar_lea.vmem %s4, 8
      %v378 = vld [vmem:[%s377] sm:$0xff]
      %vm379 = vcmask 31744
      %v381 = vsel %vm379, %v378, 0
      %vm383 = vcmask 1043456
      %v385 = vsel %vm383, %v375, 0
      %v388 = vsel %vm383, %v376, 0
      %390 = vmatprep.subr.mxu0 %v388
      %391 = vmatpush1.msra.mxu0 %v385
      %392 = vmatprep.subr.mxu0 0.0
      %393 = vmatpush1.msra.mxu0 0.0
      %394 = vmatprep.subr.mxu0 0.0
      %395 = vmatpush1.msra.mxu0 0.0
      %396 = vmatprep.subr.mxu0 0.0
      %397 = vmatpush1.msra.mxu0 0.0
      %398 = vmatprep.subr.mxu0 0.0
      %399 = vmatpush1.msra.mxu0 0.0
      %400 = vmatprep.subr.mxu0 0.0
      %401 = vmatpush1.msra.mxu0 0.0
      %402 = vmatprep.subr.mxu0 0.0
      %403 = vmatpush1.msra.mxu0 0.0
      %404 = vmatprep.subr.mxu0 0.0
      %405 = vmatpush1.msra.mxu0 0.0
      %406 = vmatprep.subr.mxu0 0.0
      %407 = vmatpush1.msra.mxu0 0.0
      %408 = vmatprep.subr.mxu0 0.0
      %409 = vmatpush1.msra.mxu0 0.0
      %410 = vmatprep.subr.mxu0 0.0
      %411 = vmatpush1.msra.mxu0 0.0
      %412 = vmatprep.subr.mxu0 0.0
      %413 = vmatpush1.msra.mxu0 0.0
      %414 = vmatprep.subr.mxu0 0.0
      %415 = vmatpush1.msra.mxu0 0.0
      %416 = vmatprep.subr.mxu0 0.0
      %417 = vmatpush1.msra.mxu0 0.0
      %418 = vmatprep.subr.mxu0 0.0
      %419 = vmatpush1.msra.mxu0 0.0
      %420 = vmatprep.subr.mxu0 0.0
      %421 = vmatpush1.msra.mxu0 0.0
      %422 = vmatprep.subr.mxu0 0.0
      %423 = vmatpush1.msra.mxu0 0.0
      %424 = vmatprep.subr.mxu0 0.0
      %425 = vmatpush1.msra.mxu0 0.0
      %426 = vmatprep.subr.mxu0 0.0
      %427 = vmatpush1.msra.mxu0 0.0
      %428 = vmatprep.subr.mxu0 0.0
      %429 = vmatpush1.msra.mxu0 0.0
      %430 = vmatprep.subr.mxu0 0.0
      %431 = vmatpush1.msra.mxu0 0.0
      %432 = vmatprep.subr.mxu0 0.0
      %433 = vmatpush1.msra.mxu0 0.0
      %434 = vmatprep.subr.mxu0 0.0
      %435 = vmatpush1.msra.mxu0 0.0
      %436 = vmatprep.subr.mxu0 0.0
      %437 = vmatpush1.msra.mxu0 0.0
      %438 = vmatprep.subr.mxu0 0.0
      %439 = vmatpush1.msra.mxu0 0.0
      %440 = vmatprep.subr.mxu0 0.0
      %441 = vmatpush1.msra.mxu0 0.0
      %442 = vmatprep.subr.mxu0 0.0
      %443 = vmatpush1.msra.mxu0 0.0
      %444 = vmatprep.subr.mxu0 0.0
      %445 = vmatpush1.msra.mxu0 0.0
      %446 = vmatprep.subr.mxu0 0.0
      %447 = vmatpush1.msra.mxu0 0.0
      %448 = vmatprep.subr.mxu0 0.0
      %449 = vmatpush1.msra.mxu0 0.0
      %450 = vmatprep.subr.mxu0 0.0
      %451 = vmatpush1.msra.mxu0 0.0
      %452 = vmatprep.subr.mxu0 0.0
      %453 = vmatpush1.msra.mxu0 0.0
      %454 = vmatprep.mubr.f32.mxu0 0.0
      %455 = vmatmul.mubr.f32.gmra.mrb[0].mxu0 %v381
      %v456 = vpop.f32.mrb[0].mxu0
      %v457 = vadd.f32 0.0, %v456
      %v458 = vpop.f32.mrb[0].mxu0
      %v459 = vadd.f32 0.0, %v458
      %460 = vdwg.mxu0
      %v462 = vsel %vm379, %v354, 0
      %v465 = vsel %vm383, %v352, 0
      %v468 = vsel %vm383, %v353, 0
      %470 = vmatprep.subr.mxu0 %v468
      %471 = vmatpush1.msra.mxu0 %v465
      %472 = vmatprep.subr.mxu0 0.0
      %473 = vmatpush1.msra.mxu0 0.0
      %474 = vmatprep.subr.mxu0 0.0
      %475 = vmatpush1.msra.mxu0 0.0
      %476 = vmatprep.subr.mxu0 0.0
      %477 = vmatpush1.msra.mxu0 0.0
      %478 = vmatprep.subr.mxu0 0.0
      %479 = vmatpush1.msra.mxu0 0.0
      %480 = vmatprep.subr.mxu0 0.0
      %481 = vmatpush1.msra.mxu0 0.0
      %482 = vmatprep.subr.mxu0 0.0
      %483 = vmatpush1.msra.mxu0 0.0
      %484 = vmatprep.subr.mxu0 0.0
      %485 = vmatpush1.msra.mxu0 0.0
      %486 = vmatprep.subr.mxu0 0.0
      %487 = vmatpush1.msra.mxu0 0.0
      %488 = vmatprep.subr.mxu0 0.0
      %489 = vmatpush1.msra.mxu0 0.0
      %490 = vmatprep.subr.mxu0 0.0
      %491 = vmatpush1.msra.mxu0 0.0
      %492 = vmatprep.subr.mxu0 0.0
      %493 = vmatpush1.msra.mxu0 0.0
      %494 = vmatprep.subr.mxu0 0.0
      %495 = vmatpush1.msra.mxu0 0.0
      %496 = vmatprep.subr.mxu0 0.0
      %497 = vmatpush1.msra.mxu0 0.0
      %498 = vmatprep.subr.mxu0 0.0
      %499 = vmatpush1.msra.mxu0 0.0
      %500 = vmatprep.subr.mxu0 0.0
      %501 = vmatpush1.msra.mxu0 0.0
      %502 = vmatprep.subr.mxu0 0.0
      %503 = vmatpush1.msra.mxu0 0.0
      %504 = vmatprep.subr.mxu0 0.0
      %505 = vmatpush1.msra.mxu0 0.0
      %506 = vmatprep.subr.mxu0 0.0
      %507 = vmatpush1.msra.mxu0 0.0
      %508 = vmatprep.subr.mxu0 0.0
      %509 = vmatpush1.msra.mxu0 0.0
      %510 = vmatprep.subr.mxu0 0.0
      %511 = vmatpush1.msra.mxu0 0.0
      %512 = vmatprep.subr.mxu0 0.0
      %513 = vmatpush1.msra.mxu0 0.0
      %514 = vmatprep.subr.mxu0 0.0
      %515 = vmatpush1.msra.mxu0 0.0
      %516 = vmatprep.subr.mxu0 0.0
      %517 = vmatpush1.msra.mxu0 0.0
      %518 = vmatprep.subr.mxu0 0.0
      %519 = vmatpush1.msra.mxu0 0.0
      %520 = vmatprep.subr.mxu0 0.0
      %521 = vmatpush1.msra.mxu0 0.0
      %522 = vmatprep.subr.mxu0 0.0
      %523 = vmatpush1.msra.mxu0 0.0
      %524 = vmatprep.subr.mxu0 0.0
      %525 = vmatpush1.msra.mxu0 0.0
      %526 = vmatprep.subr.mxu0 0.0
      %527 = vmatpush1.msra.mxu0 0.0
      %528 = vmatprep.subr.mxu0 0.0
      %529 = vmatpush1.msra.mxu0 0.0
      %530 = vmatprep.subr.mxu0 0.0
      %531 = vmatpush1.msra.mxu0 0.0
      %532 = vmatprep.subr.mxu0 0.0
      %533 = vmatpush1.msra.mxu0 0.0
      %534 = vmatprep.mubr.f32.mxu0 0.0
      %535 = vmatmul.mubr.f32.gmra.mrb[0].mxu0 %v462
      %v536 = vpop.f32.mrb[0].mxu0
      %v537 = vadd.f32 %v457, %v536
      %v538 = vpop.f32.mrb[0].mxu0
      %v539 = vadd.f32 %v459, %v538
      %540 = vdwg.mxu0
      %541 = vrot.lane.b32.xlu0 %v327, 15
      %v542 = vpop.permute.xlu0 %541
      %543 = vrot.lane.b32.xlu0 %v329, 15
      %v544 = vpop.permute.xlu0 %543
      %vm545 = vcmp.lt.s32.totalorder %v336, 15
      %v546 = vsel %vm545, %v542, %v544
      %v547 = vsel %vm545, %v544, %v542
      %s548 = scalar_lea.vmem %s1, 4
      %v549 = vld [vmem:[%s548] sm:$0x3]
      %v551 = vlaneseq
      %v552 = vshrl.u32 %v551, 7
      %v553 = vsub.s32 0, %v552
      %v554 = vrot.slane %v549, %v553
      %v555 = vlaneseq
      %v556 = vshrl.u32 %v555, 7
      %v557 = vsub.s32 1, %v556
      %v558 = vrot.slane %v549, %v557
      %v561 = vmul.f32 %v547, %v554
      %v562 = vmul.f32 %v546, %v558
      %s563 = scalar_lea.vmem %s4, 16
      %v564 = vld [vmem:[%s563] sm:$0xff]
      %v566 = vsel %vm379, %v564, 0
      %v569 = vsel %vm383, %v561, 0
      %v572 = vsel %vm383, %v562, 0
      %574 = vmatprep.subr.mxu0 %v572
      %575 = vmatpush1.msra.mxu0 %v569
      %576 = vmatprep.subr.mxu0 0.0
      %577 = vmatpush1.msra.mxu0 0.0
      %578 = vmatprep.subr.mxu0 0.0
      %579 = vmatpush1.msra.mxu0 0.0
      %580 = vmatprep.subr.mxu0 0.0
      %581 = vmatpush1.msra.mxu0 0.0
      %582 = vmatprep.subr.mxu0 0.0
      %583 = vmatpush1.msra.mxu0 0.0
      %584 = vmatprep.subr.mxu0 0.0
      %585 = vmatpush1.msra.mxu0 0.0
      %586 = vmatprep.subr.mxu0 0.0
      %587 = vmatpush1.msra.mxu0 0.0
      %588 = vmatprep.subr.mxu0 0.0
      %589 = vmatpush1.msra.mxu0 0.0
      %590 = vmatprep.subr.mxu0 0.0
      %591 = vmatpush1.msra.mxu0 0.0
      %592 = vmatprep.subr.mxu0 0.0
      %593 = vmatpush1.msra.mxu0 0.0
      %594 = vmatprep.subr.mxu0 0.0
      %595 = vmatpush1.msra.mxu0 0.0
      %596 = vmatprep.subr.mxu0 0.0
      %597 = vmatpush1.msra.mxu0 0.0
      %598 = vmatprep.subr.mxu0 0.0
      %599 = vmatpush1.msra.mxu0 0.0
      %600 = vmatprep.subr.mxu0 0.0
      %601 = vmatpush1.msra.mxu0 0.0
      %602 = vmatprep.subr.mxu0 0.0
      %603 = vmatpush1.msra.mxu0 0.0
      %604 = vmatprep.subr.mxu0 0.0
      %605 = vmatpush1.msra.mxu0 0.0
      %606 = vmatprep.subr.mxu0 0.0
      %607 = vmatpush1.msra.mxu0 0.0
      %608 = vmatprep.subr.mxu0 0.0
      %609 = vmatpush1.msra.mxu0 0.0
      %610 = vmatprep.subr.mxu0 0.0
      %611 = vmatpush1.msra.mxu0 0.0
      %612 = vmatprep.subr.mxu0 0.0
      %613 = vmatpush1.msra.mxu0 0.0
      %614 = vmatprep.subr.mxu0 0.0
      %615 = vmatpush1.msra.mxu0 0.0
      %616 = vmatprep.subr.mxu0 0.0
      %617 = vmatpush1.msra.mxu0 0.0
      %618 = vmatprep.subr.mxu0 0.0
      %619 = vmatpush1.msra.mxu0 0.0
      %620 = vmatprep.subr.mxu0 0.0
      %621 = vmatpush1.msra.mxu0 0.0
      %622 = vmatprep.subr.mxu0 0.0
      %623 = vmatpush1.msra.mxu0 0.0
      %624 = vmatprep.subr.mxu0 0.0
      %625 = vmatpush1.msra.mxu0 0.0
      %626 = vmatprep.subr.mxu0 0.0
      %627 = vmatpush1.msra.mxu0 0.0
      %628 = vmatprep.subr.mxu0 0.0
      %629 = vmatpush1.msra.mxu0 0.0
      %630 = vmatprep.subr.mxu0 0.0
      %631 = vmatpush1.msra.mxu0 0.0
      %632 = vmatprep.subr.mxu0 0.0
      %633 = vmatpush1.msra.mxu0 0.0
      %634 = vmatprep.subr.mxu0 0.0
      %635 = vmatpush1.msra.mxu0 0.0
      %636 = vmatprep.subr.mxu0 0.0
      %637 = vmatpush1.msra.mxu0 0.0
      %638 = vmatprep.mubr.f32.mxu0 0.0
      %639 = vmatmul.mubr.f32.gmra.mrb[0].mxu0 %v566
      %v640 = vpop.f32.mrb[0].mxu0
      %v641 = vadd.f32 0.0, %v640
      %v642 = vpop.f32.mrb[0].mxu0
      %v643 = vadd.f32 0.0, %v642
      %644 = vdwg.mxu0
      %v645 = vadd.f32 %v537, %v641
      %v646 = vadd.f32 %v539, %v643
      %647 = vrot.lane.b32.xlu0 %v327, 1
      %v648 = vpop.permute.xlu0 %647
      %649 = vrot.lane.b32.xlu0 %v329, 1
      %v650 = vpop.permute.xlu0 %649
      %vm651 = vcmp.lt.s32.totalorder %v336, 1
      %v652 = vsel %vm651, %v648, %v650
      %v653 = vsel %vm651, %v650, %v648
      %s654 = scalar_lea.vmem %s1, 6
      %v655 = vld [vmem:[%s654] sm:$0x3]
      %v657 = vlaneseq
      %v658 = vshrl.u32 %v657, 7
      %v659 = vsub.s32 0, %v658
      %v660 = vrot.slane %v655, %v659
      %v661 = vlaneseq
      %v662 = vshrl.u32 %v661, 7
      %v663 = vsub.s32 1, %v662
      %v664 = vrot.slane %v655, %v663
      %v667 = vmul.f32 %v653, %v660
      %v668 = vmul.f32 %v652, %v664
      %s669 = scalar_lea.vmem %s4, 24
      %v670 = vld [vmem:[%s669] sm:$0xff]
      %v672 = vsel %vm379, %v670, 0
      %v675 = vsel %vm383, %v667, 0
      %v678 = vsel %vm383, %v668, 0
      %680 = vmatprep.subr.mxu0 %v678
      %681 = vmatpush1.msra.mxu0 %v675
      %682 = vmatprep.subr.mxu0 0.0
      %683 = vmatpush1.msra.mxu0 0.0
      %684 = vmatprep.subr.mxu0 0.0
      %685 = vmatpush1.msra.mxu0 0.0
      %686 = vmatprep.subr.mxu0 0.0
      %687 = vmatpush1.msra.mxu0 0.0
      %688 = vmatprep.subr.mxu0 0.0
      %689 = vmatpush1.msra.mxu0 0.0
      %690 = vmatprep.subr.mxu0 0.0
      %691 = vmatpush1.msra.mxu0 0.0
      %692 = vmatprep.subr.mxu0 0.0
      %693 = vmatpush1.msra.mxu0 0.0
      %694 = vmatprep.subr.mxu0 0.0
      %695 = vmatpush1.msra.mxu0 0.0
      %696 = vmatprep.subr.mxu0 0.0
      %697 = vmatpush1.msra.mxu0 0.0
      %698 = vmatprep.subr.mxu0 0.0
      %699 = vmatpush1.msra.mxu0 0.0
      %700 = vmatprep.subr.mxu0 0.0
      %701 = vmatpush1.msra.mxu0 0.0
      %702 = vmatprep.subr.mxu0 0.0
      %703 = vmatpush1.msra.mxu0 0.0
      %704 = vmatprep.subr.mxu0 0.0
      %705 = vmatpush1.msra.mxu0 0.0
      %706 = vmatprep.subr.mxu0 0.0
      %707 = vmatpush1.msra.mxu0 0.0
      %708 = vmatprep.subr.mxu0 0.0
      %709 = vmatpush1.msra.mxu0 0.0
      %710 = vmatprep.subr.mxu0 0.0
      %711 = vmatpush1.msra.mxu0 0.0
      %712 = vmatprep.subr.mxu0 0.0
      %713 = vmatpush1.msra.mxu0 0.0
      %714 = vmatprep.subr.mxu0 0.0
      %715 = vmatpush1.msra.mxu0 0.0
      %716 = vmatprep.subr.mxu0 0.0
      %717 = vmatpush1.msra.mxu0 0.0
      %718 = vmatprep.subr.mxu0 0.0
      %719 = vmatpush1.msra.mxu0 0.0
      %720 = vmatprep.subr.mxu0 0.0
      %721 = vmatpush1.msra.mxu0 0.0
      %722 = vmatprep.subr.mxu0 0.0
      %723 = vmatpush1.msra.mxu0 0.0
      %724 = vmatprep.subr.mxu0 0.0
      %725 = vmatpush1.msra.mxu0 0.0
      %726 = vmatprep.subr.mxu0 0.0
      %727 = vmatpush1.msra.mxu0 0.0
      %728 = vmatprep.subr.mxu0 0.0
      %729 = vmatpush1.msra.mxu0 0.0
      %730 = vmatprep.subr.mxu0 0.0
      %731 = vmatpush1.msra.mxu0 0.0
      %732 = vmatprep.subr.mxu0 0.0
      %733 = vmatpush1.msra.mxu0 0.0
      %734 = vmatprep.subr.mxu0 0.0
      %735 = vmatpush1.msra.mxu0 0.0
      %736 = vmatprep.subr.mxu0 0.0
      %737 = vmatpush1.msra.mxu0 0.0
      %738 = vmatprep.subr.mxu0 0.0
      %739 = vmatpush1.msra.mxu0 0.0
      %740 = vmatprep.subr.mxu0 0.0
      %741 = vmatpush1.msra.mxu0 0.0
      %742 = vmatprep.subr.mxu0 0.0
      %743 = vmatpush1.msra.mxu0 0.0
      %744 = vmatprep.mubr.f32.mxu0 0.0
      %745 = vmatmul.mubr.f32.gmra.mrb[0].mxu0 %v672
      %v746 = vpop.f32.mrb[0].mxu0
      %v747 = vadd.f32 0.0, %v746
      %v748 = vpop.f32.mrb[0].mxu0
      %v749 = vadd.f32 0.0, %v748
      %750 = vdwg.mxu0
      %v751 = vadd.f32 %v645, %v747
      %v752 = vadd.f32 %v646, %v749
      %s753 = scalar_lea.vmem %s4, 32
      %v754 = vld [vmem:[%s753] sm:$0xff]
      %v756 = vsel %vm379, %v754, 0
      %v758 = vsel %vm383, %v327, 0
      %v760 = vsel %vm383, %v329, 0
      %762 = vmatprep.subr.mxu0 %v760
      %763 = vmatpush1.msra.mxu0 %v758
      %764 = vmatprep.subr.mxu0 0.0
      %765 = vmatpush1.msra.mxu0 0.0
      %766 = vmatprep.subr.mxu0 0.0
      %767 = vmatpush1.msra.mxu0 0.0
      %768 = vmatprep.subr.mxu0 0.0
      %769 = vmatpush1.msra.mxu0 0.0
      %770 = vmatprep.subr.mxu0 0.0
      %771 = vmatpush1.msra.mxu0 0.0
      %772 = vmatprep.subr.mxu0 0.0
      %773 = vmatpush1.msra.mxu0 0.0
      %774 = vmatprep.subr.mxu0 0.0
      %775 = vmatpush1.msra.mxu0 0.0
      %776 = vmatprep.subr.mxu0 0.0
      %777 = vmatpush1.msra.mxu0 0.0
      %778 = vmatprep.subr.mxu0 0.0
      %779 = vmatpush1.msra.mxu0 0.0
      %780 = vmatprep.subr.mxu0 0.0
      %781 = vmatpush1.msra.mxu0 0.0
      %782 = vmatprep.subr.mxu0 0.0
      %783 = vmatpush1.msra.mxu0 0.0
      %784 = vmatprep.subr.mxu0 0.0
      %785 = vmatpush1.msra.mxu0 0.0
      %786 = vmatprep.subr.mxu0 0.0
      %787 = vmatpush1.msra.mxu0 0.0
      %788 = vmatprep.subr.mxu0 0.0
      %789 = vmatpush1.msra.mxu0 0.0
      %790 = vmatprep.subr.mxu0 0.0
      %791 = vmatpush1.msra.mxu0 0.0
      %792 = vmatprep.subr.mxu0 0.0
      %793 = vmatpush1.msra.mxu0 0.0
      %794 = vmatprep.subr.mxu0 0.0
      %795 = vmatpush1.msra.mxu0 0.0
      %796 = vmatprep.subr.mxu0 0.0
      %797 = vmatpush1.msra.mxu0 0.0
      %798 = vmatprep.subr.mxu0 0.0
      %799 = vmatpush1.msra.mxu0 0.0
      %800 = vmatprep.subr.mxu0 0.0
      %801 = vmatpush1.msra.mxu0 0.0
      %802 = vmatprep.subr.mxu0 0.0
      %803 = vmatpush1.msra.mxu0 0.0
      %804 = vmatprep.subr.mxu0 0.0
      %805 = vmatpush1.msra.mxu0 0.0
      %806 = vmatprep.subr.mxu0 0.0
      %807 = vmatpush1.msra.mxu0 0.0
      %808 = vmatprep.subr.mxu0 0.0
      %809 = vmatpush1.msra.mxu0 0.0
      %810 = vmatprep.subr.mxu0 0.0
      %811 = vmatpush1.msra.mxu0 0.0
      %812 = vmatprep.subr.mxu0 0.0
      %813 = vmatpush1.msra.mxu0 0.0
      %814 = vmatprep.subr.mxu0 0.0
      %815 = vmatpush1.msra.mxu0 0.0
      %816 = vmatprep.subr.mxu0 0.0
      %817 = vmatpush1.msra.mxu0 0.0
      %818 = vmatprep.subr.mxu0 0.0
      %819 = vmatpush1.msra.mxu0 0.0
      %820 = vmatprep.subr.mxu0 0.0
      %821 = vmatpush1.msra.mxu0 0.0
      %822 = vmatprep.subr.mxu0 0.0
      %823 = vmatpush1.msra.mxu0 0.0
      %824 = vmatprep.subr.mxu0 0.0
      %825 = vmatpush1.msra.mxu0 0.0
      %826 = vmatprep.mubr.f32.mxu0 0.0
      %827 = vmatmul.mubr.f32.gmra.mrb[0].mxu0 %v756
      %v828 = vpop.f32.mrb[0].mxu0
      %v829 = vadd.f32 0.0, %v828
      %v830 = vpop.f32.mrb[0].mxu0
      %v831 = vadd.f32 0.0, %v830
      %832 = vdwg.mxu0
      %v833 = vadd.f32 %v751, %v829
      %v834 = vadd.f32 %v752, %v831
      %835 = vrot.lane.b32.xlu0 %v327, 127
      %v836 = vpop.permute.xlu0 %835
      %837 = vrot.lane.b32.xlu0 %v329, 127
      %v838 = vpop.permute.xlu0 %837
      %vm839 = vcmp.lt.s32.totalorder %v336, 127
      %v840 = vsel %vm839, %v836, %v838
      %v841 = vsel %vm839, %v838, %v836
      %s842 = scalar_lea.vmem %s1, 10
      %v843 = vld [vmem:[%s842] sm:$0x3]
      %v845 = vlaneseq
      %v846 = vshrl.u32 %v845, 7
      %v847 = vsub.s32 0, %v846
      %v848 = vrot.slane %v843, %v847
      %v849 = vlaneseq
      %v850 = vshrl.u32 %v849, 7
      %v851 = vsub.s32 1, %v850
      %v852 = vrot.slane %v843, %v851
      %v855 = vmul.f32 %v840, %v848
      %v856 = vmul.f32 %v841, %v852
      %s857 = scalar_lea.vmem %s4, 40
      %v858 = vld [vmem:[%s857] sm:$0xff]
      %v860 = vsel %vm379, %v858, 0
      %v863 = vsel %vm383, %v855, 0
      %v866 = vsel %vm383, %v856, 0
      %868 = vmatprep.subr.mxu0 %v866
      %869 = vmatpush1.msra.mxu0 %v863
      %870 = vmatprep.subr.mxu0 0.0
      %871 = vmatpush1.msra.mxu0 0.0
      %872 = vmatprep.subr.mxu0 0.0
      %873 = vmatpush1.msra.mxu0 0.0
      %874 = vmatprep.subr.mxu0 0.0
      %875 = vmatpush1.msra.mxu0 0.0
      %876 = vmatprep.subr.mxu0 0.0
      %877 = vmatpush1.msra.mxu0 0.0
      %878 = vmatprep.subr.mxu0 0.0
      %879 = vmatpush1.msra.mxu0 0.0
      %880 = vmatprep.subr.mxu0 0.0
      %881 = vmatpush1.msra.mxu0 0.0
      %882 = vmatprep.subr.mxu0 0.0
      %883 = vmatpush1.msra.mxu0 0.0
      %884 = vmatprep.subr.mxu0 0.0
      %885 = vmatpush1.msra.mxu0 0.0
      %886 = vmatprep.subr.mxu0 0.0
      %887 = vmatpush1.msra.mxu0 0.0
      %888 = vmatprep.subr.mxu0 0.0
      %889 = vmatpush1.msra.mxu0 0.0
      %890 = vmatprep.subr.mxu0 0.0
      %891 = vmatpush1.msra.mxu0 0.0
      %892 = vmatprep.subr.mxu0 0.0
      %893 = vmatpush1.msra.mxu0 0.0
      %894 = vmatprep.subr.mxu0 0.0
      %895 = vmatpush1.msra.mxu0 0.0
      %896 = vmatprep.subr.mxu0 0.0
      %897 = vmatpush1.msra.mxu0 0.0
      %898 = vmatprep.subr.mxu0 0.0
      %899 = vmatpush1.msra.mxu0 0.0
      %900 = vmatprep.subr.mxu0 0.0
      %901 = vmatpush1.msra.mxu0 0.0
      %902 = vmatprep.subr.mxu0 0.0
      %903 = vmatpush1.msra.mxu0 0.0
      %904 = vmatprep.subr.mxu0 0.0
      %905 = vmatpush1.msra.mxu0 0.0
      %906 = vmatprep.subr.mxu0 0.0
      %907 = vmatpush1.msra.mxu0 0.0
      %908 = vmatprep.subr.mxu0 0.0
      %909 = vmatpush1.msra.mxu0 0.0
      %910 = vmatprep.subr.mxu0 0.0
      %911 = vmatpush1.msra.mxu0 0.0
      %912 = vmatprep.subr.mxu0 0.0
      %913 = vmatpush1.msra.mxu0 0.0
      %914 = vmatprep.subr.mxu0 0.0
      %915 = vmatpush1.msra.mxu0 0.0
      %916 = vmatprep.subr.mxu0 0.0
      %917 = vmatpush1.msra.mxu0 0.0
      %918 = vmatprep.subr.mxu0 0.0
      %919 = vmatpush1.msra.mxu0 0.0
      %920 = vmatprep.subr.mxu0 0.0
      %921 = vmatpush1.msra.mxu0 0.0
      %922 = vmatprep.subr.mxu0 0.0
      %923 = vmatpush1.msra.mxu0 0.0
      %924 = vmatprep.subr.mxu0 0.0
      %925 = vmatpush1.msra.mxu0 0.0
      %926 = vmatprep.subr.mxu0 0.0
      %927 = vmatpush1.msra.mxu0 0.0
      %928 = vmatprep.subr.mxu0 0.0
      %929 = vmatpush1.msra.mxu0 0.0
      %930 = vmatprep.subr.mxu0 0.0
      %931 = vmatpush1.msra.mxu0 0.0
      %932 = vmatprep.mubr.f32.mxu0 0.0
      %933 = vmatmul.mubr.f32.gmra.mrb[0].mxu0 %v860
      %v934 = vpop.f32.mrb[0].mxu0
      %v935 = vadd.f32 0.0, %v934
      %v936 = vpop.f32.mrb[0].mxu0
      %v937 = vadd.f32 0.0, %v936
      %938 = vdwg.mxu0
      %v939 = vadd.f32 %v833, %v935
      %v940 = vadd.f32 %v834, %v937
      %941 = vrot.lane.b32.xlu0 %v327, 113
      %v942 = vpop.permute.xlu0 %941
      %943 = vrot.lane.b32.xlu0 %v329, 113
      %v944 = vpop.permute.xlu0 %943
      %vm945 = vcmp.lt.s32.totalorder %v336, 113
      %v946 = vsel %vm945, %v942, %v944
      %v947 = vsel %vm945, %v944, %v942
      %s948 = scalar_lea.vmem %s1, 12
      %v949 = vld [vmem:[%s948] sm:$0x3]
      %v951 = vlaneseq
      %v952 = vshrl.u32 %v951, 7
      %v953 = vsub.s32 0, %v952
      %v954 = vrot.slane %v949, %v953
      %v955 = vlaneseq
      %v956 = vshrl.u32 %v955, 7
      %v957 = vsub.s32 1, %v956
      %v958 = vrot.slane %v949, %v957
      %v961 = vmul.f32 %v946, %v954
      %v962 = vmul.f32 %v947, %v958
      %s963 = scalar_lea.vmem %s4, 48
      %v964 = vld [vmem:[%s963] sm:$0xff]
      %v966 = vsel %vm379, %v964, 0
      %v969 = vsel %vm383, %v961, 0
      %v972 = vsel %vm383, %v962, 0
      %974 = vmatprep.subr.mxu0 %v972
      %975 = vmatpush1.msra.mxu0 %v969
      %976 = vmatprep.subr.mxu0 0.0
      %977 = vmatpush1.msra.mxu0 0.0
      %978 = vmatprep.subr.mxu0 0.0
      %979 = vmatpush1.msra.mxu0 0.0
      %980 = vmatprep.subr.mxu0 0.0
      %981 = vmatpush1.msra.mxu0 0.0
      %982 = vmatprep.subr.mxu0 0.0
      %983 = vmatpush1.msra.mxu0 0.0
      %984 = vmatprep.subr.mxu0 0.0
      %985 = vmatpush1.msra.mxu0 0.0
      %986 = vmatprep.subr.mxu0 0.0
      %987 = vmatpush1.msra.mxu0 0.0
      %988 = vmatprep.subr.mxu0 0.0
      %989 = vmatpush1.msra.mxu0 0.0
      %990 = vmatprep.subr.mxu0 0.0
      %991 = vmatpush1.msra.mxu0 0.0
      %992 = vmatprep.subr.mxu0 0.0
      %993 = vmatpush1.msra.mxu0 0.0
      %994 = vmatprep.subr.mxu0 0.0
      %995 = vmatpush1.msra.mxu0 0.0
      %996 = vmatprep.subr.mxu0 0.0
      %997 = vmatpush1.msra.mxu0 0.0
      %998 = vmatprep.subr.mxu0 0.0
      %999 = vmatpush1.msra.mxu0 0.0
      %1000 = vmatprep.subr.mxu0 0.0
      %1001 = vmatpush1.msra.mxu0 0.0
      %1002 = vmatprep.subr.mxu0 0.0
      %1003 = vmatpush1.msra.mxu0 0.0
      %1004 = vmatprep.subr.mxu0 0.0
      %1005 = vmatpush1.msra.mxu0 0.0
      %1006 = vmatprep.subr.mxu0 0.0
      %1007 = vmatpush1.msra.mxu0 0.0
      %1008 = vmatprep.subr.mxu0 0.0
      %1009 = vmatpush1.msra.mxu0 0.0
      %1010 = vmatprep.subr.mxu0 0.0
      %1011 = vmatpush1.msra.mxu0 0.0
      %1012 = vmatprep.subr.mxu0 0.0
      %1013 = vmatpush1.msra.mxu0 0.0
      %1014 = vmatprep.subr.mxu0 0.0
      %1015 = vmatpush1.msra.mxu0 0.0
      %1016 = vmatprep.subr.mxu0 0.0
      %1017 = vmatpush1.msra.mxu0 0.0
      %1018 = vmatprep.subr.mxu0 0.0
      %1019 = vmatpush1.msra.mxu0 0.0
      %1020 = vmatprep.subr.mxu0 0.0
      %1021 = vmatpush1.msra.mxu0 0.0
      %1022 = vmatprep.subr.mxu0 0.0
      %1023 = vmatpush1.msra.mxu0 0.0
      %1024 = vmatprep.subr.mxu0 0.0
      %1025 = vmatpush1.msra.mxu0 0.0
      %1026 = vmatprep.subr.mxu0 0.0
      %1027 = vmatpush1.msra.mxu0 0.0
      %1028 = vmatprep.subr.mxu0 0.0
      %1029 = vmatpush1.msra.mxu0 0.0
      %1030 = vmatprep.subr.mxu0 0.0
      %1031 = vmatpush1.msra.mxu0 0.0
      %1032 = vmatprep.subr.mxu0 0.0
      %1033 = vmatpush1.msra.mxu0 0.0
      %1034 = vmatprep.subr.mxu0 0.0
      %1035 = vmatpush1.msra.mxu0 0.0
      %1036 = vmatprep.subr.mxu0 0.0
      %1037 = vmatpush1.msra.mxu0 0.0
      %1038 = vmatprep.mubr.f32.mxu0 0.0
      %1039 = vmatmul.mubr.f32.gmra.mrb[0].mxu0 %v966
      %v1040 = vpop.f32.mrb[0].mxu0
      %v1041 = vadd.f32 0.0, %v1040
      %v1042 = vpop.f32.mrb[0].mxu0
      %v1043 = vadd.f32 0.0, %v1042
      %1044 = vdwg.mxu0
      %v1045 = vadd.f32 %v939, %v1041
      %v1046 = vadd.f32 %v940, %v1043
      %1047 = vrot.lane.b32.xlu0 %v327, 112
      %v1048 = vpop.permute.xlu0 %1047
      %1049 = vrot.lane.b32.xlu0 %v329, 112
      %v1050 = vpop.permute.xlu0 %1049
      %vm1051 = vcmp.lt.s32.totalorder %v336, 112
      %v1052 = vsel %vm1051, %v1048, %v1050
      %v1053 = vsel %vm1051, %v1050, %v1048
      %s1054 = scalar_lea.vmem %s1, 14
      %v1055 = vld [vmem:[%s1054] sm:$0x3]
      %v1057 = vlaneseq
      %v1058 = vshrl.u32 %v1057, 7
      %v1059 = vsub.s32 0, %v1058
      %v1060 = vrot.slane %v1055, %v1059
      %v1061 = vlaneseq
      %v1062 = vshrl.u32 %v1061, 7
      %v1063 = vsub.s32 1, %v1062
      %v1064 = vrot.slane %v1055, %v1063
      %v1067 = vmul.f32 %v1052, %v1060
      %v1068 = vmul.f32 %v1053, %v1064
      %s1069 = scalar_lea.vmem %s4, 56
      %v1070 = vld [vmem:[%s1069] sm:$0xff]
      %v1072 = vsel %vm379, %v1070, 0
      %v1075 = vsel %vm383, %v1067, 0
      %v1078 = vsel %vm383, %v1068, 0
      %1080 = vmatprep.subr.mxu0 %v1078
      %1081 = vmatpush1.msra.mxu0 %v1075
      %1082 = vmatprep.subr.mxu0 0.0
      %1083 = vmatpush1.msra.mxu0 0.0
      %1084 = vmatprep.subr.mxu0 0.0
      %1085 = vmatpush1.msra.mxu0 0.0
      %1086 = vmatprep.subr.mxu0 0.0
      %1087 = vmatpush1.msra.mxu0 0.0
      %1088 = vmatprep.subr.mxu0 0.0
      %1089 = vmatpush1.msra.mxu0 0.0
      %1090 = vmatprep.subr.mxu0 0.0
      %1091 = vmatpush1.msra.mxu0 0.0
      %1092 = vmatprep.subr.mxu0 0.0
      %1093 = vmatpush1.msra.mxu0 0.0
      %1094 = vmatprep.subr.mxu0 0.0
      %1095 = vmatpush1.msra.mxu0 0.0
      %1096 = vmatprep.subr.mxu0 0.0
      %1097 = vmatpush1.msra.mxu0 0.0
      %1098 = vmatprep.subr.mxu0 0.0
      %1099 = vmatpush1.msra.mxu0 0.0
      %1100 = vmatprep.subr.mxu0 0.0
      %1101 = vmatpush1.msra.mxu0 0.0
      %1102 = vmatprep.subr.mxu0 0.0
      %1103 = vmatpush1.msra.mxu0 0.0
      %1104 = vmatprep.subr.mxu0 0.0
      %1105 = vmatpush1.msra.mxu0 0.0
      %1106 = vmatprep.subr.mxu0 0.0
      %1107 = vmatpush1.msra.mxu0 0.0
      %1108 = vmatprep.subr.mxu0 0.0
      %1109 = vmatpush1.msra.mxu0 0.0
      %1110 = vmatprep.subr.mxu0 0.0
      %1111 = vmatpush1.msra.mxu0 0.0
      %1112 = vmatprep.subr.mxu0 0.0
      %1113 = vmatpush1.msra.mxu0 0.0
      %1114 = vmatprep.subr.mxu0 0.0
      %1115 = vmatpush1.msra.mxu0 0.0
      %1116 = vmatprep.subr.mxu0 0.0
      %1117 = vmatpush1.msra.mxu0 0.0
      %1118 = vmatprep.subr.mxu0 0.0
      %1119 = vmatpush1.msra.mxu0 0.0
      %1120 = vmatprep.subr.mxu0 0.0
      %1121 = vmatpush1.msra.mxu0 0.0
      %1122 = vmatprep.subr.mxu0 0.0
      %1123 = vmatpush1.msra.mxu0 0.0
      %1124 = vmatprep.subr.mxu0 0.0
      %1125 = vmatpush1.msra.mxu0 0.0
      %1126 = vmatprep.subr.mxu0 0.0
      %1127 = vmatpush1.msra.mxu0 0.0
      %1128 = vmatprep.subr.mxu0 0.0
      %1129 = vmatpush1.msra.mxu0 0.0
      %1130 = vmatprep.subr.mxu0 0.0
      %1131 = vmatpush1.msra.mxu0 0.0
      %1132 = vmatprep.subr.mxu0 0.0
      %1133 = vmatpush1.msra.mxu0 0.0
      %1134 = vmatprep.subr.mxu0 0.0
      %1135 = vmatpush1.msra.mxu0 0.0
      %1136 = vmatprep.subr.mxu0 0.0
      %1137 = vmatpush1.msra.mxu0 0.0
      %1138 = vmatprep.subr.mxu0 0.0
      %1139 = vmatpush1.msra.mxu0 0.0
      %1140 = vmatprep.subr.mxu0 0.0
      %1141 = vmatpush1.msra.mxu0 0.0
      %1142 = vmatprep.subr.mxu0 0.0
      %1143 = vmatpush1.msra.mxu0 0.0
      %1144 = vmatprep.mubr.f32.mxu0 0.0
      %1145 = vmatmul.mubr.f32.gmra.mrb[0].mxu0 %v1072
      %v1146 = vpop.f32.mrb[0].mxu0
      %v1147 = vadd.f32 0.0, %v1146
      %v1148 = vpop.f32.mrb[0].mxu0
      %v1149 = vadd.f32 0.0, %v1148
      %1150 = vdwg.mxu0
      %v1151 = vadd.f32 %v1045, %v1147
      %v1152 = vadd.f32 %v1046, %v1149
      %1153 = vrot.lane.b32.xlu0 %v327, 111
      %v1154 = vpop.permute.xlu0 %1153
      %1155 = vrot.lane.b32.xlu0 %v329, 111
      %v1156 = vpop.permute.xlu0 %1155
      %vm1157 = vcmp.lt.s32.totalorder %v336, 111
      %v1158 = vsel %vm1157, %v1154, %v1156
      %v1159 = vsel %vm1157, %v1156, %v1154
      %s1160 = scalar_lea.vmem %s1, 16
      %v1161 = vld [vmem:[%s1160] sm:$0x3]
      %v1163 = vlaneseq
      %v1164 = vshrl.u32 %v1163, 7
      %v1165 = vsub.s32 0, %v1164
      %v1166 = vrot.slane %v1161, %v1165
      %v1167 = vlaneseq
      %v1168 = vshrl.u32 %v1167, 7
      %v1169 = vsub.s32 1, %v1168
      %v1170 = vrot.slane %v1161, %v1169
      %v1173 = vmul.f32 %v1158, %v1166
      %v1174 = vmul.f32 %v1159, %v1170
      %s1175 = scalar_lea.vmem %s4, 64
      %v1176 = vld [vmem:[%s1175] sm:$0xff]
      %v1178 = vsel %vm379, %v1176, 0
      %v1181 = vsel %vm383, %v1173, 0
      %v1184 = vsel %vm383, %v1174, 0
      %1186 = vmatprep.subr.mxu0 %v1184
      %1187 = vmatpush1.msra.mxu0 %v1181
      %1188 = vmatprep.subr.mxu0 0.0
      %1189 = vmatpush1.msra.mxu0 0.0
      %1190 = vmatprep.subr.mxu0 0.0
      %1191 = vmatpush1.msra.mxu0 0.0
      %1192 = vmatprep.subr.mxu0 0.0
      %1193 = vmatpush1.msra.mxu0 0.0
      %1194 = vmatprep.subr.mxu0 0.0
      %1195 = vmatpush1.msra.mxu0 0.0
      %1196 = vmatprep.subr.mxu0 0.0
      %1197 = vmatpush1.msra.mxu0 0.0
      %1198 = vmatprep.subr.mxu0 0.0
      %1199 = vmatpush1.msra.mxu0 0.0
      %1200 = vmatprep.subr.mxu0 0.0
      %1201 = vmatpush1.msra.mxu0 0.0
      %1202 = vmatprep.subr.mxu0 0.0
      %1203 = vmatpush1.msra.mxu0 0.0
      %1204 = vmatprep.subr.mxu0 0.0
      %1205 = vmatpush1.msra.mxu0 0.0
      %1206 = vmatprep.subr.mxu0 0.0
      %1207 = vmatpush1.msra.mxu0 0.0
      %1208 = vmatprep.subr.mxu0 0.0
      %1209 = vmatpush1.msra.mxu0 0.0
      %1210 = vmatprep.subr.mxu0 0.0
      %1211 = vmatpush1.msra.mxu0 0.0
      %1212 = vmatprep.subr.mxu0 0.0
      %1213 = vmatpush1.msra.mxu0 0.0
      %1214 = vmatprep.subr.mxu0 0.0
      %1215 = vmatpush1.msra.mxu0 0.0
      %1216 = vmatprep.subr.mxu0 0.0
      %1217 = vmatpush1.msra.mxu0 0.0
      %1218 = vmatprep.subr.mxu0 0.0
      %1219 = vmatpush1.msra.mxu0 0.0
      %1220 = vmatprep.subr.mxu0 0.0
      %1221 = vmatpush1.msra.mxu0 0.0
      %1222 = vmatprep.subr.mxu0 0.0
      %1223 = vmatpush1.msra.mxu0 0.0
      %1224 = vmatprep.subr.mxu0 0.0
      %1225 = vmatpush1.msra.mxu0 0.0
      %1226 = vmatprep.subr.mxu0 0.0
      %1227 = vmatpush1.msra.mxu0 0.0
      %1228 = vmatprep.subr.mxu0 0.0
      %1229 = vmatpush1.msra.mxu0 0.0
      %1230 = vmatprep.subr.mxu0 0.0
      %1231 = vmatpush1.msra.mxu0 0.0
      %1232 = vmatprep.subr.mxu0 0.0
      %1233 = vmatpush1.msra.mxu0 0.0
      %1234 = vmatprep.subr.mxu0 0.0
      %1235 = vmatpush1.msra.mxu0 0.0
      %1236 = vmatprep.subr.mxu0 0.0
      %1237 = vmatpush1.msra.mxu0 0.0
      %1238 = vmatprep.subr.mxu0 0.0
      %1239 = vmatpush1.msra.mxu0 0.0
      %1240 = vmatprep.subr.mxu0 0.0
      %1241 = vmatpush1.msra.mxu0 0.0
      %1242 = vmatprep.subr.mxu0 0.0
      %1243 = vmatpush1.msra.mxu0 0.0
      %1244 = vmatprep.subr.mxu0 0.0
      %1245 = vmatpush1.msra.mxu0 0.0
      %1246 = vmatprep.subr.mxu0 0.0
      %1247 = vmatpush1.msra.mxu0 0.0
      %1248 = vmatprep.subr.mxu0 0.0
      %1249 = vmatpush1.msra.mxu0 0.0
      %1250 = vmatprep.mubr.f32.mxu0 0.0
      %1251 = vmatmul.mubr.f32.gmra.mrb[0].mxu0 %v1178
      %v1252 = vpop.f32.mrb[0].mxu0
      %v1253 = vadd.f32 0.0, %v1252
      %v1254 = vpop.f32.mrb[0].mxu0
      %v1255 = vadd.f32 0.0, %v1254
      %1256 = vdwg.mxu0
      %v1257 = vadd.f32 %v1151, %v1253
      %v1258 = vadd.f32 %v1152, %v1255
      %v1259 = vld [vmem:[%s5] sm:$0xff]
      %1261 = vset.pattern.permute.xlu0 0
      %1262 = vperm.xlu0 %1261, %v1259
      %v1263 = vpop.permute.xlu0 %1262
      %v1265 = vadd.f32 %v1257, %v1263
      %v1266 = vadd.f32 %v1258, %v1263
      %1267 = vst [vmem:[%s318] sm:$0xff] %v1265
      %1268 = vst [vmem:[%s318 + $0x8] sm:$0xff] %v1266
      %v1269 = vadd.f32 %v1265, %v1266
      %1270 = vadd.xlane.f32.xlu0 %v1269
      %v1271 = vpop.xlane.xlu0 %1270
      %vm1272 = vcmask 7168
      %1273 = vst.msk [vmem:[%s322] sm:$0xff] %vm1272, %v1271
      %v1274 = vmul.f32 %v1265, %v1265
      %v1275 = vmul.f32 %v1266, %v1266
      %v1276 = vadd.f32 %v1274, %v1275
      %1277 = vadd.xlane.f32.xlu0 %v1276
      %v1278 = vpop.xlane.xlu0 %1277
      %1279 = vst.msk [vmem:[%s326] sm:$0xff] %vm1272, %v1278
      %p1280 = scmp.lt.s32.totalorder %s20, 1
      %s1281 = scalar_select %p1280, %s20, 1
      %s1282 = smul.addr %s1281, 2
      %s1283 = smul.addr %s1282, 8
      %s1284 = scalar_lea.vmem %s6, %s1283
      %p1285 = scmp.lt.s32.totalorder %s20, 1
      %s1286 = scalar_select %p1285, %s20, 1
      %s1287 = smul.addr %s1286, 8
      %s1288 = scalar_lea.vmem %s7, %s1287
      %p1289 = scmp.lt.s32.totalorder %s20, 1
      %s1290 = scalar_select %p1289, %s20, 1
      %s1291 = smul.addr %s1290, 8
      %s1292 = scalar_lea.vmem %s8, %s1291
      // Predicated region
      $region45: #{double_conv_forward.3} parent=43 // pred_check
        %p1293 = pneg %p169
      $region46: #{double_conv_forward.3} parent=43 // pred_check_branch
        %1295 = sbr.rel (%p1293) target = $region48
      $region47: #{double_conv_forward.3} parent=43 // pred_region
        _
      $region48: #{double_conv_forward.3} parent=43 // pred_fallthru
        _
      // Predicated region
      $region49: #{double_conv_forward.3} parent=43 // pred_check
        %p1296 = pneg %p195
      $region50: #{double_conv_forward.3} parent=43 // pred_check_branch
        %1298 = sbr.rel (%p1296) target = $region52
      $region51: #{double_conv_forward.3} parent=43 // pred_region
        _
      $region52: #{double_conv_forward.3} parent=43 // pred_fallthru
        _
      // Predicated region
      $region53: #{double_conv_forward.3} parent=43 // pred_check
        %p1299 = pneg %p221
      $region54: #{double_conv_forward.3} parent=43 // pred_check_branch
        %1301 = sbr.rel (%p1299) target = $region56
      $region55: #{double_conv_forward.3} parent=43 // pred_region
        _
      $region56: #{double_conv_forward.3} parent=43 // pred_fallthru
        _
    $region44: #{double_conv_forward.3} parent=5 // pred_fallthru
      _
    %p1302 = scmp.le.s32.totalorder 2, %s15
    // Predicated region
    $region57: #{double_conv_forward.3} parent=5 // pred_check
      %p1303 = pneg %p1302
    $region58: #{double_conv_forward.3} parent=5 // pred_check_branch
      %1305 = sbr.rel (%p1303) target = $region60
    $region59: #{double_conv_forward.3} parent=5 // pred_region
      %s1306 = ssub.s32 %s15, 2
      // Predicated region
      $region61: #{double_conv_forward.3} parent=59 // pred_check
        %p1307 = pneg %p175
      $region62: #{double_conv_forward.3} parent=59 // pred_check_branch
        %1309 = sbr.rel (%p1307) target = $region64
      $region63: #{double_conv_forward.3} parent=59 // pred_region
        %p1310 = scmp.lt.s32.totalorder %s21, 1
        %s1311 = scalar_select %p1310, %s21, 1
        %s1312 = smul.addr %s1311, 2
        %s1313 = smul.addr %s1312, 8
        %s1314 = scalar_lea.vmem %s6, %s1313
      $region64: #{double_conv_forward.3} parent=59 // pred_fallthru
        _
      // Predicated region
      $region65: #{double_conv_forward.3} parent=59 // pred_check
        %p1315 = pneg %p201
      $region66: #{double_conv_forward.3} parent=59 // pred_check_branch
        %1317 = sbr.rel (%p1315) target = $region68
      $region67: #{double_conv_forward.3} parent=59 // pred_region
        %p1318 = scmp.lt.s32.totalorder %s21, 1
        %s1319 = scalar_select %p1318, %s21, 1
        %s1320 = smul.addr %s1319, 8
        %s1321 = scalar_lea.vmem %s7, %s1320
      $region68: #{double_conv_forward.3} parent=59 // pred_fallthru
        _
      // Predicated region
      $region69: #{double_conv_forward.3} parent=59 // pred_check
        %p1322 = pneg %p227
      $region70: #{double_conv_forward.3} parent=59 // pred_check_branch
        %1324 = sbr.rel (%p1322) target = $region72
      $region71: #{double_conv_forward.3} parent=59 // pred_region
        %p1325 = scmp.lt.s32.totalorder %s21, 1
        %s1326 = scalar_select %p1325, %s21, 1
        %s1327 = smul.addr %s1326, 8
        %s1328 = scalar_lea.vmem %s8, %s1327
      $region72: #{double_conv_forward.3} parent=59 // pred_fallthru
        _
    $region60: #{double_conv_forward.3} parent=5 // pred_fallthru
      _
  $region6: #{double_conv_forward.3} parent=0 // loop_footer
    %s19 = sadd.s32 1, %s15
  $region7: #{double_conv_forward.3} parent=0 // loop_footer_branch
    %14 = sbr.rel target = $region3
  $region8: #{double_conv_forward.3} parent=0 // loop_exit
    _

</llo_original>
